<compile_context>
chip_gen: v6e
topology: v6e:2x2x1
jax: 0.10.0
libtpu: 0.0.40
codegen_flags: <defaults>
</compile_context>

<pallas_src>
import jax
import jax.numpy as jnp
from jax.experimental import pallas as pl
from jax.experimental.pallas import tpu as pltpu


DRUG_EMB_DIM = 256  # drug_emb output width (torch: nn.Linear(..., 256))


def _round_up(x, m):
    return ((x + m - 1) // m) * m


def _const_index_map(ndim):
    # Constant block index -> Pallas does not re-DMA the block across grid steps.
    if ndim == 1:
        return lambda i: (0,)
    if ndim == 2:
        return lambda i: (0, 0)
    if ndim == 3:
        return lambda i: (0, 0, 0)
    raise ValueError(f"unsupported ndim {ndim}")


# ----------------------------------------------------------------------------
# Fused Pallas kernel: whole post-encoder head for one batch block.
# ----------------------------------------------------------------------------
def _tgdrp_fused_kernel(
    x_drug_ref, h_cell_ref,
    drug_w_ref, drug_b_ref,
    conv_w_ref, conv_b_ref,
    cell_w1_ref, cell_b1_ref,
    cell_w2_ref, cell_b2_ref,
    reg_w1d_ref, reg_w1c_ref, reg_b1_ref,
    reg_w2_ref, reg_b2_ref,
    reg_w3_ref, reg_b3_ref,
    o_ref,
):
    f32 = jnp.float32
    bf16 = jnp.bfloat16

    def elu(y):
        # exp only on the clamped (<=0) branch -> no overflow work; EUP slot.
        return jnp.where(y > 0.0, y, jnp.exp(jnp.minimum(y, 0.0)) - 1.0)

    # ---- drug branch: drug_emb = ReLU(Linear)  (Dropout = identity, eval) ----
    xd = jnp.dot(x_drug_ref[...], drug_w_ref[...], preferred_element_type=f32)
    xd = jnp.maximum(xd + drug_b_ref[...], 0.0)                  # (Bt, 256) f32

    # ---- cell branch: ConvPoolerShort == per-token dot with length-D filter.
    # bf16 multiply (VPU), f32 accumulation for the lane reduce; lane-dense
    # (Bt, S) result is already in LHS layout for cell_w1.
    prod = h_cell_ref[...] * conv_w_ref[...]                     # bf16 (Bt, S, D)
    pooled = jnp.sum(prod.astype(f32), axis=-1) + conv_b_ref[...]  # (Bt, S) f32

    # ---- cell_emb: Linear(S,1024)+ReLU, Linear(1024,256)+ReLU ----
    xc = jnp.dot(pooled.astype(bf16), cell_w1_ref[...], preferred_element_type=f32)
    xc = jnp.maximum(xc + cell_b1_ref[...], 0.0)                 # (Bt, 1024)
    xc = jnp.dot(xc.astype(bf16), cell_w2_ref[...], preferred_element_type=f32)
    xc = jnp.maximum(xc + cell_b2_ref[...], 0.0)                 # (Bt, 256)

    # ---- regression head; torch.cat folded into split reg_w1 accumulation ----
    y = (jnp.dot(xd.astype(bf16), reg_w1d_ref[...], preferred_element_type=f32)
         + jnp.dot(xc.astype(bf16), reg_w1c_ref[...], preferred_element_type=f32)
         + reg_b1_ref[...])
    y = elu(y)                                                   # (Bt, 512)
    y = jnp.dot(y.astype(bf16), reg_w2_ref[...], preferred_element_type=f32)
    y = elu(y + reg_b2_ref[...])                                 # (Bt, 512)

    # Final Linear(512, 1): VPU multiply + lane reduce.  Broadcast the (Bt, 1)
    # result across 128 lanes so the store is an unmasked, lane-dense vst.
    res = jnp.sum(y * reg_w3_ref[...], axis=-1, keepdims=True) + reg_b3_ref[...]
    o_ref[...] = jnp.broadcast_to(res, o_ref.shape).astype(o_ref.dtype)


# ----------------------------------------------------------------------------
# One-time weight preparation: bf16 matmul weights, f32 biases, drug weight
# rows zero-padded to a 128 multiple, reg_w1 split so the concat is folded
# into two accumulating matmuls.
# ----------------------------------------------------------------------------
def prepare_params(params, cell_dim):
    bf16, f32 = jnp.bfloat16, jnp.float32
    p = params

    drug_w = p["drug_w"]
    k_in = drug_w.shape[0]
    k_pad = _round_up(k_in, 128)
    if k_pad != k_in:
        drug_w = jnp.pad(drug_w, ((0, k_pad - k_in), (0, 0)))

    return dict(
        drug_w=drug_w.astype(bf16),                               # (K_pad, 256)
        drug_b=p["drug_b"].reshape(1, -1).astype(f32),
        conv_w=p["conv_w"].reshape(1, 1, cell_dim).astype(bf16),  # (1,1,D)
        conv_b=p["conv_b"].reshape(1, 1).astype(f32),
        cell_w1=p["cell_w1"].astype(bf16),
        cell_b1=p["cell_b1"].reshape(1, -1).astype(f32),
        cell_w2=p["cell_w2"].astype(bf16),
        cell_b2=p["cell_b2"].reshape(1, -1).astype(f32),
        reg_w1d=p["reg_w1"][:DRUG_EMB_DIM].astype(bf16),          # drug rows
        reg_w1c=p["reg_w1"][DRUG_EMB_DIM:].astype(bf16),          # cell rows
        reg_b1=p["reg_b1"].reshape(1, -1).astype(f32),
        reg_w2=p["reg_w2"].astype(bf16),
        reg_b2=p["reg_b2"].reshape(1, -1).astype(f32),
        reg_w3=p["reg_w3"].reshape(1, -1).astype(f32),            # (1, 512)
        reg_b3=p["reg_b3"].reshape(1, 1).astype(f32),
    )


# ----------------------------------------------------------------------------
# TGDRP forward (post-encoder part): single pallas_call, gridded over batch.
# ----------------------------------------------------------------------------
def tgdrp_forward(prep, x_drug_feat, h_cell):
    # TODO(synk): GINTGSA drug GNN and the pretrained scbert cell transformer
    # backbone are external modules (not in the provided source); their outputs
    # are the x_drug_feat / h_cell inputs here.
    B = x_drug_feat.shape[0]
    S, D = h_cell.shape[1], h_cell.shape[2]
    K_pad = prep["drug_w"].shape[0]

    # Batch block: at least 8 (sublane group); cap at 128 so the double-buffered
    # h_cell block stays well inside v7x's 32 MiB default scoped VMEM.
    Bt = 128 if B >= 128 else _round_up(B, 8)
    B_pad = _round_up(B, Bt)

    xd = x_drug_feat.astype(jnp.bfloat16)
    xd = jnp.pad(xd, ((0, B_pad - B), (0, K_pad - xd.shape[1])))
    hc = h_cell.astype(jnp.bfloat16)
    if B_pad != B:
        hc = jnp.pad(hc, ((0, B_pad - B), (0, 0), (0, 0)))

    weights = (
        prep["drug_w"], prep["drug_b"],
        prep["conv_w"], prep["conv_b"],
        prep["cell_w1"], prep["cell_b1"],
        prep["cell_w2"], prep["cell_b2"],
        prep["reg_w1d"], prep["reg_w1c"], prep["reg_b1"],
        prep["reg_w2"], prep["reg_b2"],
        prep["reg_w3"], prep["reg_b3"],
    )
    operands = (xd, hc) + weights

    in_specs = [
        # Batch-streamed activations: new block per grid step (double-buffered).
        pl.BlockSpec((Bt, K_pad), lambda i: (i, 0)),
        pl.BlockSpec((Bt, S, D), lambda i: (i, 0, 0)),
    ] + [
        # Weights: full-array blocks at a constant block index -> loaded once,
        # VMEM-resident across all batch blocks.
        pl.BlockSpec(w.shape, _const_index_map(w.ndim)) for w in weights
    ]

    out_full = pl.pallas_call(
        _tgdrp_fused_kernel,
        out_shape=jax.ShapeDtypeStruct((B_pad, 128), jnp.float32),
        grid=(B_pad // Bt,),
        in_specs=in_specs,
        out_specs=pl.BlockSpec((Bt, 128), lambda i: (i, 0)),
        compiler_params=pltpu.CompilerParams(
            dimension_semantics=("parallel",)),
    )(*operands)
    return out_full[:B, :1]


# ----------------------------------------------------------------------------
# Deterministic parameter construction (f32 "master" params).
# ----------------------------------------------------------------------------
def init_params(key, drug_in_dim, cell_seq_len, cell_dim):
    keys = jax.random.split(key, 16)
    s = 0.02

    def w(k, shape):
        return jax.random.normal(k, shape, jnp.float32) * s

    return {
        # drug_emb: Linear(layer_drug*dim_drug, 256)
        "drug_w": w(keys[0], (drug_in_dim, 256)),
        "drug_b": w(keys[1], (256,)),
        # ConvPoolerShort: Conv2d(1, 1, (1, dim)) -> weight (dim, 1), bias (1,)
        "conv_w": w(keys[2], (cell_dim, 1)),
        "conv_b": w(keys[3], (1,)),
        # cell_emb: Linear(seq_len, 1024), Linear(1024, 256)
        "cell_w1": w(keys[4], (cell_seq_len, 1024)),
        "cell_b1": w(keys[5], (1024,)),
        "cell_w2": w(keys[6], (1024, 256)),
        "cell_b2": w(keys[7], (256,)),
        # regression: Linear(512,512), Linear(512,512), Linear(512,1)
        "reg_w1": w(keys[8], (512, 512)),
        "reg_b1": w(keys[9], (512,)),
        "reg_w2": w(keys[10], (512, 512)),
        "reg_b2": w(keys[11], (512,)),
        "reg_w3": w(keys[12], (512, 1)),
        "reg_b3": w(keys[13], (1,)),
    }


if __name__ == "__main__":
    key = jax.random.PRNGKey(0)
    k_in1, k_in2, k_par = jax.random.split(key, 3)

    # Small, module-consistent shapes:
    B = 2
    layer_drug, dim_drug = 3, 32          # drug GNN readout dim = 96
    cell_seq_len, cell_dim = 128, 64      # scbert-style: max_seq_len=128, dim=64

    x_drug_feat = jax.random.normal(k_in1, (B, layer_drug * dim_drug), jnp.float32)
    h_cell = jax.random.normal(k_in2, (B, cell_seq_len, cell_dim), jnp.float32)

    params = init_params(k_par, layer_drug * dim_drug, cell_seq_len, cell_dim)
    prep = prepare_params(params, cell_dim)

    out = tgdrp_forward(prep, x_drug_feat, h_cell)
    out = jax.block_until_ready(out)
    assert out.shape == (B, 1), out.shape
    assert bool(jnp.all(jnp.isfinite(out)))
    print("KERNEL_OK")
</pallas_src>

<mosaic_0001>
module attributes {stable_mosaic.version = 11 : i64} {
  func.func @_tgdrp_fused_kernel(%arg0: i32, %arg1: memref<8x128xbf16, #tpu.memory_space<vmem>>, %arg2: memref<8x128x64xbf16, #tpu.memory_space<vmem>>, %arg3: memref<128x256xbf16, #tpu.memory_space<vmem>>, %arg4: memref<1x256xf32, #tpu.memory_space<vmem>>, %arg5: memref<1x1x64xbf16, #tpu.memory_space<vmem>>, %arg6: memref<1x1xf32, #tpu.memory_space<vmem>>, %arg7: memref<128x1024xbf16, #tpu.memory_space<vmem>>, %arg8: memref<1x1024xf32, #tpu.memory_space<vmem>>, %arg9: memref<1024x256xbf16, #tpu.memory_space<vmem>>, %arg10: memref<1x256xf32, #tpu.memory_space<vmem>>, %arg11: memref<256x512xbf16, #tpu.memory_space<vmem>>, %arg12: memref<256x512xbf16, #tpu.memory_space<vmem>>, %arg13: memref<1x512xf32, #tpu.memory_space<vmem>>, %arg14: memref<512x512xbf16, #tpu.memory_space<vmem>>, %arg15: memref<1x512xf32, #tpu.memory_space<vmem>>, %arg16: memref<1x512xf32, #tpu.memory_space<vmem>>, %arg17: memref<1x1xf32, #tpu.memory_space<vmem>>, %arg18: memref<8x128xf32, #tpu.memory_space<vmem>>) attributes {dimension_semantics = [#tpu.dimension_semantics<parallel>], iteration_bounds = array<i64: 1>, scalar_prefetch = 0 : i64, scratch_operands = 0 : i64, tpu.core_type = #tpu.core_type<tc>, window_params = [{transform_indices = @transform_0, window_bounds = array<i64: 8, 128>}, {transform_indices = @transform_1, window_bounds = array<i64: 8, 128, 64>}, {pipeline_mode = #tpu.pipeline_mode<synchronous>, transform_indices = @transform_2, window_bounds = array<i64: 128, 256>}, {pipeline_mode = #tpu.pipeline_mode<synchronous>, transform_indices = @transform_3, window_bounds = array<i64: 1, 256>}, {pipeline_mode = #tpu.pipeline_mode<synchronous>, transform_indices = @transform_4, window_bounds = array<i64: 1, 1, 64>}, {pipeline_mode = #tpu.pipeline_mode<synchronous>, transform_indices = @transform_5, window_bounds = array<i64: 1, 1>}, {pipeline_mode = #tpu.pipeline_mode<synchronous>, transform_indices = @transform_6, window_bounds = array<i64: 128, 1024>}, {pipeline_mode = #tpu.pipeline_mode<synchronous>, transform_indices = @transform_7, window_bounds = array<i64: 1, 1024>}, {pipeline_mode = #tpu.pipeline_mode<synchronous>, transform_indices = @transform_8, window_bounds = array<i64: 1024, 256>}, {pipeline_mode = #tpu.pipeline_mode<synchronous>, transform_indices = @transform_9, window_bounds = array<i64: 1, 256>}, {pipeline_mode = #tpu.pipeline_mode<synchronous>, transform_indices = @transform_10, window_bounds = array<i64: 256, 512>}, {pipeline_mode = #tpu.pipeline_mode<synchronous>, transform_indices = @transform_11, window_bounds = array<i64: 256, 512>}, {pipeline_mode = #tpu.pipeline_mode<synchronous>, transform_indices = @transform_12, window_bounds = array<i64: 1, 512>}, {pipeline_mode = #tpu.pipeline_mode<synchronous>, transform_indices = @transform_13, window_bounds = array<i64: 512, 512>}, {pipeline_mode = #tpu.pipeline_mode<synchronous>, transform_indices = @transform_14, window_bounds = array<i64: 1, 512>}, {pipeline_mode = #tpu.pipeline_mode<synchronous>, transform_indices = @transform_15, window_bounds = array<i64: 1, 512>}, {pipeline_mode = #tpu.pipeline_mode<synchronous>, transform_indices = @transform_16, window_bounds = array<i64: 1, 1>}, {transform_indices = @transform_17, window_bounds = array<i64: 8, 128>}]} {
    %c0 = arith.constant 0 : index
    %c0_0 = arith.constant 0 : index
    %0 = vector.load %arg1[%c0, %c0_0] : memref<8x128xbf16, #tpu.memory_space<vmem>>, vector<8x128xbf16>
    %c0_1 = arith.constant 0 : index
    %c0_2 = arith.constant 0 : index
    %1 = vector.load %arg3[%c0_1, %c0_2] : memref<128x256xbf16, #tpu.memory_space<vmem>>, vector<128x256xbf16>
    %cst = arith.constant dense<0.000000e+00> : vector<8x256xf32>
    %2 = tpu.matmul %0, %1, %cst {dimension_numbers = #tpu.dot_dimension_numbers<[1], [0], [0], [1], [0, 0, 1, 1], [], []>} : vector<8x128xbf16>, vector<128x256xbf16>, vector<8x256xf32> -> vector<8x256xf32>
    %c0_3 = arith.constant 0 : index
    %c0_4 = arith.constant 0 : index
    %3 = vector.load %arg4[%c0_3, %c0_4] : memref<1x256xf32, #tpu.memory_space<vmem>>, vector<1x256xf32>
    %4 = vector.broadcast %3 : vector<1x256xf32> to vector<8x256xf32>
    %5 = arith.addf %2, %4 : vector<8x256xf32>
    %cst_5 = arith.constant 0.000000e+00 : f32
    %6 = vector.broadcast %cst_5 : f32 to vector<8x256xf32>
    %7 = arith.maximumf %5, %6 : vector<8x256xf32>
    %c0_6 = arith.constant 0 : index
    %c0_7 = arith.constant 0 : index
    %c0_8 = arith.constant 0 : index
    %8 = vector.load %arg2[%c0_6, %c0_7, %c0_8] : memref<8x128x64xbf16, #tpu.memory_space<vmem>>, vector<8x128x64xbf16>
    %c0_9 = arith.constant 0 : index
    %c0_10 = arith.constant 0 : index
    %c0_11 = arith.constant 0 : index
    %9 = vector.load %arg5[%c0_9, %c0_10, %c0_11] : memref<1x1x64xbf16, #tpu.memory_space<vmem>>, vector<1x1x64xbf16>
    %10 = vector.broadcast %9 : vector<1x1x64xbf16> to vector<8x128x64xbf16>
    %11 = arith.mulf %8, %10 : vector<8x128x64xbf16>
    %12 = arith.extf %11 : vector<8x128x64xbf16> to vector<8x128x64xf32>
    %cst_12 = arith.constant dense<0.000000e+00> : vector<8x128xf32>
    %13 = vector.multi_reduction <add>, %12, %cst_12 [2] : vector<8x128x64xf32> to vector<8x128xf32>
    %c0_13 = arith.constant 0 : index
    %c0_14 = arith.constant 0 : index
    %14 = vector.load %arg6[%c0_13, %c0_14] : memref<1x1xf32, #tpu.memory_space<vmem>>, vector<1x1xf32>
    %15 = vector.broadcast %14 : vector<1x1xf32> to vector<8x128xf32>
    %16 = arith.addf %13, %15 : vector<8x128xf32>
    %17 = arith.truncf %16 : vector<8x128xf32> to vector<8x128xbf16>
    %c0_15 = arith.constant 0 : index
    %c0_16 = arith.constant 0 : index
    %18 = vector.load %arg7[%c0_15, %c0_16] : memref<128x1024xbf16, #tpu.memory_space<vmem>>, vector<128x1024xbf16>
    %cst_17 = arith.constant dense<0.000000e+00> : vector<8x1024xf32>
    %19 = tpu.matmul %17, %18, %cst_17 {dimension_numbers = #tpu.dot_dimension_numbers<[1], [0], [0], [1], [0, 0, 1, 1], [], []>} : vector<8x128xbf16>, vector<128x1024xbf16>, vector<8x1024xf32> -> vector<8x1024xf32>
    %c0_18 = arith.constant 0 : index
    %c0_19 = arith.constant 0 : index
    %20 = vector.load %arg8[%c0_18, %c0_19] : memref<1x1024xf32, #tpu.memory_space<vmem>>, vector<1x1024xf32>
    %21 = vector.broadcast %20 : vector<1x1024xf32> to vector<8x1024xf32>
    %22 = arith.addf %19, %21 : vector<8x1024xf32>
    %cst_20 = arith.constant 0.000000e+00 : f32
    %23 = vector.broadcast %cst_20 : f32 to vector<8x1024xf32>
    %24 = arith.maximumf %22, %23 : vector<8x1024xf32>
    %25 = arith.truncf %24 : vector<8x1024xf32> to vector<8x1024xbf16>
    %c0_21 = arith.constant 0 : index
    %c0_22 = arith.constant 0 : index
    %26 = vector.load %arg9[%c0_21, %c0_22] : memref<1024x256xbf16, #tpu.memory_space<vmem>>, vector<1024x256xbf16>
    %cst_23 = arith.constant dense<0.000000e+00> : vector<8x256xf32>
    %27 = tpu.matmul %25, %26, %cst_23 {dimension_numbers = #tpu.dot_dimension_numbers<[1], [0], [0], [1], [0, 0, 1, 1], [], []>} : vector<8x1024xbf16>, vector<1024x256xbf16>, vector<8x256xf32> -> vector<8x256xf32>
    %c0_24 = arith.constant 0 : index
    %c0_25 = arith.constant 0 : index
    %28 = vector.load %arg10[%c0_24, %c0_25] : memref<1x256xf32, #tpu.memory_space<vmem>>, vector<1x256xf32>
    %29 = vector.broadcast %28 : vector<1x256xf32> to vector<8x256xf32>
    %30 = arith.addf %27, %29 : vector<8x256xf32>
    %cst_26 = arith.constant 0.000000e+00 : f32
    %31 = vector.broadcast %cst_26 : f32 to vector<8x256xf32>
    %32 = arith.maximumf %30, %31 : vector<8x256xf32>
    %33 = arith.truncf %7 : vector<8x256xf32> to vector<8x256xbf16>
    %c0_27 = arith.constant 0 : index
    %c0_28 = arith.constant 0 : index
    %34 = vector.load %arg11[%c0_27, %c0_28] : memref<256x512xbf16, #tpu.memory_space<vmem>>, vector<256x512xbf16>
    %cst_29 = arith.constant dense<0.000000e+00> : vector<8x512xf32>
    %35 = tpu.matmul %33, %34, %cst_29 {dimension_numbers = #tpu.dot_dimension_numbers<[1], [0], [0], [1], [0, 0, 1, 1], [], []>} : vector<8x256xbf16>, vector<256x512xbf16>, vector<8x512xf32> -> vector<8x512xf32>
    %36 = arith.truncf %32 : vector<8x256xf32> to vector<8x256xbf16>
    %c0_30 = arith.constant 0 : index
    %c0_31 = arith.constant 0 : index
    %37 = vector.load %arg12[%c0_30, %c0_31] : memref<256x512xbf16, #tpu.memory_space<vmem>>, vector<256x512xbf16>
    %cst_32 = arith.constant dense<0.000000e+00> : vector<8x512xf32>
    %38 = tpu.matmul %36, %37, %cst_32 {dimension_numbers = #tpu.dot_dimension_numbers<[1], [0], [0], [1], [0, 0, 1, 1], [], []>} : vector<8x256xbf16>, vector<256x512xbf16>, vector<8x512xf32> -> vector<8x512xf32>
    %39 = arith.addf %35, %38 : vector<8x512xf32>
    %c0_33 = arith.constant 0 : index
    %c0_34 = arith.constant 0 : index
    %40 = vector.load %arg13[%c0_33, %c0_34] : memref<1x512xf32, #tpu.memory_space<vmem>>, vector<1x512xf32>
    %41 = vector.broadcast %40 : vector<1x512xf32> to vector<8x512xf32>
    %42 = arith.addf %39, %41 : vector<8x512xf32>
    %cst_35 = arith.constant 0.000000e+00 : f32
    %43 = vector.broadcast %cst_35 : f32 to vector<8x512xf32>
    %44 = arith.cmpf ogt, %42, %43 : vector<8x512xf32>
    %cst_36 = arith.constant 0.000000e+00 : f32
    %45 = vector.broadcast %cst_36 : f32 to vector<8x512xf32>
    %46 = arith.minimumf %42, %45 : vector<8x512xf32>
    %47 = math.exp %46 : vector<8x512xf32>
    %cst_37 = arith.constant 1.000000e+00 : f32
    %48 = vector.broadcast %cst_37 : f32 to vector<8x512xf32>
    %49 = arith.subf %47, %48 : vector<8x512xf32>
    %50 = arith.select %44, %42, %49 : vector<8x512xi1>, vector<8x512xf32>
    %51 = arith.truncf %50 : vector<8x512xf32> to vector<8x512xbf16>
    %c0_38 = arith.constant 0 : index
    %c0_39 = arith.constant 0 : index
    %52 = vector.load %arg14[%c0_38, %c0_39] : memref<512x512xbf16, #tpu.memory_space<vmem>>, vector<512x512xbf16>
    %cst_40 = arith.constant dense<0.000000e+00> : vector<8x512xf32>
    %53 = tpu.matmul %51, %52, %cst_40 {dimension_numbers = #tpu.dot_dimension_numbers<[1], [0], [0], [1], [0, 0, 1, 1], [], []>} : vector<8x512xbf16>, vector<512x512xbf16>, vector<8x512xf32> -> vector<8x512xf32>
    %c0_41 = arith.constant 0 : index
    %c0_42 = arith.constant 0 : index
    %54 = vector.load %arg15[%c0_41, %c0_42] : memref<1x512xf32, #tpu.memory_space<vmem>>, vector<1x512xf32>
    %55 = vector.broadcast %54 : vector<1x512xf32> to vector<8x512xf32>
    %56 = arith.addf %53, %55 : vector<8x512xf32>
    %cst_43 = arith.constant 0.000000e+00 : f32
    %57 = vector.broadcast %cst_43 : f32 to vector<8x512xf32>
    %58 = arith.cmpf ogt, %56, %57 : vector<8x512xf32>
    %cst_44 = arith.constant 0.000000e+00 : f32
    %59 = vector.broadcast %cst_44 : f32 to vector<8x512xf32>
    %60 = arith.minimumf %56, %59 : vector<8x512xf32>
    %61 = math.exp %60 : vector<8x512xf32>
    %cst_45 = arith.constant 1.000000e+00 : f32
    %62 = vector.broadcast %cst_45 : f32 to vector<8x512xf32>
    %63 = arith.subf %61, %62 : vector<8x512xf32>
    %64 = arith.select %58, %56, %63 : vector<8x512xi1>, vector<8x512xf32>
    %c0_46 = arith.constant 0 : index
    %c0_47 = arith.constant 0 : index
    %65 = vector.load %arg16[%c0_46, %c0_47] : memref<1x512xf32, #tpu.memory_space<vmem>>, vector<1x512xf32>
    %66 = vector.broadcast %65 : vector<1x512xf32> to vector<8x512xf32>
    %67 = arith.mulf %64, %66 : vector<8x512xf32>
    %cst_48 = arith.constant dense<0.000000e+00> : vector<8xf32>
    %68 = vector.multi_reduction <add>, %67, %cst_48 [1] : vector<8x512xf32> to vector<8xf32>
    %69 = vector.shape_cast %68 : vector<8xf32> to vector<8x1xf32>
    %c0_49 = arith.constant 0 : index
    %c0_50 = arith.constant 0 : index
    %70 = vector.load %arg17[%c0_49, %c0_50] : memref<1x1xf32, #tpu.memory_space<vmem>>, vector<1x1xf32>
    %71 = vector.broadcast %70 : vector<1x1xf32> to vector<8x1xf32>
    %72 = arith.addf %69, %71 : vector<8x1xf32>
    %73 = vector.shape_cast %72 : vector<8x1xf32> to vector<8x1xf32>
    %74 = vector.broadcast %73 : vector<8x1xf32> to vector<8x128xf32>
    %c0_51 = arith.constant 0 : index
    %c0_52 = arith.constant 0 : index
    %75 = vector.load %arg18[%c0_51, %c0_52] : memref<8x128xf32, #tpu.memory_space<vmem>>, vector<8x128xf32>
    tpu.vector_store %arg18[%c0_51, %c0_52], %74 {strides = array<i32>} : memref<8x128xf32, #tpu.memory_space<vmem>>, vector<8x128xf32>,
    return
  }
  func.func @transform_0(%arg0: i32) -> (i32, i32) {
    %c0_i32 = arith.constant 0 : i32
    %c0_i32_0 = arith.constant 0 : i32
    return %arg0, %c0_i32 : i32, i32
  }
  func.func @transform_1(%arg0: i32) -> (i32, i32, i32) {
    %c0_i32 = arith.constant 0 : i32
    %c0_i32_0 = arith.constant 0 : i32
    %c0_i32_1 = arith.constant 0 : i32
    return %arg0, %c0_i32, %c0_i32_0 : i32, i32, i32
  }
  func.func @transform_2(%arg0: i32) -> (i32, i32) {
    %c0_i32 = arith.constant 0 : i32
    %c0_i32_0 = arith.constant 0 : i32
    %c0_i32_1 = arith.constant 0 : i32
    return %c0_i32, %c0_i32_0 : i32, i32
  }
  func.func @transform_3(%arg0: i32) -> (i32, i32) {
    %c0_i32 = arith.constant 0 : i32
    %c0_i32_0 = arith.constant 0 : i32
    %c0_i32_1 = arith.constant 0 : i32
    return %c0_i32, %c0_i32_0 : i32, i32
  }
  func.func @transform_4(%arg0: i32) -> (i32, i32, i32) {
    %c0_i32 = arith.constant 0 : i32
    %c0_i32_0 = arith.constant 0 : i32
    %c0_i32_1 = arith.constant 0 : i32
    %c0_i32_2 = arith.constant 0 : i32
    return %c0_i32, %c0_i32_0, %c0_i32_1 : i32, i32, i32
  }
  func.func @transform_5(%arg0: i32) -> (i32, i32) {
    %c0_i32 = arith.constant 0 : i32
    %c0_i32_0 = arith.constant 0 : i32
    %c0_i32_1 = arith.constant 0 : i32
    return %c0_i32, %c0_i32_0 : i32, i32
  }
  func.func @transform_6(%arg0: i32) -> (i32, i32) {
    %c0_i32 = arith.constant 0 : i32
    %c0_i32_0 = arith.constant 0 : i32
    %c0_i32_1 = arith.constant 0 : i32
    return %c0_i32, %c0_i32_0 : i32, i32
  }
  func.func @transform_7(%arg0: i32) -> (i32, i32) {
    %c0_i32 = arith.constant 0 : i32
    %c0_i32_0 = arith.constant 0 : i32
    %c0_i32_1 = arith.constant 0 : i32
    return %c0_i32, %c0_i32_0 : i32, i32
  }
  func.func @transform_8(%arg0: i32) -> (i32, i32) {
    %c0_i32 = arith.constant 0 : i32
    %c0_i32_0 = arith.constant 0 : i32
    %c0_i32_1 = arith.constant 0 : i32
    return %c0_i32, %c0_i32_0 : i32, i32
  }
  func.func @transform_9(%arg0: i32) -> (i32, i32) {
    %c0_i32 = arith.constant 0 : i32
    %c0_i32_0 = arith.constant 0 : i32
    %c0_i32_1 = arith.constant 0 : i32
    return %c0_i32, %c0_i32_0 : i32, i32
  }
  func.func @transform_10(%arg0: i32) -> (i32, i32) {
    %c0_i32 = arith.constant 0 : i32
    %c0_i32_0 = arith.constant 0 : i32
    %c0_i32_1 = arith.constant 0 : i32
    return %c0_i32, %c0_i32_0 : i32, i32
  }
  func.func @transform_11(%arg0: i32) -> (i32, i32) {
    %c0_i32 = arith.constant 0 : i32
    %c0_i32_0 = arith.constant 0 : i32
    %c0_i32_1 = arith.constant 0 : i32
    return %c0_i32, %c0_i32_0 : i32, i32
  }
  func.func @transform_12(%arg0: i32) -> (i32, i32) {
    %c0_i32 = arith.constant 0 : i32
    %c0_i32_0 = arith.constant 0 : i32
    %c0_i32_1 = arith.constant 0 : i32
    return %c0_i32, %c0_i32_0 : i32, i32
  }
  func.func @transform_13(%arg0: i32) -> (i32, i32) {
    %c0_i32 = arith.constant 0 : i32
    %c0_i32_0 = arith.constant 0 : i32
    %c0_i32_1 = arith.constant 0 : i32
    return %c0_i32, %c0_i32_0 : i32, i32
  }
  func.func @transform_14(%arg0: i32) -> (i32, i32) {
    %c0_i32 = arith.constant 0 : i32
    %c0_i32_0 = arith.constant 0 : i32
    %c0_i32_1 = arith.constant 0 : i32
    return %c0_i32, %c0_i32_0 : i32, i32
  }
  func.func @transform_15(%arg0: i32) -> (i32, i32) {
    %c0_i32 = arith.constant 0 : i32
    %c0_i32_0 = arith.constant 0 : i32
    %c0_i32_1 = arith.constant 0 : i32
    return %c0_i32, %c0_i32_0 : i32, i32
  }
  func.func @transform_16(%arg0: i32) -> (i32, i32) {
    %c0_i32 = arith.constant 0 : i32
    %c0_i32_0 = arith.constant 0 : i32
    %c0_i32_1 = arith.constant 0 : i32
    return %c0_i32, %c0_i32_0 : i32, i32
  }
  func.func @transform_17(%arg0: i32) -> (i32, i32) {
    %c0_i32 = arith.constant 0 : i32
    %c0_i32_0 = arith.constant 0 : i32
    return %arg0, %c0_i32 : i32, i32
  }
}

</mosaic_0001>

<llo_original>
// kernel: tpu_custom_call.1
$region0: #{tpu_custom_call.1}
  #allocation0 [shape = 'u32[]', space=smem, size = 0x4, offset = 0x4, fixed_abs, tag = 'smem constant byte address 0x4 - core index']
  #allocation1 [shape = 'u32[144,128]{1,0:T(1,128)}', space=vmem, size = 0x12000, scoped, tag = 'internal scratch']
  #allocation2 [shape = 'f32[1,1]{1,0:T(1,128)S(1)}', space=vmem, size = 0x200, scoped, tag = 'scoped memory for tpu_custom_call.1']
  #allocation3 [shape = 'f32[1,1]{1,0:T(1,128)S(1)}', space=vmem, size = 0x200, scoped, tag = 'scoped memory for tpu_custom_call.1']
  %s0 = inlined_call_operand.vmem [shape: bf16[8,128], index: 0, kind: input, shape index: {}]
  %s1 = inlined_call_operand.vmem [shape: bf16[8,128,64], index: 1, kind: input, shape index: {}]
  %s2 = inlined_call_operand.vmem [shape: bf16[128,256], index: 2, kind: input, shape index: {}]
  %s3 = inlined_call_operand.vmem [shape: f32[1,256], index: 3, kind: input, shape index: {}]
  %s4 = inlined_call_operand.vmem [shape: bf16[1,1,64], index: 4, kind: input, shape index: {}]
  %s5 = inlined_call_operand.<no memory space> [shape: f32[1,1], index: 5, kind: input, shape index: {}]
  %s6 = inlined_call_operand.vmem [shape: bf16[128,1024], index: 6, kind: input, shape index: {}]
  %s7 = inlined_call_operand.vmem [shape: f32[1,1024], index: 7, kind: input, shape index: {}]
  %s8 = inlined_call_operand.hbm [shape: bf16[1024,256], index: 8, kind: input, shape index: {}]
  %s9 = inlined_call_operand.vmem [shape: f32[1,256], index: 9, kind: input, shape index: {}]
  %s10 = inlined_call_operand.hbm [shape: bf16[256,512], index: 10, kind: input, shape index: {}]
  %s11 = inlined_call_operand.hbm [shape: bf16[256,512], index: 11, kind: input, shape index: {}]
  %s12 = inlined_call_operand.vmem [shape: f32[1,512], index: 12, kind: input, shape index: {}]
  %s13 = inlined_call_operand.hbm [shape: bf16[512,512], index: 13, kind: input, shape index: {}]
  %s14 = inlined_call_operand.vmem [shape: f32[1,512], index: 14, kind: input, shape index: {}]
  %s15 = inlined_call_operand.vmem [shape: f32[1,512], index: 15, kind: input, shape index: {}]
  %s16 = inlined_call_operand.<no memory space> [shape: f32[1,1], index: 16, kind: input, shape index: {}]
  %s17 = inlined_call_operand.hbm [shape: f32[8,128], index: 17, kind: output, shape index: {}]
  %s18 = sld [smem:[#allocation0]]
  $region94: #{tpu_custom_call.1} parent=0
    _
  %s20 = ssub.s32 1, %s18
  %s21 = scalar_select 0, %s20, %s18
  %v22 = vstv %s5
  %23 = vst [vmem:[#allocation2] sm:$0x1] %v22
  %v24 = vstv %s16
  %25 = vst [vmem:[#allocation3] sm:$0x1] %v24
  $region1: #{tpu_custom_call.1} parent=0
    #allocation4 [shape = 'u8[524288]{0}', space=vmem, size = 0x80000, scoped, tag = 'input window, operand 8, single buffered']
    #allocation5 [shape = 's32[1]{0}', space=sflag, size = 0x4, scoped, tag = 'scoped memory for tpu_custom_call.1']
    #allocation6 [shape = 's32[1]{0}', space=sflag, size = 0x4, scoped, tag = 'scoped memory for tpu_custom_call.1']
    #allocation7 [shape = 'u8[262144]{0}', space=vmem, size = 0x40000, scoped, tag = 'input window, operand 10, single buffered']
    #allocation8 [shape = 's32[1]{0}', space=sflag, size = 0x4, scoped, tag = 'scoped memory for tpu_custom_call.1']
    #allocation9 [shape = 'u8[262144]{0}', space=vmem, size = 0x40000, scoped, tag = 'input window, operand 11, single buffered']
    #allocation10 [shape = 'u8[524288]{0}', space=vmem, size = 0x80000, scoped, tag = 'input window, operand 13, single buffered']
    #allocation11 [shape = 's32[1]{0}', space=sflag, size = 0x4, scoped, tag = 'scoped memory for tpu_custom_call.1']
    #allocation12 [shape = 'u8[4096]{0}', space=vmem, size = 0x1000, scoped, tag = 'output window, operand 0, single buffered']
    %26 = vsyncpa [#allocation5], 0
    %27 = vsyncpa [#allocation8], 0
    %28 = vsyncpa [#allocation11], 0
    %29 = vsyncpa [#allocation6], 0
    // Predicated region
    $region2: #{tpu_custom_call.1} parent=1 // pred_check
      _
    $region3: #{tpu_custom_call.1} parent=1 // pred_check_branch
      %31 = sbr.rel (0) target = $region5
    $region4: #{tpu_custom_call.1} parent=1 // pred_region
      _
    $region5: #{tpu_custom_call.1} parent=1 // pred_fallthru
      _
    // Predicated region
    $region6: #{tpu_custom_call.1} parent=1 // pred_check
      _
    $region7: #{tpu_custom_call.1} parent=1 // pred_check_branch
      %33 = sbr.rel (0) target = $region9
    $region8: #{tpu_custom_call.1} parent=1 // pred_region
      _
    $region9: #{tpu_custom_call.1} parent=1 // pred_fallthru
      _
    // Predicated region
    $region10: #{tpu_custom_call.1} parent=1 // pred_check
      _
    $region11: #{tpu_custom_call.1} parent=1 // pred_check_branch
      %35 = sbr.rel (0) target = $region13
    $region12: #{tpu_custom_call.1} parent=1 // pred_region
      _
    $region13: #{tpu_custom_call.1} parent=1 // pred_fallthru
      _
    // Predicated region
    $region14: #{tpu_custom_call.1} parent=1 // pred_check
      _
    $region15: #{tpu_custom_call.1} parent=1 // pred_check_branch
      %37 = sbr.rel (0) target = $region17
    $region16: #{tpu_custom_call.1} parent=1 // pred_region
      _
    $region17: #{tpu_custom_call.1} parent=1 // pred_fallthru
      _
    // Predicated region
    $region18: #{tpu_custom_call.1} parent=1 // pred_check
      _
    $region19: #{tpu_custom_call.1} parent=1 // pred_check_branch
      %39 = sbr.rel (0) target = $region21
    $region20: #{tpu_custom_call.1} parent=1 // pred_region
      _
    $region21: #{tpu_custom_call.1} parent=1 // pred_fallthru
      _
    // Predicated region
    $region22: #{tpu_custom_call.1} parent=1 // pred_check
      _
    $region23: #{tpu_custom_call.1} parent=1 // pred_check_branch
      %41 = sbr.rel (0) target = $region25
    $region24: #{tpu_custom_call.1} parent=1 // pred_region
      _
    $region25: #{tpu_custom_call.1} parent=1 // pred_fallthru
      _
    // Predicated region
    $region26: #{tpu_custom_call.1} parent=1 // pred_check
      _
    $region27: #{tpu_custom_call.1} parent=1 // pred_check_branch
      %43 = sbr.rel (0) target = $region29
    $region28: #{tpu_custom_call.1} parent=1 // pred_region
      _
    $region29: #{tpu_custom_call.1} parent=1 // pred_fallthru
      _
    // Predicated region
    $region30: #{tpu_custom_call.1} parent=1 // pred_check
      _
    $region31: #{tpu_custom_call.1} parent=1 // pred_check_branch
      %45 = sbr.rel (0) target = $region33
    $region32: #{tpu_custom_call.1} parent=1 // pred_region
      _
    $region33: #{tpu_custom_call.1} parent=1 // pred_fallthru
      _
    // Predicated region
    $region34: #{tpu_custom_call.1} parent=1 // pred_check
      _
    $region35: #{tpu_custom_call.1} parent=1 // pred_check_branch
      %47 = sbr.rel (0) target = $region37
    $region36: #{tpu_custom_call.1} parent=1 // pred_region
      %s49 = ssub.s32 16384, 16384
      %50 = vsyncadd [#allocation5], %s49
      %s51 = sshll.u32 [#allocation4], 4
      %s52 = int_to_ptr.vmem [resolvable:$true] %s51
      %57 = dma.hbm_to_vmem [thread:$0]  %s8, 16384, %s52, [#allocation5], 128, 128, 8
    $region37: #{tpu_custom_call.1} parent=1 // pred_fallthru
      _
    // Predicated region
    $region38: #{tpu_custom_call.1} parent=1 // pred_check
      _
    $region39: #{tpu_custom_call.1} parent=1 // pred_check_branch
      %59 = sbr.rel (0) target = $region41
    $region40: #{tpu_custom_call.1} parent=1 // pred_region
      _
    $region41: #{tpu_custom_call.1} parent=1 // pred_fallthru
      _
    // Predicated region
    $region42: #{tpu_custom_call.1} parent=1 // pred_check
      _
    $region43: #{tpu_custom_call.1} parent=1 // pred_check_branch
      %61 = sbr.rel (0) target = $region45
    $region44: #{tpu_custom_call.1} parent=1 // pred_region
      %s63 = ssub.s32 8192, 8192
      %64 = vsyncadd [#allocation8], %s63
      %s65 = sshll.u32 [#allocation7], 4
      %s66 = int_to_ptr.vmem [resolvable:$true] %s65
      %71 = dma.hbm_to_vmem [thread:$0]  %s10, 8192, %s66, [#allocation8], 256, 256, 16
    $region45: #{tpu_custom_call.1} parent=1 // pred_fallthru
      _
    // Predicated region
    $region46: #{tpu_custom_call.1} parent=1 // pred_check
      _
    $region47: #{tpu_custom_call.1} parent=1 // pred_check_branch
      %73 = sbr.rel (0) target = $region49
    $region48: #{tpu_custom_call.1} parent=1 // pred_region
      %s75 = ssub.s32 8192, 8192
      %76 = vsyncadd [#allocation8], %s75
      %s77 = sshll.u32 [#allocation9], 4
      %s78 = int_to_ptr.vmem [resolvable:$true] %s77
      %83 = dma.hbm_to_vmem [thread:$0]  %s11, 8192, %s78, [#allocation8], 256, 256, 16
    $region49: #{tpu_custom_call.1} parent=1 // pred_fallthru
      _
    // Predicated region
    $region50: #{tpu_custom_call.1} parent=1 // pred_check
      _
    $region51: #{tpu_custom_call.1} parent=1 // pred_check_branch
      %85 = sbr.rel (0) target = $region53
    $region52: #{tpu_custom_call.1} parent=1 // pred_region
      _
    $region53: #{tpu_custom_call.1} parent=1 // pred_fallthru
      _
    // Predicated region
    $region54: #{tpu_custom_call.1} parent=1 // pred_check
      _
    $region55: #{tpu_custom_call.1} parent=1 // pred_check_branch
      %87 = sbr.rel (0) target = $region57
    $region56: #{tpu_custom_call.1} parent=1 // pred_region
      %s89 = ssub.s32 16384, 16384
      %90 = vsyncadd [#allocation11], %s89
      %s91 = sshll.u32 [#allocation10], 4
      %s92 = int_to_ptr.vmem [resolvable:$true] %s91
      %97 = dma.hbm_to_vmem [thread:$0]  %s13, 16384, %s92, [#allocation11], 256, 256, 16
    $region57: #{tpu_custom_call.1} parent=1 // pred_fallthru
      _
    // Predicated region
    $region58: #{tpu_custom_call.1} parent=1 // pred_check
      _
    $region59: #{tpu_custom_call.1} parent=1 // pred_check_branch
      %99 = sbr.rel (0) target = $region61
    $region60: #{tpu_custom_call.1} parent=1 // pred_region
      _
    $region61: #{tpu_custom_call.1} parent=1 // pred_fallthru
      _
    // Predicated region
    $region62: #{tpu_custom_call.1} parent=1 // pred_check
      _
    $region63: #{tpu_custom_call.1} parent=1 // pred_check_branch
      %101 = sbr.rel (0) target = $region65
    $region64: #{tpu_custom_call.1} parent=1 // pred_region
      _
    $region65: #{tpu_custom_call.1} parent=1 // pred_fallthru
      _
    // Predicated region
    $region66: #{tpu_custom_call.1} parent=1 // pred_check
      _
    $region67: #{tpu_custom_call.1} parent=1 // pred_check_branch
      %103 = sbr.rel (0) target = $region69
    $region68: #{tpu_custom_call.1} parent=1 // pred_region
      _
    $region69: #{tpu_custom_call.1} parent=1 // pred_fallthru
      _
    // Predicated region
    $region70: #{tpu_custom_call.1} parent=1 // pred_check
      _
    $region71: #{tpu_custom_call.1} parent=1 // pred_check_branch
      %105 = sbr.rel (0) target = $region73
    $region72: #{tpu_custom_call.1} parent=1 // pred_region
      %106 = dma.done [#allocation5], 16384
    $region73: #{tpu_custom_call.1} parent=1 // pred_fallthru
      _
    // Predicated region
    $region74: #{tpu_custom_call.1} parent=1 // pred_check
      _
    $region75: #{tpu_custom_call.1} parent=1 // pred_check_branch
      %108 = sbr.rel (0) target = $region77
    $region76: #{tpu_custom_call.1} parent=1 // pred_region
      %109 = dma.done [#allocation8], 8192
    $region77: #{tpu_custom_call.1} parent=1 // pred_fallthru
      _
    // Predicated region
    $region78: #{tpu_custom_call.1} parent=1 // pred_check
      _
    $region79: #{tpu_custom_call.1} parent=1 // pred_check_branch
      %111 = sbr.rel (0) target = $region81
    $region80: #{tpu_custom_call.1} parent=1 // pred_region
      %112 = dma.done [#allocation8], 8192
    $region81: #{tpu_custom_call.1} parent=1 // pred_fallthru
      _
    // Predicated region
    $region82: #{tpu_custom_call.1} parent=1 // pred_check
      _
    $region83: #{tpu_custom_call.1} parent=1 // pred_check_branch
      %114 = sbr.rel (0) target = $region85
    $region84: #{tpu_custom_call.1} parent=1 // pred_region
      %115 = dma.done [#allocation11], 16384
    $region85: #{tpu_custom_call.1} parent=1 // pred_fallthru
      _
    %v117 = vld [vmem:[%s0] sm:$0xf]
    %v118 = vld [vmem:[%s2] sm:$0xff]
    %v119 = vld [vmem:[%s2 + $0x8] sm:$0xff]
    %v120 = vld [vmem:[%s2 + $0x10] sm:$0xff]
    %v121 = vld [vmem:[%s2 + $0x18] sm:$0xff]
    %v122 = vld [vmem:[%s2 + $0x20] sm:$0xff]
    %v123 = vld [vmem:[%s2 + $0x28] sm:$0xff]
    %v124 = vld [vmem:[%s2 + $0x30] sm:$0xff]
    %v125 = vld [vmem:[%s2 + $0x38] sm:$0xff]
    %v126 = vld [vmem:[%s2 + $0x40] sm:$0xff]
    %v127 = vld [vmem:[%s2 + $0x48] sm:$0xff]
    %v128 = vld [vmem:[%s2 + $0x50] sm:$0xff]
    %v129 = vld [vmem:[%s2 + $0x58] sm:$0xff]
    %v130 = vld [vmem:[%s2 + $0x60] sm:$0xff]
    %v131 = vld [vmem:[%s2 + $0x68] sm:$0xff]
    %v132 = vld [vmem:[%s2 + $0x70] sm:$0xff]
    %v133 = vld [vmem:[%s2 + $0x78] sm:$0xff]
    %v134 = vld [vmem:[%s3] sm:$0x3]
    %v136 = vlaneseq
    %v137 = vshrl.u32 %v136, 7
    %v138 = vsub.s32 0, %v137
    %v139 = vrot.slane %v134, %v138
    %v140 = vlaneseq
    %v141 = vshrl.u32 %v140, 7
    %v142 = vsub.s32 1, %v141
    %v143 = vrot.slane %v134, %v142
    %v162 = vunpack.c.l.b16 %v118
    %v163 = vunpack.c.h.b16 %v118
    %v164 = vunpack.c.l.b16 %v119
    %v165 = vunpack.c.h.b16 %v119
    %v166 = vunpack.c.l.b16 %v120
    %v167 = vunpack.c.h.b16 %v120
    %v168 = vunpack.c.l.b16 %v121
    %v169 = vunpack.c.h.b16 %v121
    %v170 = vunpack.c.l.b16 %v122
    %v171 = vunpack.c.h.b16 %v122
    %v172 = vunpack.c.l.b16 %v123
    %v173 = vunpack.c.h.b16 %v123
    %v174 = vunpack.c.l.b16 %v124
    %v175 = vunpack.c.h.b16 %v124
    %v176 = vunpack.c.l.b16 %v125
    %v177 = vunpack.c.h.b16 %v125
    %v178 = vunpack.c.l.b16 %v126
    %v179 = vunpack.c.h.b16 %v126
    %v180 = vunpack.c.l.b16 %v127
    %v181 = vunpack.c.h.b16 %v127
    %v182 = vunpack.c.l.b16 %v128
    %v183 = vunpack.c.h.b16 %v128
    %v184 = vunpack.c.l.b16 %v129
    %v185 = vunpack.c.h.b16 %v129
    %v186 = vunpack.c.l.b16 %v130
    %v187 = vunpack.c.h.b16 %v130
    %v188 = vunpack.c.l.b16 %v131
    %v189 = vunpack.c.h.b16 %v131
    %v190 = vunpack.c.l.b16 %v132
    %v191 = vunpack.c.h.b16 %v132
    %v192 = vunpack.c.l.b16 %v133
    %v193 = vunpack.c.h.b16 %v133
    %v194 = vpack.c.b16 %v164, %v162
    %v195 = vpack.c.b16 %v165, %v163
    %v196 = vpack.c.b16 %v168, %v166
    %v197 = vpack.c.b16 %v169, %v167
    %v198 = vpack.c.b16 %v172, %v170
    %v199 = vpack.c.b16 %v173, %v171
    %v200 = vpack.c.b16 %v176, %v174
    %v201 = vpack.c.b16 %v177, %v175
    %v202 = vpack.c.b16 %v180, %v178
    %v203 = vpack.c.b16 %v181, %v179
    %v204 = vpack.c.b16 %v184, %v182
    %v205 = vpack.c.b16 %v185, %v183
    %v206 = vpack.c.b16 %v188, %v186
    %v207 = vpack.c.b16 %v189, %v187
    %v208 = vpack.c.b16 %v192, %v190
    %v209 = vpack.c.b16 %v193, %v191
    %226 = vmatprep.subr.bf16.mxu0 %v209
    %227 = vmatpush1.bf16.msra.mxu0 %v208
    %228 = vmatprep.subr.bf16.mxu0 %v207
    %229 = vmatpush1.bf16.msra.mxu0 %v206
    %230 = vmatprep.subr.bf16.mxu0 %v205
    %231 = vmatpush1.bf16.msra.mxu0 %v204
    %232 = vmatprep.subr.bf16.mxu0 %v203
    %233 = vmatpush1.bf16.msra.mxu0 %v202
    %234 = vmatprep.subr.bf16.mxu0 %v201
    %235 = vmatpush1.bf16.msra.mxu0 %v200
    %236 = vmatprep.subr.bf16.mxu0 %v199
    %237 = vmatpush1.bf16.msra.mxu0 %v198
    %238 = vmatprep.subr.bf16.mxu0 %v197
    %239 = vmatpush1.bf16.msra.mxu0 %v196
    %240 = vmatprep.subr.bf16.mxu0 %v195
    %241 = vmatpush1.bf16.msra.mxu0 %v194
    %242 = vmatprep.subr.bf16.mxu0 0
    %243 = vmatpush2.bf16.msra.mxu0 0
    %244 = vmatprep.subr.bf16.mxu0 0
    %245 = vmatpush2.bf16.msra.mxu0 0
    %246 = vmatprep.subr.bf16.mxu0 0
    %247 = vmatpush2.bf16.msra.mxu0 0
    %248 = vmatprep.subr.bf16.mxu0 0
    %249 = vmatpush2.bf16.msra.mxu0 0
    %250 = vmatprep.subr.bf16.mxu0 0
    %251 = vmatpush2.bf16.msra.mxu0 0
    %252 = vmatprep.subr.bf16.mxu0 0
    %253 = vmatpush2.bf16.msra.mxu0 0
    %254 = vmatprep.subr.bf16.mxu0 0
    %255 = vmatpush2.bf16.msra.mxu0 0
    %256 = vmatprep.subr.bf16.mxu0 0
    %257 = vmatpush2.bf16.msra.mxu0 0
    %258 = vmatprep.mubr.bf16.mxu0 0
    %259 = vmatmul.mubr.bf16.gmra.mxu0 %v117
    %v260 = vpop.f32.mrf.mxu0
    %v261 = vadd.f32 %v139, %v260
    %v262 = vpop.f32.mrf.mxu0
    %v263 = vadd.f32 %v143, %v262
    %v264 = vpop.f32.mrf.mxu0
    %v265 = vpop.f32.mrf.mxu0
    %266 = vdwg.mxu0
    %v267 = vmax.f32 %v261, 0.0
    %v268 = vmax.f32 %v263, 0.0
    %v269 = vld [vmem:[%s1] sm:$0xf]
    %v270 = vld [vmem:[%s1 + $0x4] sm:$0xf]
    %v271 = vld [vmem:[%s1 + $0x8] sm:$0xf]
    %v272 = vld [vmem:[%s1 + $0xc] sm:$0xf]
    %v273 = vld [vmem:[%s1 + $0x10] sm:$0xf]
    %v274 = vld [vmem:[%s1 + $0x14] sm:$0xf]
    %v275 = vld [vmem:[%s1 + $0x18] sm:$0xf]
    %v276 = vld [vmem:[%s1 + $0x1c] sm:$0xf]
    %v277 = vld [vmem:[%s1 + $0x20] sm:$0xf]
    %v278 = vld [vmem:[%s1 + $0x24] sm:$0xf]
    %v279 = vld [vmem:[%s1 + $0x28] sm:$0xf]
    %v280 = vld [vmem:[%s1 + $0x2c] sm:$0xf]
    %v281 = vld [vmem:[%s1 + $0x30] sm:$0xf]
    %v282 = vld [vmem:[%s1 + $0x34] sm:$0xf]
    %v283 = vld [vmem:[%s1 + $0x38] sm:$0xf]
    %v284 = vld [vmem:[%s1 + $0x3c] sm:$0xf]
    %v285 = vld [vmem:[%s1 + $0x40] sm:$0xf]
    %v286 = vld [vmem:[%s1 + $0x44] sm:$0xf]
    %v287 = vld [vmem:[%s1 + $0x48] sm:$0xf]
    %v288 = vld [vmem:[%s1 + $0x4c] sm:$0xf]
    %v289 = vld [vmem:[%s1 + $0x50] sm:$0xf]
    %v290 = vld [vmem:[%s1 + $0x54] sm:$0xf]
    %v291 = vld [vmem:[%s1 + $0x58] sm:$0xf]
    %v292 = vld [vmem:[%s1 + $0x5c] sm:$0xf]
    %v293 = vld [vmem:[%s1 + $0x60] sm:$0xf]
    %v294 = vld [vmem:[%s1 + $0x64] sm:$0xf]
    %v295 = vld [vmem:[%s1 + $0x68] sm:$0xf]
    %v296 = vld [vmem:[%s1 + $0x6c] sm:$0xf]
    %v297 = vld [vmem:[%s1 + $0x70] sm:$0xf]
    %v298 = vld [vmem:[%s1 + $0x74] sm:$0xf]
    %v299 = vld [vmem:[%s1 + $0x78] sm:$0xf]
    %v300 = vld [vmem:[%s1 + $0x7c] sm:$0xf]
    %v301 = vld [vmem:[%s1 + $0x80] sm:$0xf]
    %v302 = vld [vmem:[%s1 + $0x84] sm:$0xf]
    %v303 = vld [vmem:[%s1 + $0x88] sm:$0xf]
    %v304 = vld [vmem:[%s1 + $0x8c] sm:$0xf]
    %v305 = vld [vmem:[%s1 + $0x90] sm:$0xf]
    %v306 = vld [vmem:[%s1 + $0x94] sm:$0xf]
    %v307 = vld [vmem:[%s1 + $0x98] sm:$0xf]
    %v308 = vld [vmem:[%s1 + $0x9c] sm:$0xf]
    %v309 = vld [vmem:[%s1 + $0xa0] sm:$0xf]
    %v310 = vld [vmem:[%s1 + $0xa4] sm:$0xf]
    %v311 = vld [vmem:[%s1 + $0xa8] sm:$0xf]
    %v312 = vld [vmem:[%s1 + $0xac] sm:$0xf]
    %v313 = vld [vmem:[%s1 + $0xb0] sm:$0xf]
    %v314 = vld [vmem:[%s1 + $0xb4] sm:$0xf]
    %v315 = vld [vmem:[%s1 + $0xb8] sm:$0xf]
    %v316 = vld [vmem:[%s1 + $0xbc] sm:$0xf]
    %v317 = vld [vmem:[%s1 + $0xc0] sm:$0xf]
    %v318 = vld [vmem:[%s1 + $0xc4] sm:$0xf]
    %v319 = vld [vmem:[%s1 + $0xc8] sm:$0xf]
    %v320 = vld [vmem:[%s1 + $0xcc] sm:$0xf]
    %v321 = vld [vmem:[%s1 + $0xd0] sm:$0xf]
    %v322 = vld [vmem:[%s1 + $0xd4] sm:$0xf]
    %v323 = vld [vmem:[%s1 + $0xd8] sm:$0xf]
    %v324 = vld [vmem:[%s1 + $0xdc] sm:$0xf]
    %v325 = vld [vmem:[%s1 + $0xe0] sm:$0xf]
    %v326 = vld [vmem:[%s1 + $0xe4] sm:$0xf]
    %v327 = vld [vmem:[%s1 + $0xe8] sm:$0xf]
    %v328 = vld [vmem:[%s1 + $0xec] sm:$0xf]
    %v329 = vld [vmem:[%s1 + $0xf0] sm:$0xf]
    %v330 = vld [vmem:[%s1 + $0xf4] sm:$0xf]
    %v331 = vld [vmem:[%s1 + $0xf8] sm:$0xf]
    %v332 = vld [vmem:[%s1 + $0xfc] sm:$0xf]
    %v333 = vld [vmem:[%s1 + $0x100] sm:$0xf]
    %v334 = vld [vmem:[%s1 + $0x104] sm:$0xf]
    %v335 = vld [vmem:[%s1 + $0x108] sm:$0xf]
    %v336 = vld [vmem:[%s1 + $0x10c] sm:$0xf]
    %v337 = vld [vmem:[%s1 + $0x110] sm:$0xf]
    %v338 = vld [vmem:[%s1 + $0x114] sm:$0xf]
    %v339 = vld [vmem:[%s1 + $0x118] sm:$0xf]
    %v340 = vld [vmem:[%s1 + $0x11c] sm:$0xf]
    %v341 = vld [vmem:[%s1 + $0x120] sm:$0xf]
    %v342 = vld [vmem:[%s1 + $0x124] sm:$0xf]
    %v343 = vld [vmem:[%s1 + $0x128] sm:$0xf]
    %v344 = vld [vmem:[%s1 + $0x12c] sm:$0xf]
    %v345 = vld [vmem:[%s1 + $0x130] sm:$0xf]
    %v346 = vld [vmem:[%s1 + $0x134] sm:$0xf]
    %v347 = vld [vmem:[%s1 + $0x138] sm:$0xf]
    %v348 = vld [vmem:[%s1 + $0x13c] sm:$0xf]
    %v349 = vld [vmem:[%s1 + $0x140] sm:$0xf]
    %v350 = vld [vmem:[%s1 + $0x144] sm:$0xf]
    %v351 = vld [vmem:[%s1 + $0x148] sm:$0xf]
    %v352 = vld [vmem:[%s1 + $0x14c] sm:$0xf]
    %v353 = vld [vmem:[%s1 + $0x150] sm:$0xf]
    %v354 = vld [vmem:[%s1 + $0x154] sm:$0xf]
    %v355 = vld [vmem:[%s1 + $0x158] sm:$0xf]
    %v356 = vld [vmem:[%s1 + $0x15c] sm:$0xf]
    %v357 = vld [vmem:[%s1 + $0x160] sm:$0xf]
    %v358 = vld [vmem:[%s1 + $0x164] sm:$0xf]
    %v359 = vld [vmem:[%s1 + $0x168] sm:$0xf]
    %v360 = vld [vmem:[%s1 + $0x16c] sm:$0xf]
    %v361 = vld [vmem:[%s1 + $0x170] sm:$0xf]
    %v362 = vld [vmem:[%s1 + $0x174] sm:$0xf]
    %v363 = vld [vmem:[%s1 + $0x178] sm:$0xf]
    %v364 = vld [vmem:[%s1 + $0x17c] sm:$0xf]
    %v365 = vld [vmem:[%s1 + $0x180] sm:$0xf]
    %v366 = vld [vmem:[%s1 + $0x184] sm:$0xf]
    %v367 = vld [vmem:[%s1 + $0x188] sm:$0xf]
    %v368 = vld [vmem:[%s1 + $0x18c] sm:$0xf]
    %v369 = vld [vmem:[%s1 + $0x190] sm:$0xf]
    %v370 = vld [vmem:[%s1 + $0x194] sm:$0xf]
    %v371 = vld [vmem:[%s1 + $0x198] sm:$0xf]
    %v372 = vld [vmem:[%s1 + $0x19c] sm:$0xf]
    %v373 = vld [vmem:[%s1 + $0x1a0] sm:$0xf]
    %v374 = vld [vmem:[%s1 + $0x1a4] sm:$0xf]
    %v375 = vld [vmem:[%s1 + $0x1a8] sm:$0xf]
    %v376 = vld [vmem:[%s1 + $0x1ac] sm:$0xf]
    %v377 = vld [vmem:[%s1 + $0x1b0] sm:$0xf]
    %v378 = vld [vmem:[%s1 + $0x1b4] sm:$0xf]
    %v379 = vld [vmem:[%s1 + $0x1b8] sm:$0xf]
    %v380 = vld [vmem:[%s1 + $0x1bc] sm:$0xf]
    %v381 = vld [vmem:[%s1 + $0x1c0] sm:$0xf]
    %v382 = vld [vmem:[%s1 + $0x1c4] sm:$0xf]
    %v383 = vld [vmem:[%s1 + $0x1c8] sm:$0xf]
    %v384 = vld [vmem:[%s1 + $0x1cc] sm:$0xf]
    %v385 = vld [vmem:[%s1 + $0x1d0] sm:$0xf]
    %v386 = vld [vmem:[%s1 + $0x1d4] sm:$0xf]
    %v387 = vld [vmem:[%s1 + $0x1d8] sm:$0xf]
    %v388 = vld [vmem:[%s1 + $0x1dc] sm:$0xf]
    %v389 = vld [vmem:[%s1 + $0x1e0] sm:$0xf]
    %v390 = vld [vmem:[%s1 + $0x1e4] sm:$0xf]
    %v391 = vld [vmem:[%s1 + $0x1e8] sm:$0xf]
    %v392 = vld [vmem:[%s1 + $0x1ec] sm:$0xf]
    %v393 = vld [vmem:[%s1 + $0x1f0] sm:$0xf]
    %v394 = vld [vmem:[%s1 + $0x1f4] sm:$0xf]
    %v395 = vld [vmem:[%s1 + $0x1f8] sm:$0xf]
    %v396 = vld [vmem:[%s1 + $0x1fc] sm:$0xf]
    %v397 = vld [vmem:[%s4] sm:$0x1]
    %v399 = vpack.i.b16 %v397, %v397
    %v401 = vlaneseq
    %v402 = vshrl.u32 %v401, 7
    %v403 = vsub.s32 0, %v402
    %v404 = vrot.slane %v399, %v403
    %v406 = vunpack.c.l.b16 %v404
    %v407 = vpack.c.b16 %v406, %v406
    %v409 = vmul.bf16 %v269, %v407
    %v410 = vmul.bf16 %v270, %v407
    %v411 = vmul.bf16 %v271, %v407
    %v412 = vmul.bf16 %v272, %v407
    %v413 = vmul.bf16 %v273, %v407
    %v414 = vmul.bf16 %v274, %v407
    %v415 = vmul.bf16 %v275, %v407
    %v416 = vmul.bf16 %v276, %v407
    %v417 = vmul.bf16 %v277, %v407
    %v418 = vmul.bf16 %v278, %v407
    %v419 = vmul.bf16 %v279, %v407
    %v420 = vmul.bf16 %v280, %v407
    %v421 = vmul.bf16 %v281, %v407
    %v422 = vmul.bf16 %v282, %v407
    %v423 = vmul.bf16 %v283, %v407
    %v424 = vmul.bf16 %v284, %v407
    %v425 = vmul.bf16 %v285, %v407
    %v426 = vmul.bf16 %v286, %v407
    %v427 = vmul.bf16 %v287, %v407
    %v428 = vmul.bf16 %v288, %v407
    %v429 = vmul.bf16 %v289, %v407
    %v430 = vmul.bf16 %v290, %v407
    %v431 = vmul.bf16 %v291, %v407
    %v432 = vmul.bf16 %v292, %v407
    %v433 = vmul.bf16 %v293, %v407
    %v434 = vmul.bf16 %v294, %v407
    %v435 = vmul.bf16 %v295, %v407
    %v436 = vmul.bf16 %v296, %v407
    %v437 = vmul.bf16 %v297, %v407
    %v438 = vmul.bf16 %v298, %v407
    %v439 = vmul.bf16 %v299, %v407
    %v440 = vmul.bf16 %v300, %v407
    %v441 = vmul.bf16 %v301, %v407
    %v442 = vmul.bf16 %v302, %v407
    %v443 = vmul.bf16 %v303, %v407
    %v444 = vmul.bf16 %v304, %v407
    %v445 = vmul.bf16 %v305, %v407
    %v446 = vmul.bf16 %v306, %v407
    %v447 = vmul.bf16 %v307, %v407
    %v448 = vmul.bf16 %v308, %v407
    %v449 = vmul.bf16 %v309, %v407
    %v450 = vmul.bf16 %v310, %v407
    %v451 = vmul.bf16 %v311, %v407
    %v452 = vmul.bf16 %v312, %v407
    %v453 = vmul.bf16 %v313, %v407
    %v454 = vmul.bf16 %v314, %v407
    %v455 = vmul.bf16 %v315, %v407
    %v456 = vmul.bf16 %v316, %v407
    %v457 = vmul.bf16 %v317, %v407
    %v458 = vmul.bf16 %v318, %v407
    %v459 = vmul.bf16 %v319, %v407
    %v460 = vmul.bf16 %v320, %v407
    %v461 = vmul.bf16 %v321, %v407
    %v462 = vmul.bf16 %v322, %v407
    %v463 = vmul.bf16 %v323, %v407
    %v464 = vmul.bf16 %v324, %v407
    %v465 = vmul.bf16 %v325, %v407
    %v466 = vmul.bf16 %v326, %v407
    %v467 = vmul.bf16 %v327, %v407
    %v468 = vmul.bf16 %v328, %v407
    %v469 = vmul.bf16 %v329, %v407
    %v470 = vmul.bf16 %v330, %v407
    %v471 = vmul.bf16 %v331, %v407
    %v472 = vmul.bf16 %v332, %v407
    %v473 = vmul.bf16 %v333, %v407
    %v474 = vmul.bf16 %v334, %v407
    %v475 = vmul.bf16 %v335, %v407
    %v476 = vmul.bf16 %v336, %v407
    %v477 = vmul.bf16 %v337, %v407
    %v478 = vmul.bf16 %v338, %v407
    %v479 = vmul.bf16 %v339, %v407
    %v480 = vmul.bf16 %v340, %v407
    %v481 = vmul.bf16 %v341, %v407
    %v482 = vmul.bf16 %v342, %v407
    %v483 = vmul.bf16 %v343, %v407
    %v484 = vmul.bf16 %v344, %v407
    %v485 = vmul.bf16 %v345, %v407
    %v486 = vmul.bf16 %v346, %v407
    %v487 = vmul.bf16 %v347, %v407
    %v488 = vmul.bf16 %v348, %v407
    %v489 = vmul.bf16 %v349, %v407
    %v490 = vmul.bf16 %v350, %v407
    %v491 = vmul.bf16 %v351, %v407
    %v492 = vmul.bf16 %v352, %v407
    %v493 = vmul.bf16 %v353, %v407
    %v494 = vmul.bf16 %v354, %v407
    %v495 = vmul.bf16 %v355, %v407
    %v496 = vmul.bf16 %v356, %v407
    %v497 = vmul.bf16 %v357, %v407
    %v498 = vmul.bf16 %v358, %v407
    %v499 = vmul.bf16 %v359, %v407
    %v500 = vmul.bf16 %v360, %v407
    %v501 = vmul.bf16 %v361, %v407
    %v502 = vmul.bf16 %v362, %v407
    %v503 = vmul.bf16 %v363, %v407
    %v504 = vmul.bf16 %v364, %v407
    %v505 = vmul.bf16 %v365, %v407
    %v506 = vmul.bf16 %v366, %v407
    %v507 = vmul.bf16 %v367, %v407
    %v508 = vmul.bf16 %v368, %v407
    %v509 = vmul.bf16 %v369, %v407
    %v510 = vmul.bf16 %v370, %v407
    %v511 = vmul.bf16 %v371, %v407
    %v512 = vmul.bf16 %v372, %v407
    %v513 = vmul.bf16 %v373, %v407
    %v514 = vmul.bf16 %v374, %v407
    %v515 = vmul.bf16 %v375, %v407
    %v516 = vmul.bf16 %v376, %v407
    %v517 = vmul.bf16 %v377, %v407
    %v518 = vmul.bf16 %v378, %v407
    %v519 = vmul.bf16 %v379, %v407
    %v520 = vmul.bf16 %v380, %v407
    %v521 = vmul.bf16 %v381, %v407
    %v522 = vmul.bf16 %v382, %v407
    %v523 = vmul.bf16 %v383, %v407
    %v524 = vmul.bf16 %v384, %v407
    %v525 = vmul.bf16 %v385, %v407
    %v526 = vmul.bf16 %v386, %v407
    %v527 = vmul.bf16 %v387, %v407
    %v528 = vmul.bf16 %v388, %v407
    %v529 = vmul.bf16 %v389, %v407
    %v530 = vmul.bf16 %v390, %v407
    %v531 = vmul.bf16 %v391, %v407
    %v532 = vmul.bf16 %v392, %v407
    %v533 = vmul.bf16 %v393, %v407
    %v534 = vmul.bf16 %v394, %v407
    %v535 = vmul.bf16 %v395, %v407
    %v536 = vmul.bf16 %v396, %v407
    %v537 = vunpack.c.l.bf16 %v409
    %v538 = vunpack.c.l.bf16 %v410
    %v539 = vunpack.c.l.bf16 %v411
    %v540 = vunpack.c.l.bf16 %v412
    %v541 = vunpack.c.l.bf16 %v413
    %v542 = vunpack.c.l.bf16 %v414
    %v543 = vunpack.c.l.bf16 %v415
    %v544 = vunpack.c.l.bf16 %v416
    %v545 = vunpack.c.l.bf16 %v417
    %v546 = vunpack.c.l.bf16 %v418
    %v547 = vunpack.c.l.bf16 %v419
    %v548 = vunpack.c.l.bf16 %v420
    %v549 = vunpack.c.l.bf16 %v421
    %v550 = vunpack.c.l.bf16 %v422
    %v551 = vunpack.c.l.bf16 %v423
    %v552 = vunpack.c.l.bf16 %v424
    %v553 = vunpack.c.l.bf16 %v425
    %v554 = vunpack.c.l.bf16 %v426
    %v555 = vunpack.c.l.bf16 %v427
    %v556 = vunpack.c.l.bf16 %v428
    %v557 = vunpack.c.l.bf16 %v429
    %v558 = vunpack.c.l.bf16 %v430
    %v559 = vunpack.c.l.bf16 %v431
    %v560 = vunpack.c.l.bf16 %v432
    %v561 = vunpack.c.l.bf16 %v433
    %v562 = vunpack.c.l.bf16 %v434
    %v563 = vunpack.c.l.bf16 %v435
    %v564 = vunpack.c.l.bf16 %v436
    %v565 = vunpack.c.l.bf16 %v437
    %v566 = vunpack.c.l.bf16 %v438
    %v567 = vunpack.c.l.bf16 %v439
    %v568 = vunpack.c.l.bf16 %v440
    %v569 = vunpack.c.l.bf16 %v441
    %v570 = vunpack.c.l.bf16 %v442
    %v571 = vunpack.c.l.bf16 %v443
    %v572 = vunpack.c.l.bf16 %v444
    %v573 = vunpack.c.l.bf16 %v445
    %v574 = vunpack.c.l.bf16 %v446
    %v575 = vunpack.c.l.bf16 %v447
    %v576 = vunpack.c.l.bf16 %v448
    %v577 = vunpack.c.l.bf16 %v449
    %v578 = vunpack.c.l.bf16 %v450
    %v579 = vunpack.c.l.bf16 %v451
    %v580 = vunpack.c.l.bf16 %v452
    %v581 = vunpack.c.l.bf16 %v453
    %v582 = vunpack.c.l.bf16 %v454
    %v583 = vunpack.c.l.bf16 %v455
    %v584 = vunpack.c.l.bf16 %v456
    %v585 = vunpack.c.l.bf16 %v457
    %v586 = vunpack.c.l.bf16 %v458
    %v587 = vunpack.c.l.bf16 %v459
    %v588 = vunpack.c.l.bf16 %v460
    %v589 = vunpack.c.l.bf16 %v461
    %v590 = vunpack.c.l.bf16 %v462
    %v591 = vunpack.c.l.bf16 %v463
    %v592 = vunpack.c.l.bf16 %v464
    %v593 = vunpack.c.l.bf16 %v465
    %v594 = vunpack.c.l.bf16 %v466
    %v595 = vunpack.c.l.bf16 %v467
    %v596 = vunpack.c.l.bf16 %v468
    %v597 = vunpack.c.l.bf16 %v469
    %v598 = vunpack.c.l.bf16 %v470
    %v599 = vunpack.c.l.bf16 %v471
    %v600 = vunpack.c.l.bf16 %v472
    %v601 = vunpack.c.l.bf16 %v473
    %v602 = vunpack.c.l.bf16 %v474
    %v603 = vunpack.c.l.bf16 %v475
    %v604 = vunpack.c.l.bf16 %v476
    %v605 = vunpack.c.l.bf16 %v477
    %v606 = vunpack.c.l.bf16 %v478
    %v607 = vunpack.c.l.bf16 %v479
    %v608 = vunpack.c.l.bf16 %v480
    %v609 = vunpack.c.l.bf16 %v481
    %v610 = vunpack.c.l.bf16 %v482
    %v611 = vunpack.c.l.bf16 %v483
    %v612 = vunpack.c.l.bf16 %v484
    %v613 = vunpack.c.l.bf16 %v485
    %v614 = vunpack.c.l.bf16 %v486
    %v615 = vunpack.c.l.bf16 %v487
    %v616 = vunpack.c.l.bf16 %v488
    %v617 = vunpack.c.l.bf16 %v489
    %v618 = vunpack.c.l.bf16 %v490
    %v619 = vunpack.c.l.bf16 %v491
    %v620 = vunpack.c.l.bf16 %v492
    %v621 = vunpack.c.l.bf16 %v493
    %v622 = vunpack.c.l.bf16 %v494
    %v623 = vunpack.c.l.bf16 %v495
    %v624 = vunpack.c.l.bf16 %v496
    %v625 = vunpack.c.l.bf16 %v497
    %v626 = vunpack.c.l.bf16 %v498
    %v627 = vunpack.c.l.bf16 %v499
    %v628 = vunpack.c.l.bf16 %v500
    %v629 = vunpack.c.l.bf16 %v501
    %v630 = vunpack.c.l.bf16 %v502
    %v631 = vunpack.c.l.bf16 %v503
    %v632 = vunpack.c.l.bf16 %v504
    %v633 = vunpack.c.l.bf16 %v505
    %v634 = vunpack.c.l.bf16 %v506
    %v635 = vunpack.c.l.bf16 %v507
    %v636 = vunpack.c.l.bf16 %v508
    %v637 = vunpack.c.l.bf16 %v509
    %v638 = vunpack.c.l.bf16 %v510
    %v639 = vunpack.c.l.bf16 %v511
    %v640 = vunpack.c.l.bf16 %v512
    %v641 = vunpack.c.l.bf16 %v513
    %v642 = vunpack.c.l.bf16 %v514
    %v643 = vunpack.c.l.bf16 %v515
    %v644 = vunpack.c.l.bf16 %v516
    %v645 = vunpack.c.l.bf16 %v517
    %v646 = vunpack.c.l.bf16 %v518
    %v647 = vunpack.c.l.bf16 %v519
    %v648 = vunpack.c.l.bf16 %v520
    %v649 = vunpack.c.l.bf16 %v521
    %v650 = vunpack.c.l.bf16 %v522
    %v651 = vunpack.c.l.bf16 %v523
    %v652 = vunpack.c.l.bf16 %v524
    %v653 = vunpack.c.l.bf16 %v525
    %v654 = vunpack.c.l.bf16 %v526
    %v655 = vunpack.c.l.bf16 %v527
    %v656 = vunpack.c.l.bf16 %v528
    %v657 = vunpack.c.l.bf16 %v529
    %v658 = vunpack.c.l.bf16 %v530
    %v659 = vunpack.c.l.bf16 %v531
    %v660 = vunpack.c.l.bf16 %v532
    %v661 = vunpack.c.l.bf16 %v533
    %v662 = vunpack.c.l.bf16 %v534
    %v663 = vunpack.c.l.bf16 %v535
    %v664 = vunpack.c.l.bf16 %v536
    %vm665 = vcmask 523264
    %v666 = vsel %vm665, %v537, 0.0
    %667 = vadd.xlane.f32.xlu0 %v666
    %v668 = vpop.xlane.xlu0 %667
    %v669 = vsel %vm665, %v538, 0.0
    %670 = vadd.xlane.f32.xlu0 %v669
    %v671 = vpop.xlane.xlu0 %670
    %v672 = vsel %vm665, %v539, 0.0
    %673 = vadd.xlane.f32.xlu0 %v672
    %v674 = vpop.xlane.xlu0 %673
    %v675 = vsel %vm665, %v540, 0.0
    %676 = vadd.xlane.f32.xlu0 %v675
    %v677 = vpop.xlane.xlu0 %676
    %v678 = vsel %vm665, %v541, 0.0
    %679 = vadd.xlane.f32.xlu0 %v678
    %v680 = vpop.xlane.xlu0 %679
    %v681 = vsel %vm665, %v542, 0.0
    %682 = vadd.xlane.f32.xlu0 %v681
    %v683 = vpop.xlane.xlu0 %682
    %v684 = vsel %vm665, %v543, 0.0
    %685 = vadd.xlane.f32.xlu0 %v684
    %v686 = vpop.xlane.xlu0 %685
    %v687 = vsel %vm665, %v544, 0.0
    %688 = vadd.xlane.f32.xlu0 %v687
    %v689 = vpop.xlane.xlu0 %688
    %v690 = vsel %vm665, %v545, 0.0
    %691 = vadd.xlane.f32.xlu0 %v690
    %v692 = vpop.xlane.xlu0 %691
    %v693 = vsel %vm665, %v546, 0.0
    %694 = vadd.xlane.f32.xlu0 %v693
    %v695 = vpop.xlane.xlu0 %694
    %v696 = vsel %vm665, %v547, 0.0
    %697 = vadd.xlane.f32.xlu0 %v696
    %v698 = vpop.xlane.xlu0 %697
    %v699 = vsel %vm665, %v548, 0.0
    %700 = vadd.xlane.f32.xlu0 %v699
    %v701 = vpop.xlane.xlu0 %700
    %v702 = vsel %vm665, %v549, 0.0
    %703 = vadd.xlane.f32.xlu0 %v702
    %v704 = vpop.xlane.xlu0 %703
    %v705 = vsel %vm665, %v550, 0.0
    %706 = vadd.xlane.f32.xlu0 %v705
    %v707 = vpop.xlane.xlu0 %706
    %v708 = vsel %vm665, %v551, 0.0
    %709 = vadd.xlane.f32.xlu0 %v708
    %v710 = vpop.xlane.xlu0 %709
    %v711 = vsel %vm665, %v552, 0.0
    %712 = vadd.xlane.f32.xlu0 %v711
    %v713 = vpop.xlane.xlu0 %712
    %v714 = vsel %vm665, %v553, 0.0
    %715 = vadd.xlane.f32.xlu0 %v714
    %v716 = vpop.xlane.xlu0 %715
    %v717 = vsel %vm665, %v554, 0.0
    %718 = vadd.xlane.f32.xlu0 %v717
    %v719 = vpop.xlane.xlu0 %718
    %v720 = vsel %vm665, %v555, 0.0
    %721 = vadd.xlane.f32.xlu0 %v720
    %v722 = vpop.xlane.xlu0 %721
    %v723 = vsel %vm665, %v556, 0.0
    %724 = vadd.xlane.f32.xlu0 %v723
    %v725 = vpop.xlane.xlu0 %724
    %v726 = vsel %vm665, %v557, 0.0
    %727 = vadd.xlane.f32.xlu0 %v726
    %v728 = vpop.xlane.xlu0 %727
    %v729 = vsel %vm665, %v558, 0.0
    %730 = vadd.xlane.f32.xlu0 %v729
    %v731 = vpop.xlane.xlu0 %730
    %v732 = vsel %vm665, %v559, 0.0
    %733 = vadd.xlane.f32.xlu0 %v732
    %v734 = vpop.xlane.xlu0 %733
    %v735 = vsel %vm665, %v560, 0.0
    %736 = vadd.xlane.f32.xlu0 %v735
    %v737 = vpop.xlane.xlu0 %736
    %v738 = vsel %vm665, %v561, 0.0
    %739 = vadd.xlane.f32.xlu0 %v738
    %v740 = vpop.xlane.xlu0 %739
    %v741 = vsel %vm665, %v562, 0.0
    %742 = vadd.xlane.f32.xlu0 %v741
    %v743 = vpop.xlane.xlu0 %742
    %v744 = vsel %vm665, %v563, 0.0
    %745 = vadd.xlane.f32.xlu0 %v744
    %v746 = vpop.xlane.xlu0 %745
    %v747 = vsel %vm665, %v564, 0.0
    %748 = vadd.xlane.f32.xlu0 %v747
    %v749 = vpop.xlane.xlu0 %748
    %v750 = vsel %vm665, %v565, 0.0
    %751 = vadd.xlane.f32.xlu0 %v750
    %v752 = vpop.xlane.xlu0 %751
    %v753 = vsel %vm665, %v566, 0.0
    %754 = vadd.xlane.f32.xlu0 %v753
    %v755 = vpop.xlane.xlu0 %754
    %v756 = vsel %vm665, %v567, 0.0
    %757 = vadd.xlane.f32.xlu0 %v756
    %v758 = vpop.xlane.xlu0 %757
    %v759 = vsel %vm665, %v568, 0.0
    %760 = vadd.xlane.f32.xlu0 %v759
    %v761 = vpop.xlane.xlu0 %760
    %v762 = vsel %vm665, %v569, 0.0
    %763 = vadd.xlane.f32.xlu0 %v762
    %v764 = vpop.xlane.xlu0 %763
    %v765 = vsel %vm665, %v570, 0.0
    %766 = vadd.xlane.f32.xlu0 %v765
    %v767 = vpop.xlane.xlu0 %766
    %v768 = vsel %vm665, %v571, 0.0
    %769 = vadd.xlane.f32.xlu0 %v768
    %v770 = vpop.xlane.xlu0 %769
    %v771 = vsel %vm665, %v572, 0.0
    %772 = vadd.xlane.f32.xlu0 %v771
    %v773 = vpop.xlane.xlu0 %772
    %v774 = vsel %vm665, %v573, 0.0
    %775 = vadd.xlane.f32.xlu0 %v774
    %v776 = vpop.xlane.xlu0 %775
    %v777 = vsel %vm665, %v574, 0.0
    %778 = vadd.xlane.f32.xlu0 %v777
    %v779 = vpop.xlane.xlu0 %778
    %v780 = vsel %vm665, %v575, 0.0
    %781 = vadd.xlane.f32.xlu0 %v780
    %v782 = vpop.xlane.xlu0 %781
    %v783 = vsel %vm665, %v576, 0.0
    %784 = vadd.xlane.f32.xlu0 %v783
    %v785 = vpop.xlane.xlu0 %784
    %v786 = vsel %vm665, %v577, 0.0
    %787 = vadd.xlane.f32.xlu0 %v786
    %v788 = vpop.xlane.xlu0 %787
    %v789 = vsel %vm665, %v578, 0.0
    %790 = vadd.xlane.f32.xlu0 %v789
    %v791 = vpop.xlane.xlu0 %790
    %v792 = vsel %vm665, %v579, 0.0
    %793 = vadd.xlane.f32.xlu0 %v792
    %v794 = vpop.xlane.xlu0 %793
    %v795 = vsel %vm665, %v580, 0.0
    %796 = vadd.xlane.f32.xlu0 %v795
    %v797 = vpop.xlane.xlu0 %796
    %v798 = vsel %vm665, %v581, 0.0
    %799 = vadd.xlane.f32.xlu0 %v798
    %v800 = vpop.xlane.xlu0 %799
    %v801 = vsel %vm665, %v582, 0.0
    %802 = vadd.xlane.f32.xlu0 %v801
    %v803 = vpop.xlane.xlu0 %802
    %v804 = vsel %vm665, %v583, 0.0
    %805 = vadd.xlane.f32.xlu0 %v804
    %v806 = vpop.xlane.xlu0 %805
    %v807 = vsel %vm665, %v584, 0.0
    %808 = vadd.xlane.f32.xlu0 %v807
    %v809 = vpop.xlane.xlu0 %808
    %v810 = vsel %vm665, %v585, 0.0
    %811 = vadd.xlane.f32.xlu0 %v810
    %v812 = vpop.xlane.xlu0 %811
    %v813 = vsel %vm665, %v586, 0.0
    %814 = vadd.xlane.f32.xlu0 %v813
    %v815 = vpop.xlane.xlu0 %814
    %v816 = vsel %vm665, %v587, 0.0
    %817 = vadd.xlane.f32.xlu0 %v816
    %v818 = vpop.xlane.xlu0 %817
    %v819 = vsel %vm665, %v588, 0.0
    %820 = vadd.xlane.f32.xlu0 %v819
    %v821 = vpop.xlane.xlu0 %820
    %v822 = vsel %vm665, %v589, 0.0
    %823 = vadd.xlane.f32.xlu0 %v822
    %v824 = vpop.xlane.xlu0 %823
    %v825 = vsel %vm665, %v590, 0.0
    %826 = vadd.xlane.f32.xlu0 %v825
    %v827 = vpop.xlane.xlu0 %826
    %v828 = vsel %vm665, %v591, 0.0
    %829 = vadd.xlane.f32.xlu0 %v828
    %v830 = vpop.xlane.xlu0 %829
    %v831 = vsel %vm665, %v592, 0.0
    %832 = vadd.xlane.f32.xlu0 %v831
    %v833 = vpop.xlane.xlu0 %832
    %v834 = vsel %vm665, %v593, 0.0
    %835 = vadd.xlane.f32.xlu0 %v834
    %v836 = vpop.xlane.xlu0 %835
    %v837 = vsel %vm665, %v594, 0.0
    %838 = vadd.xlane.f32.xlu0 %v837
    %v839 = vpop.xlane.xlu0 %838
    %v840 = vsel %vm665, %v595, 0.0
    %841 = vadd.xlane.f32.xlu0 %v840
    %v842 = vpop.xlane.xlu0 %841
    %v843 = vsel %vm665, %v596, 0.0
    %844 = vadd.xlane.f32.xlu0 %v843
    %v845 = vpop.xlane.xlu0 %844
    %v846 = vsel %vm665, %v597, 0.0
    %847 = vadd.xlane.f32.xlu0 %v846
    %v848 = vpop.xlane.xlu0 %847
    %v849 = vsel %vm665, %v598, 0.0
    %850 = vadd.xlane.f32.xlu0 %v849
    %v851 = vpop.xlane.xlu0 %850
    %v852 = vsel %vm665, %v599, 0.0
    %853 = vadd.xlane.f32.xlu0 %v852
    %v854 = vpop.xlane.xlu0 %853
    %v855 = vsel %vm665, %v600, 0.0
    %856 = vadd.xlane.f32.xlu0 %v855
    %v857 = vpop.xlane.xlu0 %856
    %v858 = vsel %vm665, %v601, 0.0
    %859 = vadd.xlane.f32.xlu0 %v858
    %v860 = vpop.xlane.xlu0 %859
    %v861 = vsel %vm665, %v602, 0.0
    %862 = vadd.xlane.f32.xlu0 %v861
    %v863 = vpop.xlane.xlu0 %862
    %v864 = vsel %vm665, %v603, 0.0
    %865 = vadd.xlane.f32.xlu0 %v864
    %v866 = vpop.xlane.xlu0 %865
    %v867 = vsel %vm665, %v604, 0.0
    %868 = vadd.xlane.f32.xlu0 %v867
    %v869 = vpop.xlane.xlu0 %868
    %v870 = vsel %vm665, %v605, 0.0
    %871 = vadd.xlane.f32.xlu0 %v870
    %v872 = vpop.xlane.xlu0 %871
    %v873 = vsel %vm665, %v606, 0.0
    %874 = vadd.xlane.f32.xlu0 %v873
    %v875 = vpop.xlane.xlu0 %874
    %v876 = vsel %vm665, %v607, 0.0
    %877 = vadd.xlane.f32.xlu0 %v876
    %v878 = vpop.xlane.xlu0 %877
    %v879 = vsel %vm665, %v608, 0.0
    %880 = vadd.xlane.f32.xlu0 %v879
    %v881 = vpop.xlane.xlu0 %880
    %v882 = vsel %vm665, %v609, 0.0
    %883 = vadd.xlane.f32.xlu0 %v882
    %v884 = vpop.xlane.xlu0 %883
    %v885 = vsel %vm665, %v610, 0.0
    %886 = vadd.xlane.f32.xlu0 %v885
    %v887 = vpop.xlane.xlu0 %886
    %v888 = vsel %vm665, %v611, 0.0
    %889 = vadd.xlane.f32.xlu0 %v888
    %v890 = vpop.xlane.xlu0 %889
    %v891 = vsel %vm665, %v612, 0.0
    %892 = vadd.xlane.f32.xlu0 %v891
    %v893 = vpop.xlane.xlu0 %892
    %v894 = vsel %vm665, %v613, 0.0
    %895 = vadd.xlane.f32.xlu0 %v894
    %v896 = vpop.xlane.xlu0 %895
    %v897 = vsel %vm665, %v614, 0.0
    %898 = vadd.xlane.f32.xlu0 %v897
    %v899 = vpop.xlane.xlu0 %898
    %v900 = vsel %vm665, %v615, 0.0
    %901 = vadd.xlane.f32.xlu0 %v900
    %v902 = vpop.xlane.xlu0 %901
    %v903 = vsel %vm665, %v616, 0.0
    %904 = vadd.xlane.f32.xlu0 %v903
    %v905 = vpop.xlane.xlu0 %904
    %v906 = vsel %vm665, %v617, 0.0
    %907 = vadd.xlane.f32.xlu0 %v906
    %v908 = vpop.xlane.xlu0 %907
    %v909 = vsel %vm665, %v618, 0.0
    %910 = vadd.xlane.f32.xlu0 %v909
    %v911 = vpop.xlane.xlu0 %910
    %v912 = vsel %vm665, %v619, 0.0
    %913 = vadd.xlane.f32.xlu0 %v912
    %v914 = vpop.xlane.xlu0 %913
    %v915 = vsel %vm665, %v620, 0.0
    %916 = vadd.xlane.f32.xlu0 %v915
    %v917 = vpop.xlane.xlu0 %916
    %v918 = vsel %vm665, %v621, 0.0
    %919 = vadd.xlane.f32.xlu0 %v918
    %v920 = vpop.xlane.xlu0 %919
    %v921 = vsel %vm665, %v622, 0.0
    %922 = vadd.xlane.f32.xlu0 %v921
    %v923 = vpop.xlane.xlu0 %922
    %v924 = vsel %vm665, %v623, 0.0
    %925 = vadd.xlane.f32.xlu0 %v924
    %v926 = vpop.xlane.xlu0 %925
    %v927 = vsel %vm665, %v624, 0.0
    %928 = vadd.xlane.f32.xlu0 %v927
    %v929 = vpop.xlane.xlu0 %928
    %v930 = vsel %vm665, %v625, 0.0
    %931 = vadd.xlane.f32.xlu0 %v930
    %v932 = vpop.xlane.xlu0 %931
    %v933 = vsel %vm665, %v626, 0.0
    %934 = vadd.xlane.f32.xlu0 %v933
    %v935 = vpop.xlane.xlu0 %934
    %v936 = vsel %vm665, %v627, 0.0
    %937 = vadd.xlane.f32.xlu0 %v936
    %v938 = vpop.xlane.xlu0 %937
    %v939 = vsel %vm665, %v628, 0.0
    %940 = vadd.xlane.f32.xlu0 %v939
    %v941 = vpop.xlane.xlu0 %940
    %v942 = vsel %vm665, %v629, 0.0
    %943 = vadd.xlane.f32.xlu0 %v942
    %v944 = vpop.xlane.xlu0 %943
    %v945 = vsel %vm665, %v630, 0.0
    %946 = vadd.xlane.f32.xlu0 %v945
    %v947 = vpop.xlane.xlu0 %946
    %v948 = vsel %vm665, %v631, 0.0
    %949 = vadd.xlane.f32.xlu0 %v948
    %v950 = vpop.xlane.xlu0 %949
    %v951 = vsel %vm665, %v632, 0.0
    %952 = vadd.xlane.f32.xlu0 %v951
    %v953 = vpop.xlane.xlu0 %952
    %v954 = vsel %vm665, %v633, 0.0
    %955 = vadd.xlane.f32.xlu0 %v954
    %v956 = vpop.xlane.xlu0 %955
    %v957 = vsel %vm665, %v634, 0.0
    %958 = vadd.xlane.f32.xlu0 %v957
    %v959 = vpop.xlane.xlu0 %958
    %v960 = vsel %vm665, %v635, 0.0
    %961 = vadd.xlane.f32.xlu0 %v960
    %v962 = vpop.xlane.xlu0 %961
    %v963 = vsel %vm665, %v636, 0.0
    %964 = vadd.xlane.f32.xlu0 %v963
    %v965 = vpop.xlane.xlu0 %964
    %v966 = vsel %vm665, %v637, 0.0
    %967 = vadd.xlane.f32.xlu0 %v966
    %v968 = vpop.xlane.xlu0 %967
    %v969 = vsel %vm665, %v638, 0.0
    %970 = vadd.xlane.f32.xlu0 %v969
    %v971 = vpop.xlane.xlu0 %970
    %v972 = vsel %vm665, %v639, 0.0
    %973 = vadd.xlane.f32.xlu0 %v972
    %v974 = vpop.xlane.xlu0 %973
    %v975 = vsel %vm665, %v640, 0.0
    %976 = vadd.xlane.f32.xlu0 %v975
    %v977 = vpop.xlane.xlu0 %976
    %v978 = vsel %vm665, %v641, 0.0
    %979 = vadd.xlane.f32.xlu0 %v978
    %v980 = vpop.xlane.xlu0 %979
    %v981 = vsel %vm665, %v642, 0.0
    %982 = vadd.xlane.f32.xlu0 %v981
    %v983 = vpop.xlane.xlu0 %982
    %v984 = vsel %vm665, %v643, 0.0
    %985 = vadd.xlane.f32.xlu0 %v984
    %v986 = vpop.xlane.xlu0 %985
    %v987 = vsel %vm665, %v644, 0.0
    %988 = vadd.xlane.f32.xlu0 %v987
    %v989 = vpop.xlane.xlu0 %988
    %v990 = vsel %vm665, %v645, 0.0
    %991 = vadd.xlane.f32.xlu0 %v990
    %v992 = vpop.xlane.xlu0 %991
    %v993 = vsel %vm665, %v646, 0.0
    %994 = vadd.xlane.f32.xlu0 %v993
    %v995 = vpop.xlane.xlu0 %994
    %v996 = vsel %vm665, %v647, 0.0
    %997 = vadd.xlane.f32.xlu0 %v996
    %v998 = vpop.xlane.xlu0 %997
    %v999 = vsel %vm665, %v648, 0.0
    %1000 = vadd.xlane.f32.xlu0 %v999
    %v1001 = vpop.xlane.xlu0 %1000
    %v1002 = vsel %vm665, %v649, 0.0
    %1003 = vadd.xlane.f32.xlu0 %v1002
    %v1004 = vpop.xlane.xlu0 %1003
    %v1005 = vsel %vm665, %v650, 0.0
    %1006 = vadd.xlane.f32.xlu0 %v1005
    %v1007 = vpop.xlane.xlu0 %1006
    %v1008 = vsel %vm665, %v651, 0.0
    %1009 = vadd.xlane.f32.xlu0 %v1008
    %v1010 = vpop.xlane.xlu0 %1009
    %v1011 = vsel %vm665, %v652, 0.0
    %1012 = vadd.xlane.f32.xlu0 %v1011
    %v1013 = vpop.xlane.xlu0 %1012
    %v1014 = vsel %vm665, %v653, 0.0
    %1015 = vadd.xlane.f32.xlu0 %v1014
    %v1016 = vpop.xlane.xlu0 %1015
    %v1017 = vsel %vm665, %v654, 0.0
    %1018 = vadd.xlane.f32.xlu0 %v1017
    %v1019 = vpop.xlane.xlu0 %1018
    %v1020 = vsel %vm665, %v655, 0.0
    %1021 = vadd.xlane.f32.xlu0 %v1020
    %v1022 = vpop.xlane.xlu0 %1021
    %v1023 = vsel %vm665, %v656, 0.0
    %1024 = vadd.xlane.f32.xlu0 %v1023
    %v1025 = vpop.xlane.xlu0 %1024
    %v1026 = vsel %vm665, %v657, 0.0
    %1027 = vadd.xlane.f32.xlu0 %v1026
    %v1028 = vpop.xlane.xlu0 %1027
    %v1029 = vsel %vm665, %v658, 0.0
    %1030 = vadd.xlane.f32.xlu0 %v1029
    %v1031 = vpop.xlane.xlu0 %1030
    %v1032 = vsel %vm665, %v659, 0.0
    %1033 = vadd.xlane.f32.xlu0 %v1032
    %v1034 = vpop.xlane.xlu0 %1033
    %v1035 = vsel %vm665, %v660, 0.0
    %1036 = vadd.xlane.f32.xlu0 %v1035
    %v1037 = vpop.xlane.xlu0 %1036
    %v1038 = vsel %vm665, %v661, 0.0
    %1039 = vadd.xlane.f32.xlu0 %v1038
    %v1040 = vpop.xlane.xlu0 %1039
    %v1041 = vsel %vm665, %v662, 0.0
    %1042 = vadd.xlane.f32.xlu0 %v1041
    %v1043 = vpop.xlane.xlu0 %1042
    %v1044 = vsel %vm665, %v663, 0.0
    %1045 = vadd.xlane.f32.xlu0 %v1044
    %v1046 = vpop.xlane.xlu0 %1045
    %v1047 = vsel %vm665, %v664, 0.0
    %1048 = vadd.xlane.f32.xlu0 %v1047
    %v1049 = vpop.xlane.xlu0 %1048
    %v1050 = vld [vmem:[#allocation2] sm:$0x1]
    %v1052 = vlaneseq
    %v1053 = vshrl.u32 %v1052, 7
    %v1054 = vsub.s32 0, %v1053
    %v1055 = vrot.slane %v1050, %v1054
    %1056 = vset.pattern.permute.xlu0 0
    %1057 = vperm.xlu0 %1056, %v1055
    %v1058 = vpop.permute.xlu0 %1057
    %v1060 = vadd.f32 %v668, %v1058
    %v1061 = vadd.f32 %v671, %v1058
    %v1062 = vadd.f32 %v674, %v1058
    %v1063 = vadd.f32 %v677, %v1058
    %v1064 = vadd.f32 %v680, %v1058
    %v1065 = vadd.f32 %v683, %v1058
    %v1066 = vadd.f32 %v686, %v1058
    %v1067 = vadd.f32 %v689, %v1058
    %v1068 = vadd.f32 %v692, %v1058
    %v1069 = vadd.f32 %v695, %v1058
    %v1070 = vadd.f32 %v698, %v1058
    %v1071 = vadd.f32 %v701, %v1058
    %v1072 = vadd.f32 %v704, %v1058
    %v1073 = vadd.f32 %v707, %v1058
    %v1074 = vadd.f32 %v710, %v1058
    %v1075 = vadd.f32 %v713, %v1058
    %v1076 = vadd.f32 %v716, %v1058
    %v1077 = vadd.f32 %v719, %v1058
    %v1078 = vadd.f32 %v722, %v1058
    %v1079 = vadd.f32 %v725, %v1058
    %v1080 = vadd.f32 %v728, %v1058
    %v1081 = vadd.f32 %v731, %v1058
    %v1082 = vadd.f32 %v734, %v1058
    %v1083 = vadd.f32 %v737, %v1058
    %v1084 = vadd.f32 %v740, %v1058
    %v1085 = vadd.f32 %v743, %v1058
    %v1086 = vadd.f32 %v746, %v1058
    %v1087 = vadd.f32 %v749, %v1058
    %v1088 = vadd.f32 %v752, %v1058
    %v1089 = vadd.f32 %v755, %v1058
    %v1090 = vadd.f32 %v758, %v1058
    %v1091 = vadd.f32 %v761, %v1058
    %v1092 = vadd.f32 %v764, %v1058
    %v1093 = vadd.f32 %v767, %v1058
    %v1094 = vadd.f32 %v770, %v1058
    %v1095 = vadd.f32 %v773, %v1058
    %v1096 = vadd.f32 %v776, %v1058
    %v1097 = vadd.f32 %v779, %v1058
    %v1098 = vadd.f32 %v782, %v1058
    %v1099 = vadd.f32 %v785, %v1058
    %v1100 = vadd.f32 %v788, %v1058
    %v1101 = vadd.f32 %v791, %v1058
    %v1102 = vadd.f32 %v794, %v1058
    %v1103 = vadd.f32 %v797, %v1058
    %v1104 = vadd.f32 %v800, %v1058
    %v1105 = vadd.f32 %v803, %v1058
    %v1106 = vadd.f32 %v806, %v1058
    %v1107 = vadd.f32 %v809, %v1058
    %v1108 = vadd.f32 %v812, %v1058
    %v1109 = vadd.f32 %v815, %v1058
    %v1110 = vadd.f32 %v818, %v1058
    %v1111 = vadd.f32 %v821, %v1058
    %v1112 = vadd.f32 %v824, %v1058
    %v1113 = vadd.f32 %v827, %v1058
    %v1114 = vadd.f32 %v830, %v1058
    %v1115 = vadd.f32 %v833, %v1058
    %v1116 = vadd.f32 %v836, %v1058
    %v1117 = vadd.f32 %v839, %v1058
    %v1118 = vadd.f32 %v842, %v1058
    %v1119 = vadd.f32 %v845, %v1058
    %v1120 = vadd.f32 %v848, %v1058
    %v1121 = vadd.f32 %v851, %v1058
    %v1122 = vadd.f32 %v854, %v1058
    %v1123 = vadd.f32 %v857, %v1058
    %v1124 = vadd.f32 %v860, %v1058
    %v1125 = vadd.f32 %v863, %v1058
    %v1126 = vadd.f32 %v866, %v1058
    %v1127 = vadd.f32 %v869, %v1058
    %v1128 = vadd.f32 %v872, %v1058
    %v1129 = vadd.f32 %v875, %v1058
    %v1130 = vadd.f32 %v878, %v1058
    %v1131 = vadd.f32 %v881, %v1058
    %v1132 = vadd.f32 %v884, %v1058
    %v1133 = vadd.f32 %v887, %v1058
    %v1134 = vadd.f32 %v890, %v1058
    %v1135 = vadd.f32 %v893, %v1058
    %v1136 = vadd.f32 %v896, %v1058
    %v1137 = vadd.f32 %v899, %v1058
    %v1138 = vadd.f32 %v902, %v1058
    %v1139 = vadd.f32 %v905, %v1058
    %v1140 = vadd.f32 %v908, %v1058
    %v1141 = vadd.f32 %v911, %v1058
    %v1142 = vadd.f32 %v914, %v1058
    %v1143 = vadd.f32 %v917, %v1058
    %v1144 = vadd.f32 %v920, %v1058
    %v1145 = vadd.f32 %v923, %v1058
    %v1146 = vadd.f32 %v926, %v1058
    %v1147 = vadd.f32 %v929, %v1058
    %v1148 = vadd.f32 %v932, %v1058
    %v1149 = vadd.f32 %v935, %v1058
    %v1150 = vadd.f32 %v938, %v1058
    %v1151 = vadd.f32 %v941, %v1058
    %v1152 = vadd.f32 %v944, %v1058
    %v1153 = vadd.f32 %v947, %v1058
    %v1154 = vadd.f32 %v950, %v1058
    %v1155 = vadd.f32 %v953, %v1058
    %v1156 = vadd.f32 %v956, %v1058
    %v1157 = vadd.f32 %v959, %v1058
    %v1158 = vadd.f32 %v962, %v1058
    %v1159 = vadd.f32 %v965, %v1058
    %v1160 = vadd.f32 %v968, %v1058
    %v1161 = vadd.f32 %v971, %v1058
    %v1162 = vadd.f32 %v974, %v1058
    %v1163 = vadd.f32 %v977, %v1058
    %v1164 = vadd.f32 %v980, %v1058
    %v1165 = vadd.f32 %v983, %v1058
    %v1166 = vadd.f32 %v986, %v1058
    %v1167 = vadd.f32 %v989, %v1058
    %v1168 = vadd.f32 %v992, %v1058
    %v1169 = vadd.f32 %v995, %v1058
    %v1170 = vadd.f32 %v998, %v1058
    %v1171 = vadd.f32 %v1001, %v1058
    %v1172 = vadd.f32 %v1004, %v1058
    %v1173 = vadd.f32 %v1007, %v1058
    %v1174 = vadd.f32 %v1010, %v1058
    %v1175 = vadd.f32 %v1013, %v1058
    %v1176 = vadd.f32 %v1016, %v1058
    %v1177 = vadd.f32 %v1019, %v1058
    %v1178 = vadd.f32 %v1022, %v1058
    %v1179 = vadd.f32 %v1025, %v1058
    %v1180 = vadd.f32 %v1028, %v1058
    %v1181 = vadd.f32 %v1031, %v1058
    %v1182 = vadd.f32 %v1034, %v1058
    %v1183 = vadd.f32 %v1037, %v1058
    %v1184 = vadd.f32 %v1040, %v1058
    %v1185 = vadd.f32 %v1043, %v1058
    %v1186 = vadd.f32 %v1046, %v1058
    %v1187 = vadd.f32 %v1049, %v1058
    %v1188 = vpack.c.bf16 %v1061, %v1060
    %v1189 = vpack.c.bf16 %v1063, %v1062
    %v1190 = vpack.c.bf16 %v1065, %v1064
    %v1191 = vpack.c.bf16 %v1067, %v1066
    %v1192 = vpack.c.bf16 %v1069, %v1068
    %v1193 = vpack.c.bf16 %v1071, %v1070
    %v1194 = vpack.c.bf16 %v1073, %v1072
    %v1195 = vpack.c.bf16 %v1075, %v1074
    %v1196 = vpack.c.bf16 %v1077, %v1076
    %v1197 = vpack.c.bf16 %v1079, %v1078
    %v1198 = vpack.c.bf16 %v1081, %v1080
    %v1199 = vpack.c.bf16 %v1083, %v1082
    %v1200 = vpack.c.bf16 %v1085, %v1084
    %v1201 = vpack.c.bf16 %v1087, %v1086
    %v1202 = vpack.c.bf16 %v1089, %v1088
    %v1203 = vpack.c.bf16 %v1091, %v1090
    %v1204 = vpack.c.bf16 %v1093, %v1092
    %v1205 = vpack.c.bf16 %v1095, %v1094
    %v1206 = vpack.c.bf16 %v1097, %v1096
    %v1207 = vpack.c.bf16 %v1099, %v1098
    %v1208 = vpack.c.bf16 %v1101, %v1100
    %v1209 = vpack.c.bf16 %v1103, %v1102
    %v1210 = vpack.c.bf16 %v1105, %v1104
    %v1211 = vpack.c.bf16 %v1107, %v1106
    %v1212 = vpack.c.bf16 %v1109, %v1108
    %v1213 = vpack.c.bf16 %v1111, %v1110
    %v1214 = vpack.c.bf16 %v1113, %v1112
    %v1215 = vpack.c.bf16 %v1115, %v1114
    %v1216 = vpack.c.bf16 %v1117, %v1116
    %v1217 = vpack.c.bf16 %v1119, %v1118
    %v1218 = vpack.c.bf16 %v1121, %v1120
    %v1219 = vpack.c.bf16 %v1123, %v1122
    %v1220 = vpack.c.bf16 %v1125, %v1124
    %v1221 = vpack.c.bf16 %v1127, %v1126
    %v1222 = vpack.c.bf16 %v1129, %v1128
    %v1223 = vpack.c.bf16 %v1131, %v1130
    %v1224 = vpack.c.bf16 %v1133, %v1132
    %v1225 = vpack.c.bf16 %v1135, %v1134
    %v1226 = vpack.c.bf16 %v1137, %v1136
    %v1227 = vpack.c.bf16 %v1139, %v1138
    %v1228 = vpack.c.bf16 %v1141, %v1140
    %v1229 = vpack.c.bf16 %v1143, %v1142
    %v1230 = vpack.c.bf16 %v1145, %v1144
    %v1231 = vpack.c.bf16 %v1147, %v1146
    %v1232 = vpack.c.bf16 %v1149, %v1148
    %v1233 = vpack.c.bf16 %v1151, %v1150
    %v1234 = vpack.c.bf16 %v1153, %v1152
    %v1235 = vpack.c.bf16 %v1155, %v1154
    %v1236 = vpack.c.bf16 %v1157, %v1156
    %v1237 = vpack.c.bf16 %v1159, %v1158
    %v1238 = vpack.c.bf16 %v1161, %v1160
    %v1239 = vpack.c.bf16 %v1163, %v1162
    %v1240 = vpack.c.bf16 %v1165, %v1164
    %v1241 = vpack.c.bf16 %v1167, %v1166
    %v1242 = vpack.c.bf16 %v1169, %v1168
    %v1243 = vpack.c.bf16 %v1171, %v1170
    %v1244 = vpack.c.bf16 %v1173, %v1172
    %v1245 = vpack.c.bf16 %v1175, %v1174
    %v1246 = vpack.c.bf16 %v1177, %v1176
    %v1247 = vpack.c.bf16 %v1179, %v1178
    %v1248 = vpack.c.bf16 %v1181, %v1180
    %v1249 = vpack.c.bf16 %v1183, %v1182
    %v1250 = vpack.c.bf16 %v1185, %v1184
    %v1251 = vpack.c.bf16 %v1187, %v1186
    %v1252 = vld [vmem:[%s6] sm:$0xff]
    %v1253 = vld [vmem:[%s6 + $0x8] sm:$0xff]
    %v1254 = vld [vmem:[%s6 + $0x10] sm:$0xff]
    %v1255 = vld [vmem:[%s6 + $0x18] sm:$0xff]
    %v1256 = vld [vmem:[%s6 + $0x20] sm:$0xff]
    %v1257 = vld [vmem:[%s6 + $0x28] sm:$0xff]
    %v1258 = vld [vmem:[%s6 + $0x30] sm:$0xff]
    %v1259 = vld [vmem:[%s6 + $0x38] sm:$0xff]
    %v1260 = vld [vmem:[%s6 + $0x40] sm:$0xff]
    %v1261 = vld [vmem:[%s6 + $0x48] sm:$0xff]
    %v1262 = vld [vmem:[%s6 + $0x50] sm:$0xff]
    %v1263 = vld [vmem:[%s6 + $0x58] sm:$0xff]
    %v1264 = vld [vmem:[%s6 + $0x60] sm:$0xff]
    %v1265 = vld [vmem:[%s6 + $0x68] sm:$0xff]
    %v1266 = vld [vmem:[%s6 + $0x70] sm:$0xff]
    %v1267 = vld [vmem:[%s6 + $0x78] sm:$0xff]
    %v1268 = vld [vmem:[%s6 + $0x80] sm:$0xff]
    %v1269 = vld [vmem:[%s6 + $0x88] sm:$0xff]
    %v1270 = vld [vmem:[%s6 + $0x90] sm:$0xff]
    %v1271 = vld [vmem:[%s6 + $0x98] sm:$0xff]
    %v1272 = vld [vmem:[%s6 + $0xa0] sm:$0xff]
    %v1273 = vld [vmem:[%s6 + $0xa8] sm:$0xff]
    %v1274 = vld [vmem:[%s6 + $0xb0] sm:$0xff]
    %v1275 = vld [vmem:[%s6 + $0xb8] sm:$0xff]
    %v1276 = vld [vmem:[%s6 + $0xc0] sm:$0xff]
    %v1277 = vld [vmem:[%s6 + $0xc8] sm:$0xff]
    %v1278 = vld [vmem:[%s6 + $0xd0] sm:$0xff]
    %v1279 = vld [vmem:[%s6 + $0xd8] sm:$0xff]
    %v1280 = vld [vmem:[%s6 + $0xe0] sm:$0xff]
    %v1281 = vld [vmem:[%s6 + $0xe8] sm:$0xff]
    %v1282 = vld [vmem:[%s6 + $0xf0] sm:$0xff]
    %v1283 = vld [vmem:[%s6 + $0xf8] sm:$0xff]
    %v1284 = vld [vmem:[%s6 + $0x100] sm:$0xff]
    %v1285 = vld [vmem:[%s6 + $0x108] sm:$0xff]
    %v1286 = vld [vmem:[%s6 + $0x110] sm:$0xff]
    %v1287 = vld [vmem:[%s6 + $0x118] sm:$0xff]
    %v1288 = vld [vmem:[%s6 + $0x120] sm:$0xff]
    %v1289 = vld [vmem:[%s6 + $0x128] sm:$0xff]
    %v1290 = vld [vmem:[%s6 + $0x130] sm:$0xff]
    %v1291 = vld [vmem:[%s6 + $0x138] sm:$0xff]
    %v1292 = vld [vmem:[%s6 + $0x140] sm:$0xff]
    %v1293 = vld [vmem:[%s6 + $0x148] sm:$0xff]
    %v1294 = vld [vmem:[%s6 + $0x150] sm:$0xff]
    %v1295 = vld [vmem:[%s6 + $0x158] sm:$0xff]
    %v1296 = vld [vmem:[%s6 + $0x160] sm:$0xff]
    %v1297 = vld [vmem:[%s6 + $0x168] sm:$0xff]
    %v1298 = vld [vmem:[%s6 + $0x170] sm:$0xff]
    %v1299 = vld [vmem:[%s6 + $0x178] sm:$0xff]
    %v1300 = vld [vmem:[%s6 + $0x180] sm:$0xff]
    %v1301 = vld [vmem:[%s6 + $0x188] sm:$0xff]
    %v1302 = vld [vmem:[%s6 + $0x190] sm:$0xff]
    %v1303 = vld [vmem:[%s6 + $0x198] sm:$0xff]
    %v1304 = vld [vmem:[%s6 + $0x1a0] sm:$0xff]
    %v1305 = vld [vmem:[%s6 + $0x1a8] sm:$0xff]
    %v1306 = vld [vmem:[%s6 + $0x1b0] sm:$0xff]
    %v1307 = vld [vmem:[%s6 + $0x1b8] sm:$0xff]
    %v1308 = vld [vmem:[%s6 + $0x1c0] sm:$0xff]
    %v1309 = vld [vmem:[%s6 + $0x1c8] sm:$0xff]
    %v1310 = vld [vmem:[%s6 + $0x1d0] sm:$0xff]
    %v1311 = vld [vmem:[%s6 + $0x1d8] sm:$0xff]
    %v1312 = vld [vmem:[%s6 + $0x1e0] sm:$0xff]
    %v1313 = vld [vmem:[%s6 + $0x1e8] sm:$0xff]
    %v1314 = vld [vmem:[%s6 + $0x1f0] sm:$0xff]
    %v1315 = vld [vmem:[%s6 + $0x1f8] sm:$0xff]
    %v1316 = vld [vmem:[%s7] sm:$0xff]
    %v1318 = vlaneseq
    %v1319 = vshrl.u32 %v1318, 7
    %v1320 = vsub.s32 0, %v1319
    %v1321 = vrot.slane %v1316, %v1320
    %v1322 = vlaneseq
    %v1323 = vshrl.u32 %v1322, 7
    %v1324 = vsub.s32 1, %v1323
    %v1325 = vrot.slane %v1316, %v1324
    %v1326 = vlaneseq
    %v1327 = vshrl.u32 %v1326, 7
    %v1328 = vsub.s32 2, %v1327
    %v1329 = vrot.slane %v1316, %v1328
    %v1330 = vlaneseq
    %v1331 = vshrl.u32 %v1330, 7
    %v1332 = vsub.s32 3, %v1331
    %v1333 = vrot.slane %v1316, %v1332
    %v1334 = vlaneseq
    %v1335 = vshrl.u32 %v1334, 7
    %v1336 = vsub.s32 4, %v1335
    %v1337 = vrot.slane %v1316, %v1336
    %v1338 = vlaneseq
    %v1339 = vshrl.u32 %v1338, 7
    %v1340 = vsub.s32 5, %v1339
    %v1341 = vrot.slane %v1316, %v1340
    %v1342 = vlaneseq
    %v1343 = vshrl.u32 %v1342, 7
    %v1344 = vsub.s32 6, %v1343
    %v1345 = vrot.slane %v1316, %v1344
    %v1346 = vlaneseq
    %v1347 = vshrl.u32 %v1346, 7
    %v1348 = vsub.s32 7, %v1347
    %v1349 = vrot.slane %v1316, %v1348
    %v1422 = vunpack.c.l.b16 %v1188
    %v1423 = vunpack.c.h.b16 %v1188
    %v1424 = vunpack.c.l.b16 %v1189
    %v1425 = vunpack.c.h.b16 %v1189
    %v1426 = vunpack.c.l.b16 %v1190
    %v1427 = vunpack.c.h.b16 %v1190
    %v1428 = vunpack.c.l.b16 %v1191
    %v1429 = vunpack.c.h.b16 %v1191
    %v1430 = vunpack.c.l.b16 %v1192
    %v1431 = vunpack.c.h.b16 %v1192
    %v1432 = vunpack.c.l.b16 %v1193
    %v1433 = vunpack.c.h.b16 %v1193
    %v1434 = vunpack.c.l.b16 %v1194
    %v1435 = vunpack.c.h.b16 %v1194
    %v1436 = vunpack.c.l.b16 %v1195
    %v1437 = vunpack.c.h.b16 %v1195
    %v1438 = vunpack.c.l.b16 %v1196
    %v1439 = vunpack.c.h.b16 %v1196
    %v1440 = vunpack.c.l.b16 %v1197
    %v1441 = vunpack.c.h.b16 %v1197
    %v1442 = vunpack.c.l.b16 %v1198
    %v1443 = vunpack.c.h.b16 %v1198
    %v1444 = vunpack.c.l.b16 %v1199
    %v1445 = vunpack.c.h.b16 %v1199
    %v1446 = vunpack.c.l.b16 %v1200
    %v1447 = vunpack.c.h.b16 %v1200
    %v1448 = vunpack.c.l.b16 %v1201
    %v1449 = vunpack.c.h.b16 %v1201
    %v1450 = vunpack.c.l.b16 %v1202
    %v1451 = vunpack.c.h.b16 %v1202
    %v1452 = vunpack.c.l.b16 %v1203
    %v1453 = vunpack.c.h.b16 %v1203
    %v1454 = vunpack.c.l.b16 %v1204
    %v1455 = vunpack.c.h.b16 %v1204
    %v1456 = vunpack.c.l.b16 %v1205
    %v1457 = vunpack.c.h.b16 %v1205
    %v1458 = vunpack.c.l.b16 %v1206
    %v1459 = vunpack.c.h.b16 %v1206
    %v1460 = vunpack.c.l.b16 %v1207
    %v1461 = vunpack.c.h.b16 %v1207
    %v1462 = vunpack.c.l.b16 %v1208
    %v1463 = vunpack.c.h.b16 %v1208
    %v1464 = vunpack.c.l.b16 %v1209
    %v1465 = vunpack.c.h.b16 %v1209
    %v1466 = vunpack.c.l.b16 %v1210
    %v1467 = vunpack.c.h.b16 %v1210
    %v1468 = vunpack.c.l.b16 %v1211
    %v1469 = vunpack.c.h.b16 %v1211
    %v1470 = vunpack.c.l.b16 %v1212
    %v1471 = vunpack.c.h.b16 %v1212
    %v1472 = vunpack.c.l.b16 %v1213
    %v1473 = vunpack.c.h.b16 %v1213
    %v1474 = vunpack.c.l.b16 %v1214
    %v1475 = vunpack.c.h.b16 %v1214
    %v1476 = vunpack.c.l.b16 %v1215
    %v1477 = vunpack.c.h.b16 %v1215
    %v1478 = vunpack.c.l.b16 %v1216
    %v1479 = vunpack.c.h.b16 %v1216
    %v1480 = vunpack.c.l.b16 %v1217
    %v1481 = vunpack.c.h.b16 %v1217
    %v1482 = vunpack.c.l.b16 %v1218
    %v1483 = vunpack.c.h.b16 %v1218
    %v1484 = vunpack.c.l.b16 %v1219
    %v1485 = vunpack.c.h.b16 %v1219
    %v1486 = vunpack.c.l.b16 %v1220
    %v1487 = vunpack.c.h.b16 %v1220
    %v1488 = vunpack.c.l.b16 %v1221
    %v1489 = vunpack.c.h.b16 %v1221
    %v1490 = vunpack.c.l.b16 %v1222
    %v1491 = vunpack.c.h.b16 %v1222
    %v1492 = vunpack.c.l.b16 %v1223
    %v1493 = vunpack.c.h.b16 %v1223
    %v1494 = vunpack.c.l.b16 %v1224
    %v1495 = vunpack.c.h.b16 %v1224
    %v1496 = vunpack.c.l.b16 %v1225
    %v1497 = vunpack.c.h.b16 %v1225
    %v1498 = vunpack.c.l.b16 %v1226
    %v1499 = vunpack.c.h.b16 %v1226
    %v1500 = vunpack.c.l.b16 %v1227
    %v1501 = vunpack.c.h.b16 %v1227
    %v1502 = vunpack.c.l.b16 %v1228
    %v1503 = vunpack.c.h.b16 %v1228
    %v1504 = vunpack.c.l.b16 %v1229
    %v1505 = vunpack.c.h.b16 %v1229
    %v1506 = vunpack.c.l.b16 %v1230
    %v1507 = vunpack.c.h.b16 %v1230
    %v1508 = vunpack.c.l.b16 %v1231
    %v1509 = vunpack.c.h.b16 %v1231
    %v1510 = vunpack.c.l.b16 %v1232
    %v1511 = vunpack.c.h.b16 %v1232
    %v1512 = vunpack.c.l.b16 %v1233
    %v1513 = vunpack.c.h.b16 %v1233
    %v1514 = vunpack.c.l.b16 %v1234
    %v1515 = vunpack.c.h.b16 %v1234
    %v1516 = vunpack.c.l.b16 %v1235
    %v1517 = vunpack.c.h.b16 %v1235
    %v1518 = vunpack.c.l.b16 %v1236
    %v1519 = vunpack.c.h.b16 %v1236
    %v1520 = vunpack.c.l.b16 %v1237
    %v1521 = vunpack.c.h.b16 %v1237
    %v1522 = vunpack.c.l.b16 %v1238
    %v1523 = vunpack.c.h.b16 %v1238
    %v1524 = vunpack.c.l.b16 %v1239
    %v1525 = vunpack.c.h.b16 %v1239
    %v1526 = vunpack.c.l.b16 %v1240
    %v1527 = vunpack.c.h.b16 %v1240
    %v1528 = vunpack.c.l.b16 %v1241
    %v1529 = vunpack.c.h.b16 %v1241
    %v1530 = vunpack.c.l.b16 %v1242
    %v1531 = vunpack.c.h.b16 %v1242
    %v1532 = vunpack.c.l.b16 %v1243
    %v1533 = vunpack.c.h.b16 %v1243
    %v1534 = vunpack.c.l.b16 %v1244
    %v1535 = vunpack.c.h.b16 %v1244
    %v1536 = vunpack.c.l.b16 %v1245
    %v1537 = vunpack.c.h.b16 %v1245
    %v1538 = vunpack.c.l.b16 %v1246
    %v1539 = vunpack.c.h.b16 %v1246
    %v1540 = vunpack.c.l.b16 %v1247
    %v1541 = vunpack.c.h.b16 %v1247
    %v1542 = vunpack.c.l.b16 %v1248
    %v1543 = vunpack.c.h.b16 %v1248
    %v1544 = vunpack.c.l.b16 %v1249
    %v1545 = vunpack.c.h.b16 %v1249
    %v1546 = vunpack.c.l.b16 %v1250
    %v1547 = vunpack.c.h.b16 %v1250
    %v1548 = vunpack.c.l.b16 %v1251
    %v1549 = vunpack.c.h.b16 %v1251
    %v1550 = vlaneseq
    %v1551 = vand.u32 %v1550, 127
    %v1552 = vlaneseq
    %v1553 = vshrl.u32 %v1552, 7
    %v1554 = vsub.s32 %v1551, %v1553
    %v1555 = vrot.slane %v1422, %v1554
    %v1556 = vadd.s32 %v1551, 4294967288
    %v1557 = vlaneseq
    %v1558 = vshrl.u32 %v1557, 7
    %v1559 = vsub.s32 %v1556, %v1558
    %v1560 = vrot.slane %v1423, %v1559
    %vm1561 = vcmask 130112
    %v1562 = vsel %vm1561, %v1560, %v1555
    %v1563 = vadd.s32 %v1551, 4294967280
    %v1564 = vlaneseq
    %v1565 = vshrl.u32 %v1564, 7
    %v1566 = vsub.s32 %v1563, %v1565
    %v1567 = vrot.slane %v1424, %v1566
    %vm1568 = vcmask 195712
    %v1569 = vsel %vm1568, %v1567, %v1562
    %v1570 = vadd.s32 %v1551, 4294967272
    %v1571 = vlaneseq
    %v1572 = vshrl.u32 %v1571, 7
    %v1573 = vsub.s32 %v1570, %v1572
    %v1574 = vrot.slane %v1425, %v1573
    %vm1575 = vcmask 261312
    %v1576 = vsel %vm1575, %v1574, %v1569
    %v1577 = vadd.s32 %v1551, 4294967264
    %v1578 = vlaneseq
    %v1579 = vshrl.u32 %v1578, 7
    %v1580 = vsub.s32 %v1577, %v1579
    %v1581 = vrot.slane %v1426, %v1580
    %vm1582 = vcmask 326912
    %v1583 = vsel %vm1582, %v1581, %v1576
    %v1584 = vadd.s32 %v1551, 4294967256
    %v1585 = vlaneseq
    %v1586 = vshrl.u32 %v1585, 7
    %v1587 = vsub.s32 %v1584, %v1586
    %v1588 = vrot.slane %v1427, %v1587
    %vm1589 = vcmask 392512
    %v1590 = vsel %vm1589, %v1588, %v1583
    %v1591 = vadd.s32 %v1551, 4294967248
    %v1592 = vlaneseq
    %v1593 = vshrl.u32 %v1592, 7
    %v1594 = vsub.s32 %v1591, %v1593
    %v1595 = vrot.slane %v1428, %v1594
    %vm1596 = vcmask 458112
    %v1597 = vsel %vm1596, %v1595, %v1590
    %v1598 = vadd.s32 %v1551, 4294967240
    %v1599 = vlaneseq
    %v1600 = vshrl.u32 %v1599, 7
    %v1601 = vsub.s32 %v1598, %v1600
    %v1602 = vrot.slane %v1429, %v1601
    %vm1603 = vcmask 523712
    %v1604 = vsel %vm1603, %v1602, %v1597
    %v1605 = vadd.s32 %v1551, 4294967232
    %v1606 = vlaneseq
    %v1607 = vshrl.u32 %v1606, 7
    %v1608 = vsub.s32 %v1605, %v1607
    %v1609 = vrot.slane %v1430, %v1608
    %vm1610 = vcmask 589312
    %v1611 = vsel %vm1610, %v1609, %v1604
    %v1612 = vadd.s32 %v1551, 4294967224
    %v1613 = vlaneseq
    %v1614 = vshrl.u32 %v1613, 7
    %v1615 = vsub.s32 %v1612, %v1614
    %v1616 = vrot.slane %v1431, %v1615
    %vm1617 = vcmask 654912
    %v1618 = vsel %vm1617, %v1616, %v1611
    %v1619 = vadd.s32 %v1551, 4294967216
    %v1620 = vlaneseq
    %v1621 = vshrl.u32 %v1620, 7
    %v1622 = vsub.s32 %v1619, %v1621
    %v1623 = vrot.slane %v1432, %v1622
    %vm1624 = vcmask 720512
    %v1625 = vsel %vm1624, %v1623, %v1618
    %v1626 = vadd.s32 %v1551, 4294967208
    %v1627 = vlaneseq
    %v1628 = vshrl.u32 %v1627, 7
    %v1629 = vsub.s32 %v1626, %v1628
    %v1630 = vrot.slane %v1433, %v1629
    %vm1631 = vcmask 786112
    %v1632 = vsel %vm1631, %v1630, %v1625
    %v1633 = vadd.s32 %v1551, 4294967200
    %v1634 = vlaneseq
    %v1635 = vshrl.u32 %v1634, 7
    %v1636 = vsub.s32 %v1633, %v1635
    %v1637 = vrot.slane %v1434, %v1636
    %vm1638 = vcmask 851712
    %v1639 = vsel %vm1638, %v1637, %v1632
    %v1640 = vadd.s32 %v1551, 4294967192
    %v1641 = vlaneseq
    %v1642 = vshrl.u32 %v1641, 7
    %v1643 = vsub.s32 %v1640, %v1642
    %v1644 = vrot.slane %v1435, %v1643
    %vm1645 = vcmask 917312
    %v1646 = vsel %vm1645, %v1644, %v1639
    %v1647 = vadd.s32 %v1551, 4294967184
    %v1648 = vlaneseq
    %v1649 = vshrl.u32 %v1648, 7
    %v1650 = vsub.s32 %v1647, %v1649
    %v1651 = vrot.slane %v1436, %v1650
    %vm1652 = vcmask 982912
    %v1653 = vsel %vm1652, %v1651, %v1646
    %v1654 = vadd.s32 %v1551, 4294967176
    %v1655 = vlaneseq
    %v1656 = vshrl.u32 %v1655, 7
    %v1657 = vsub.s32 %v1654, %v1656
    %v1658 = vrot.slane %v1437, %v1657
    %vm1659 = vcmask 1048512
    %v1660 = vsel %vm1659, %v1658, %v1653
    %v1661 = vlaneseq
    %v1662 = vshrl.u32 %v1661, 7
    %v1663 = vsub.s32 %v1551, %v1662
    %v1664 = vrot.slane %v1438, %v1663
    %v1665 = vlaneseq
    %v1666 = vshrl.u32 %v1665, 7
    %v1667 = vsub.s32 %v1556, %v1666
    %v1668 = vrot.slane %v1439, %v1667
    %v1669 = vsel %vm1561, %v1668, %v1664
    %v1670 = vlaneseq
    %v1671 = vshrl.u32 %v1670, 7
    %v1672 = vsub.s32 %v1563, %v1671
    %v1673 = vrot.slane %v1440, %v1672
    %v1674 = vsel %vm1568, %v1673, %v1669
    %v1675 = vlaneseq
    %v1676 = vshrl.u32 %v1675, 7
    %v1677 = vsub.s32 %v1570, %v1676
    %v1678 = vrot.slane %v1441, %v1677
    %v1679 = vsel %vm1575, %v1678, %v1674
    %v1680 = vlaneseq
    %v1681 = vshrl.u32 %v1680, 7
    %v1682 = vsub.s32 %v1577, %v1681
    %v1683 = vrot.slane %v1442, %v1682
    %v1684 = vsel %vm1582, %v1683, %v1679
    %v1685 = vlaneseq
    %v1686 = vshrl.u32 %v1685, 7
    %v1687 = vsub.s32 %v1584, %v1686
    %v1688 = vrot.slane %v1443, %v1687
    %v1689 = vsel %vm1589, %v1688, %v1684
    %v1690 = vlaneseq
    %v1691 = vshrl.u32 %v1690, 7
    %v1692 = vsub.s32 %v1591, %v1691
    %v1693 = vrot.slane %v1444, %v1692
    %v1694 = vsel %vm1596, %v1693, %v1689
    %v1695 = vlaneseq
    %v1696 = vshrl.u32 %v1695, 7
    %v1697 = vsub.s32 %v1598, %v1696
    %v1698 = vrot.slane %v1445, %v1697
    %v1699 = vsel %vm1603, %v1698, %v1694
    %v1700 = vlaneseq
    %v1701 = vshrl.u32 %v1700, 7
    %v1702 = vsub.s32 %v1605, %v1701
    %v1703 = vrot.slane %v1446, %v1702
    %v1704 = vsel %vm1610, %v1703, %v1699
    %v1705 = vlaneseq
    %v1706 = vshrl.u32 %v1705, 7
    %v1707 = vsub.s32 %v1612, %v1706
    %v1708 = vrot.slane %v1447, %v1707
    %v1709 = vsel %vm1617, %v1708, %v1704
    %v1710 = vlaneseq
    %v1711 = vshrl.u32 %v1710, 7
    %v1712 = vsub.s32 %v1619, %v1711
    %v1713 = vrot.slane %v1448, %v1712
    %v1714 = vsel %vm1624, %v1713, %v1709
    %v1715 = vlaneseq
    %v1716 = vshrl.u32 %v1715, 7
    %v1717 = vsub.s32 %v1626, %v1716
    %v1718 = vrot.slane %v1449, %v1717
    %v1719 = vsel %vm1631, %v1718, %v1714
    %v1720 = vlaneseq
    %v1721 = vshrl.u32 %v1720, 7
    %v1722 = vsub.s32 %v1633, %v1721
    %v1723 = vrot.slane %v1450, %v1722
    %v1724 = vsel %vm1638, %v1723, %v1719
    %v1725 = vlaneseq
    %v1726 = vshrl.u32 %v1725, 7
    %v1727 = vsub.s32 %v1640, %v1726
    %v1728 = vrot.slane %v1451, %v1727
    %v1729 = vsel %vm1645, %v1728, %v1724
    %v1730 = vlaneseq
    %v1731 = vshrl.u32 %v1730, 7
    %v1732 = vsub.s32 %v1647, %v1731
    %v1733 = vrot.slane %v1452, %v1732
    %v1734 = vsel %vm1652, %v1733, %v1729
    %v1735 = vlaneseq
    %v1736 = vshrl.u32 %v1735, 7
    %v1737 = vsub.s32 %v1654, %v1736
    %v1738 = vrot.slane %v1453, %v1737
    %v1739 = vsel %vm1659, %v1738, %v1734
    %v1740 = vlaneseq
    %v1741 = vshrl.u32 %v1740, 7
    %v1742 = vsub.s32 %v1551, %v1741
    %v1743 = vrot.slane %v1454, %v1742
    %v1744 = vlaneseq
    %v1745 = vshrl.u32 %v1744, 7
    %v1746 = vsub.s32 %v1556, %v1745
    %v1747 = vrot.slane %v1455, %v1746
    %v1748 = vsel %vm1561, %v1747, %v1743
    %v1749 = vlaneseq
    %v1750 = vshrl.u32 %v1749, 7
    %v1751 = vsub.s32 %v1563, %v1750
    %v1752 = vrot.slane %v1456, %v1751
    %v1753 = vsel %vm1568, %v1752, %v1748
    %v1754 = vlaneseq
    %v1755 = vshrl.u32 %v1754, 7
    %v1756 = vsub.s32 %v1570, %v1755
    %v1757 = vrot.slane %v1457, %v1756
    %v1758 = vsel %vm1575, %v1757, %v1753
    %v1759 = vlaneseq
    %v1760 = vshrl.u32 %v1759, 7
    %v1761 = vsub.s32 %v1577, %v1760
    %v1762 = vrot.slane %v1458, %v1761
    %v1763 = vsel %vm1582, %v1762, %v1758
    %v1764 = vlaneseq
    %v1765 = vshrl.u32 %v1764, 7
    %v1766 = vsub.s32 %v1584, %v1765
    %v1767 = vrot.slane %v1459, %v1766
    %v1768 = vsel %vm1589, %v1767, %v1763
    %v1769 = vlaneseq
    %v1770 = vshrl.u32 %v1769, 7
    %v1771 = vsub.s32 %v1591, %v1770
    %v1772 = vrot.slane %v1460, %v1771
    %v1773 = vsel %vm1596, %v1772, %v1768
    %v1774 = vlaneseq
    %v1775 = vshrl.u32 %v1774, 7
    %v1776 = vsub.s32 %v1598, %v1775
    %v1777 = vrot.slane %v1461, %v1776
    %v1778 = vsel %vm1603, %v1777, %v1773
    %v1779 = vlaneseq
    %v1780 = vshrl.u32 %v1779, 7
    %v1781 = vsub.s32 %v1605, %v1780
    %v1782 = vrot.slane %v1462, %v1781
    %v1783 = vsel %vm1610, %v1782, %v1778
    %v1784 = vlaneseq
    %v1785 = vshrl.u32 %v1784, 7
    %v1786 = vsub.s32 %v1612, %v1785
    %v1787 = vrot.slane %v1463, %v1786
    %v1788 = vsel %vm1617, %v1787, %v1783
    %v1789 = vlaneseq
    %v1790 = vshrl.u32 %v1789, 7
    %v1791 = vsub.s32 %v1619, %v1790
    %v1792 = vrot.slane %v1464, %v1791
    %v1793 = vsel %vm1624, %v1792, %v1788
    %v1794 = vlaneseq
    %v1795 = vshrl.u32 %v1794, 7
    %v1796 = vsub.s32 %v1626, %v1795
    %v1797 = vrot.slane %v1465, %v1796
    %v1798 = vsel %vm1631, %v1797, %v1793
    %v1799 = vlaneseq
    %v1800 = vshrl.u32 %v1799, 7
    %v1801 = vsub.s32 %v1633, %v1800
    %v1802 = vrot.slane %v1466, %v1801
    %v1803 = vsel %vm1638, %v1802, %v1798
    %v1804 = vlaneseq
    %v1805 = vshrl.u32 %v1804, 7
    %v1806 = vsub.s32 %v1640, %v1805
    %v1807 = vrot.slane %v1467, %v1806
    %v1808 = vsel %vm1645, %v1807, %v1803
    %v1809 = vlaneseq
    %v1810 = vshrl.u32 %v1809, 7
    %v1811 = vsub.s32 %v1647, %v1810
    %v1812 = vrot.slane %v1468, %v1811
    %v1813 = vsel %vm1652, %v1812, %v1808
    %v1814 = vlaneseq
    %v1815 = vshrl.u32 %v1814, 7
    %v1816 = vsub.s32 %v1654, %v1815
    %v1817 = vrot.slane %v1469, %v1816
    %v1818 = vsel %vm1659, %v1817, %v1813
    %v1819 = vlaneseq
    %v1820 = vshrl.u32 %v1819, 7
    %v1821 = vsub.s32 %v1551, %v1820
    %v1822 = vrot.slane %v1470, %v1821
    %v1823 = vlaneseq
    %v1824 = vshrl.u32 %v1823, 7
    %v1825 = vsub.s32 %v1556, %v1824
    %v1826 = vrot.slane %v1471, %v1825
    %v1827 = vsel %vm1561, %v1826, %v1822
    %v1828 = vlaneseq
    %v1829 = vshrl.u32 %v1828, 7
    %v1830 = vsub.s32 %v1563, %v1829
    %v1831 = vrot.slane %v1472, %v1830
    %v1832 = vsel %vm1568, %v1831, %v1827
    %v1833 = vlaneseq
    %v1834 = vshrl.u32 %v1833, 7
    %v1835 = vsub.s32 %v1570, %v1834
    %v1836 = vrot.slane %v1473, %v1835
    %v1837 = vsel %vm1575, %v1836, %v1832
    %v1838 = vlaneseq
    %v1839 = vshrl.u32 %v1838, 7
    %v1840 = vsub.s32 %v1577, %v1839
    %v1841 = vrot.slane %v1474, %v1840
    %v1842 = vsel %vm1582, %v1841, %v1837
    %v1843 = vlaneseq
    %v1844 = vshrl.u32 %v1843, 7
    %v1845 = vsub.s32 %v1584, %v1844
    %v1846 = vrot.slane %v1475, %v1845
    %v1847 = vsel %vm1589, %v1846, %v1842
    %v1848 = vlaneseq
    %v1849 = vshrl.u32 %v1848, 7
    %v1850 = vsub.s32 %v1591, %v1849
    %v1851 = vrot.slane %v1476, %v1850
    %v1852 = vsel %vm1596, %v1851, %v1847
    %v1853 = vlaneseq
    %v1854 = vshrl.u32 %v1853, 7
    %v1855 = vsub.s32 %v1598, %v1854
    %v1856 = vrot.slane %v1477, %v1855
    %v1857 = vsel %vm1603, %v1856, %v1852
    %v1858 = vlaneseq
    %v1859 = vshrl.u32 %v1858, 7
    %v1860 = vsub.s32 %v1605, %v1859
    %v1861 = vrot.slane %v1478, %v1860
    %v1862 = vsel %vm1610, %v1861, %v1857
    %v1863 = vlaneseq
    %v1864 = vshrl.u32 %v1863, 7
    %v1865 = vsub.s32 %v1612, %v1864
    %v1866 = vrot.slane %v1479, %v1865
    %v1867 = vsel %vm1617, %v1866, %v1862
    %v1868 = vlaneseq
    %v1869 = vshrl.u32 %v1868, 7
    %v1870 = vsub.s32 %v1619, %v1869
    %v1871 = vrot.slane %v1480, %v1870
    %v1872 = vsel %vm1624, %v1871, %v1867
    %v1873 = vlaneseq
    %v1874 = vshrl.u32 %v1873, 7
    %v1875 = vsub.s32 %v1626, %v1874
    %v1876 = vrot.slane %v1481, %v1875
    %v1877 = vsel %vm1631, %v1876, %v1872
    %v1878 = vlaneseq
    %v1879 = vshrl.u32 %v1878, 7
    %v1880 = vsub.s32 %v1633, %v1879
    %v1881 = vrot.slane %v1482, %v1880
    %v1882 = vsel %vm1638, %v1881, %v1877
    %v1883 = vlaneseq
    %v1884 = vshrl.u32 %v1883, 7
    %v1885 = vsub.s32 %v1640, %v1884
    %v1886 = vrot.slane %v1483, %v1885
    %v1887 = vsel %vm1645, %v1886, %v1882
    %v1888 = vlaneseq
    %v1889 = vshrl.u32 %v1888, 7
    %v1890 = vsub.s32 %v1647, %v1889
    %v1891 = vrot.slane %v1484, %v1890
    %v1892 = vsel %vm1652, %v1891, %v1887
    %v1893 = vlaneseq
    %v1894 = vshrl.u32 %v1893, 7
    %v1895 = vsub.s32 %v1654, %v1894
    %v1896 = vrot.slane %v1485, %v1895
    %v1897 = vsel %vm1659, %v1896, %v1892
    %v1898 = vlaneseq
    %v1899 = vshrl.u32 %v1898, 7
    %v1900 = vsub.s32 %v1551, %v1899
    %v1901 = vrot.slane %v1486, %v1900
    %v1902 = vlaneseq
    %v1903 = vshrl.u32 %v1902, 7
    %v1904 = vsub.s32 %v1556, %v1903
    %v1905 = vrot.slane %v1487, %v1904
    %v1906 = vsel %vm1561, %v1905, %v1901
    %v1907 = vlaneseq
    %v1908 = vshrl.u32 %v1907, 7
    %v1909 = vsub.s32 %v1563, %v1908
    %v1910 = vrot.slane %v1488, %v1909
    %v1911 = vsel %vm1568, %v1910, %v1906
    %v1912 = vlaneseq
    %v1913 = vshrl.u32 %v1912, 7
    %v1914 = vsub.s32 %v1570, %v1913
    %v1915 = vrot.slane %v1489, %v1914
    %v1916 = vsel %vm1575, %v1915, %v1911
    %v1917 = vlaneseq
    %v1918 = vshrl.u32 %v1917, 7
    %v1919 = vsub.s32 %v1577, %v1918
    %v1920 = vrot.slane %v1490, %v1919
    %v1921 = vsel %vm1582, %v1920, %v1916
    %v1922 = vlaneseq
    %v1923 = vshrl.u32 %v1922, 7
    %v1924 = vsub.s32 %v1584, %v1923
    %v1925 = vrot.slane %v1491, %v1924
    %v1926 = vsel %vm1589, %v1925, %v1921
    %v1927 = vlaneseq
    %v1928 = vshrl.u32 %v1927, 7
    %v1929 = vsub.s32 %v1591, %v1928
    %v1930 = vrot.slane %v1492, %v1929
    %v1931 = vsel %vm1596, %v1930, %v1926
    %v1932 = vlaneseq
    %v1933 = vshrl.u32 %v1932, 7
    %v1934 = vsub.s32 %v1598, %v1933
    %v1935 = vrot.slane %v1493, %v1934
    %v1936 = vsel %vm1603, %v1935, %v1931
    %v1937 = vlaneseq
    %v1938 = vshrl.u32 %v1937, 7
    %v1939 = vsub.s32 %v1605, %v1938
    %v1940 = vrot.slane %v1494, %v1939
    %v1941 = vsel %vm1610, %v1940, %v1936
    %v1942 = vlaneseq
    %v1943 = vshrl.u32 %v1942, 7
    %v1944 = vsub.s32 %v1612, %v1943
    %v1945 = vrot.slane %v1495, %v1944
    %v1946 = vsel %vm1617, %v1945, %v1941
    %v1947 = vlaneseq
    %v1948 = vshrl.u32 %v1947, 7
    %v1949 = vsub.s32 %v1619, %v1948
    %v1950 = vrot.slane %v1496, %v1949
    %v1951 = vsel %vm1624, %v1950, %v1946
    %v1952 = vlaneseq
    %v1953 = vshrl.u32 %v1952, 7
    %v1954 = vsub.s32 %v1626, %v1953
    %v1955 = vrot.slane %v1497, %v1954
    %v1956 = vsel %vm1631, %v1955, %v1951
    %v1957 = vlaneseq
    %v1958 = vshrl.u32 %v1957, 7
    %v1959 = vsub.s32 %v1633, %v1958
    %v1960 = vrot.slane %v1498, %v1959
    %v1961 = vsel %vm1638, %v1960, %v1956
    %v1962 = vlaneseq
    %v1963 = vshrl.u32 %v1962, 7
    %v1964 = vsub.s32 %v1640, %v1963
    %v1965 = vrot.slane %v1499, %v1964
    %v1966 = vsel %vm1645, %v1965, %v1961
    %v1967 = vlaneseq
    %v1968 = vshrl.u32 %v1967, 7
    %v1969 = vsub.s32 %v1647, %v1968
    %v1970 = vrot.slane %v1500, %v1969
    %v1971 = vsel %vm1652, %v1970, %v1966
    %v1972 = vlaneseq
    %v1973 = vshrl.u32 %v1972, 7
    %v1974 = vsub.s32 %v1654, %v1973
    %v1975 = vrot.slane %v1501, %v1974
    %v1976 = vsel %vm1659, %v1975, %v1971
    %v1977 = vlaneseq
    %v1978 = vshrl.u32 %v1977, 7
    %v1979 = vsub.s32 %v1551, %v1978
    %v1980 = vrot.slane %v1502, %v1979
    %v1981 = vlaneseq
    %v1982 = vshrl.u32 %v1981, 7
    %v1983 = vsub.s32 %v1556, %v1982
    %v1984 = vrot.slane %v1503, %v1983
    %v1985 = vsel %vm1561, %v1984, %v1980
    %v1986 = vlaneseq
    %v1987 = vshrl.u32 %v1986, 7
    %v1988 = vsub.s32 %v1563, %v1987
    %v1989 = vrot.slane %v1504, %v1988
    %v1990 = vsel %vm1568, %v1989, %v1985
    %v1991 = vlaneseq
    %v1992 = vshrl.u32 %v1991, 7
    %v1993 = vsub.s32 %v1570, %v1992
    %v1994 = vrot.slane %v1505, %v1993
    %v1995 = vsel %vm1575, %v1994, %v1990
    %v1996 = vlaneseq
    %v1997 = vshrl.u32 %v1996, 7
    %v1998 = vsub.s32 %v1577, %v1997
    %v1999 = vrot.slane %v1506, %v1998
    %v2000 = vsel %vm1582, %v1999, %v1995
    %v2001 = vlaneseq
    %v2002 = vshrl.u32 %v2001, 7
    %v2003 = vsub.s32 %v1584, %v2002
    %v2004 = vrot.slane %v1507, %v2003
    %v2005 = vsel %vm1589, %v2004, %v2000
    %v2006 = vlaneseq
    %v2007 = vshrl.u32 %v2006, 7
    %v2008 = vsub.s32 %v1591, %v2007
    %v2009 = vrot.slane %v1508, %v2008
    %v2010 = vsel %vm1596, %v2009, %v2005
    %v2011 = vlaneseq
    %v2012 = vshrl.u32 %v2011, 7
    %v2013 = vsub.s32 %v1598, %v2012
    %v2014 = vrot.slane %v1509, %v2013
    %v2015 = vsel %vm1603, %v2014, %v2010
    %v2016 = vlaneseq
    %v2017 = vshrl.u32 %v2016, 7
    %v2018 = vsub.s32 %v1605, %v2017
    %v2019 = vrot.slane %v1510, %v2018
    %v2020 = vsel %vm1610, %v2019, %v2015
    %v2021 = vlaneseq
    %v2022 = vshrl.u32 %v2021, 7
    %v2023 = vsub.s32 %v1612, %v2022
    %v2024 = vrot.slane %v1511, %v2023
    %v2025 = vsel %vm1617, %v2024, %v2020
    %v2026 = vlaneseq
    %v2027 = vshrl.u32 %v2026, 7
    %v2028 = vsub.s32 %v1619, %v2027
    %v2029 = vrot.slane %v1512, %v2028
    %v2030 = vsel %vm1624, %v2029, %v2025
    %v2031 = vlaneseq
    %v2032 = vshrl.u32 %v2031, 7
    %v2033 = vsub.s32 %v1626, %v2032
    %v2034 = vrot.slane %v1513, %v2033
    %v2035 = vsel %vm1631, %v2034, %v2030
    %v2036 = vlaneseq
    %v2037 = vshrl.u32 %v2036, 7
    %v2038 = vsub.s32 %v1633, %v2037
    %v2039 = vrot.slane %v1514, %v2038
    %v2040 = vsel %vm1638, %v2039, %v2035
    %v2041 = vlaneseq
    %v2042 = vshrl.u32 %v2041, 7
    %v2043 = vsub.s32 %v1640, %v2042
    %v2044 = vrot.slane %v1515, %v2043
    %v2045 = vsel %vm1645, %v2044, %v2040
    %v2046 = vlaneseq
    %v2047 = vshrl.u32 %v2046, 7
    %v2048 = vsub.s32 %v1647, %v2047
    %v2049 = vrot.slane %v1516, %v2048
    %v2050 = vsel %vm1652, %v2049, %v2045
    %v2051 = vlaneseq
    %v2052 = vshrl.u32 %v2051, 7
    %v2053 = vsub.s32 %v1654, %v2052
    %v2054 = vrot.slane %v1517, %v2053
    %v2055 = vsel %vm1659, %v2054, %v2050
    %v2056 = vlaneseq
    %v2057 = vshrl.u32 %v2056, 7
    %v2058 = vsub.s32 %v1551, %v2057
    %v2059 = vrot.slane %v1518, %v2058
    %v2060 = vlaneseq
    %v2061 = vshrl.u32 %v2060, 7
    %v2062 = vsub.s32 %v1556, %v2061
    %v2063 = vrot.slane %v1519, %v2062
    %v2064 = vsel %vm1561, %v2063, %v2059
    %v2065 = vlaneseq
    %v2066 = vshrl.u32 %v2065, 7
    %v2067 = vsub.s32 %v1563, %v2066
    %v2068 = vrot.slane %v1520, %v2067
    %v2069 = vsel %vm1568, %v2068, %v2064
    %v2070 = vlaneseq
    %v2071 = vshrl.u32 %v2070, 7
    %v2072 = vsub.s32 %v1570, %v2071
    %v2073 = vrot.slane %v1521, %v2072
    %v2074 = vsel %vm1575, %v2073, %v2069
    %v2075 = vlaneseq
    %v2076 = vshrl.u32 %v2075, 7
    %v2077 = vsub.s32 %v1577, %v2076
    %v2078 = vrot.slane %v1522, %v2077
    %v2079 = vsel %vm1582, %v2078, %v2074
    %v2080 = vlaneseq
    %v2081 = vshrl.u32 %v2080, 7
    %v2082 = vsub.s32 %v1584, %v2081
    %v2083 = vrot.slane %v1523, %v2082
    %v2084 = vsel %vm1589, %v2083, %v2079
    %v2085 = vlaneseq
    %v2086 = vshrl.u32 %v2085, 7
    %v2087 = vsub.s32 %v1591, %v2086
    %v2088 = vrot.slane %v1524, %v2087
    %v2089 = vsel %vm1596, %v2088, %v2084
    %v2090 = vlaneseq
    %v2091 = vshrl.u32 %v2090, 7
    %v2092 = vsub.s32 %v1598, %v2091
    %v2093 = vrot.slane %v1525, %v2092
    %v2094 = vsel %vm1603, %v2093, %v2089
    %v2095 = vlaneseq
    %v2096 = vshrl.u32 %v2095, 7
    %v2097 = vsub.s32 %v1605, %v2096
    %v2098 = vrot.slane %v1526, %v2097
    %v2099 = vsel %vm1610, %v2098, %v2094
    %v2100 = vlaneseq
    %v2101 = vshrl.u32 %v2100, 7
    %v2102 = vsub.s32 %v1612, %v2101
    %v2103 = vrot.slane %v1527, %v2102
    %v2104 = vsel %vm1617, %v2103, %v2099
    %v2105 = vlaneseq
    %v2106 = vshrl.u32 %v2105, 7
    %v2107 = vsub.s32 %v1619, %v2106
    %v2108 = vrot.slane %v1528, %v2107
    %v2109 = vsel %vm1624, %v2108, %v2104
    %v2110 = vlaneseq
    %v2111 = vshrl.u32 %v2110, 7
    %v2112 = vsub.s32 %v1626, %v2111
    %v2113 = vrot.slane %v1529, %v2112
    %v2114 = vsel %vm1631, %v2113, %v2109
    %v2115 = vlaneseq
    %v2116 = vshrl.u32 %v2115, 7
    %v2117 = vsub.s32 %v1633, %v2116
    %v2118 = vrot.slane %v1530, %v2117
    %v2119 = vsel %vm1638, %v2118, %v2114
    %v2120 = vlaneseq
    %v2121 = vshrl.u32 %v2120, 7
    %v2122 = vsub.s32 %v1640, %v2121
    %v2123 = vrot.slane %v1531, %v2122
    %v2124 = vsel %vm1645, %v2123, %v2119
    %v2125 = vlaneseq
    %v2126 = vshrl.u32 %v2125, 7
    %v2127 = vsub.s32 %v1647, %v2126
    %v2128 = vrot.slane %v1532, %v2127
    %v2129 = vsel %vm1652, %v2128, %v2124
    %v2130 = vlaneseq
    %v2131 = vshrl.u32 %v2130, 7
    %v2132 = vsub.s32 %v1654, %v2131
    %v2133 = vrot.slane %v1533, %v2132
    %v2134 = vsel %vm1659, %v2133, %v2129
    %v2135 = vlaneseq
    %v2136 = vshrl.u32 %v2135, 7
    %v2137 = vsub.s32 %v1551, %v2136
    %v2138 = vrot.slane %v1534, %v2137
    %v2139 = vlaneseq
    %v2140 = vshrl.u32 %v2139, 7
    %v2141 = vsub.s32 %v1556, %v2140
    %v2142 = vrot.slane %v1535, %v2141
    %v2143 = vsel %vm1561, %v2142, %v2138
    %v2144 = vlaneseq
    %v2145 = vshrl.u32 %v2144, 7
    %v2146 = vsub.s32 %v1563, %v2145
    %v2147 = vrot.slane %v1536, %v2146
    %v2148 = vsel %vm1568, %v2147, %v2143
    %v2149 = vlaneseq
    %v2150 = vshrl.u32 %v2149, 7
    %v2151 = vsub.s32 %v1570, %v2150
    %v2152 = vrot.slane %v1537, %v2151
    %v2153 = vsel %vm1575, %v2152, %v2148
    %v2154 = vlaneseq
    %v2155 = vshrl.u32 %v2154, 7
    %v2156 = vsub.s32 %v1577, %v2155
    %v2157 = vrot.slane %v1538, %v2156
    %v2158 = vsel %vm1582, %v2157, %v2153
    %v2159 = vlaneseq
    %v2160 = vshrl.u32 %v2159, 7
    %v2161 = vsub.s32 %v1584, %v2160
    %v2162 = vrot.slane %v1539, %v2161
    %v2163 = vsel %vm1589, %v2162, %v2158
    %v2164 = vlaneseq
    %v2165 = vshrl.u32 %v2164, 7
    %v2166 = vsub.s32 %v1591, %v2165
    %v2167 = vrot.slane %v1540, %v2166
    %v2168 = vsel %vm1596, %v2167, %v2163
    %v2169 = vlaneseq
    %v2170 = vshrl.u32 %v2169, 7
    %v2171 = vsub.s32 %v1598, %v2170
    %v2172 = vrot.slane %v1541, %v2171
    %v2173 = vsel %vm1603, %v2172, %v2168
    %v2174 = vlaneseq
    %v2175 = vshrl.u32 %v2174, 7
    %v2176 = vsub.s32 %v1605, %v2175
    %v2177 = vrot.slane %v1542, %v2176
    %v2178 = vsel %vm1610, %v2177, %v2173
    %v2179 = vlaneseq
    %v2180 = vshrl.u32 %v2179, 7
    %v2181 = vsub.s32 %v1612, %v2180
    %v2182 = vrot.slane %v1543, %v2181
    %v2183 = vsel %vm1617, %v2182, %v2178
    %v2184 = vlaneseq
    %v2185 = vshrl.u32 %v2184, 7
    %v2186 = vsub.s32 %v1619, %v2185
    %v2187 = vrot.slane %v1544, %v2186
    %v2188 = vsel %vm1624, %v2187, %v2183
    %v2189 = vlaneseq
    %v2190 = vshrl.u32 %v2189, 7
    %v2191 = vsub.s32 %v1626, %v2190
    %v2192 = vrot.slane %v1545, %v2191
    %v2193 = vsel %vm1631, %v2192, %v2188
    %v2194 = vlaneseq
    %v2195 = vshrl.u32 %v2194, 7
    %v2196 = vsub.s32 %v1633, %v2195
    %v2197 = vrot.slane %v1546, %v2196
    %v2198 = vsel %vm1638, %v2197, %v2193
    %v2199 = vlaneseq
    %v2200 = vshrl.u32 %v2199, 7
    %v2201 = vsub.s32 %v1640, %v2200
    %v2202 = vrot.slane %v1547, %v2201
    %v2203 = vsel %vm1645, %v2202, %v2198
    %v2204 = vlaneseq
    %v2205 = vshrl.u32 %v2204, 7
    %v2206 = vsub.s32 %v1647, %v2205
    %v2207 = vrot.slane %v1548, %v2206
    %v2208 = vsel %vm1652, %v2207, %v2203
    %v2209 = vlaneseq
    %v2210 = vshrl.u32 %v2209, 7
    %v2211 = vsub.s32 %v1654, %v2210
    %v2212 = vrot.slane %v1549, %v2211
    %v2213 = vsel %vm1659, %v2212, %v2208
    %vm2214 = vcmask 1041409
    %v2215 = vsel %vm2214, %v1739, %v1660
    %vm2216 = vcmask 1042434
    %v2217 = vsel %vm2216, %v1818, %v2215
    %vm2218 = vcmask 1043459
    %v2219 = vsel %vm2218, %v1897, %v2217
    %vm2220 = vcmask 1044484
    %v2221 = vsel %vm2220, %v1976, %v2219
    %vm2222 = vcmask 1045509
    %v2223 = vsel %vm2222, %v2055, %v2221
    %vm2224 = vcmask 1046534
    %v2225 = vsel %vm2224, %v2134, %v2223
    %vm2226 = vcmask 1047559
    %v2227 = vsel %vm2226, %v2213, %v2225
    %v2228 = vpack.c.b16 %v2227, %v2227
    %v2294 = vunpack.c.l.b16 %v1252
    %v2295 = vunpack.c.h.b16 %v1252
    %v2296 = vunpack.c.l.b16 %v1253
    %v2297 = vunpack.c.h.b16 %v1253
    %v2298 = vunpack.c.l.b16 %v1254
    %v2299 = vunpack.c.h.b16 %v1254
    %v2300 = vunpack.c.l.b16 %v1255
    %v2301 = vunpack.c.h.b16 %v1255
    %v2302 = vunpack.c.l.b16 %v1256
    %v2303 = vunpack.c.h.b16 %v1256
    %v2304 = vunpack.c.l.b16 %v1257
    %v2305 = vunpack.c.h.b16 %v1257
    %v2306 = vunpack.c.l.b16 %v1258
    %v2307 = vunpack.c.h.b16 %v1258
    %v2308 = vunpack.c.l.b16 %v1259
    %v2309 = vunpack.c.h.b16 %v1259
    %v2310 = vunpack.c.l.b16 %v1260
    %v2311 = vunpack.c.h.b16 %v1260
    %v2312 = vunpack.c.l.b16 %v1261
    %v2313 = vunpack.c.h.b16 %v1261
    %v2314 = vunpack.c.l.b16 %v1262
    %v2315 = vunpack.c.h.b16 %v1262
    %v2316 = vunpack.c.l.b16 %v1263
    %v2317 = vunpack.c.h.b16 %v1263
    %v2318 = vunpack.c.l.b16 %v1264
    %v2319 = vunpack.c.h.b16 %v1264
    %v2320 = vunpack.c.l.b16 %v1265
    %v2321 = vunpack.c.h.b16 %v1265
    %v2322 = vunpack.c.l.b16 %v1266
    %v2323 = vunpack.c.h.b16 %v1266
    %v2324 = vunpack.c.l.b16 %v1267
    %v2325 = vunpack.c.h.b16 %v1267
    %v2326 = vunpack.c.l.b16 %v1268
    %v2327 = vunpack.c.h.b16 %v1268
    %v2328 = vunpack.c.l.b16 %v1269
    %v2329 = vunpack.c.h.b16 %v1269
    %v2330 = vunpack.c.l.b16 %v1270
    %v2331 = vunpack.c.h.b16 %v1270
    %v2332 = vunpack.c.l.b16 %v1271
    %v2333 = vunpack.c.h.b16 %v1271
    %v2334 = vunpack.c.l.b16 %v1272
    %v2335 = vunpack.c.h.b16 %v1272
    %v2336 = vunpack.c.l.b16 %v1273
    %v2337 = vunpack.c.h.b16 %v1273
    %v2338 = vunpack.c.l.b16 %v1274
    %v2339 = vunpack.c.h.b16 %v1274
    %v2340 = vunpack.c.l.b16 %v1275
    %v2341 = vunpack.c.h.b16 %v1275
    %v2342 = vunpack.c.l.b16 %v1276
    %v2343 = vunpack.c.h.b16 %v1276
    %v2344 = vunpack.c.l.b16 %v1277
    %v2345 = vunpack.c.h.b16 %v1277
    %v2346 = vunpack.c.l.b16 %v1278
    %v2347 = vunpack.c.h.b16 %v1278
    %v2348 = vunpack.c.l.b16 %v1279
    %v2349 = vunpack.c.h.b16 %v1279
    %v2350 = vunpack.c.l.b16 %v1280
    %v2351 = vunpack.c.h.b16 %v1280
    %v2352 = vunpack.c.l.b16 %v1281
    %v2353 = vunpack.c.h.b16 %v1281
    %v2354 = vunpack.c.l.b16 %v1282
    %v2355 = vunpack.c.h.b16 %v1282
    %v2356 = vunpack.c.l.b16 %v1283
    %v2357 = vunpack.c.h.b16 %v1283
    %v2358 = vunpack.c.l.b16 %v1284
    %v2359 = vunpack.c.h.b16 %v1284
    %v2360 = vunpack.c.l.b16 %v1285
    %v2361 = vunpack.c.h.b16 %v1285
    %v2362 = vunpack.c.l.b16 %v1286
    %v2363 = vunpack.c.h.b16 %v1286
    %v2364 = vunpack.c.l.b16 %v1287
    %v2365 = vunpack.c.h.b16 %v1287
    %v2366 = vunpack.c.l.b16 %v1288
    %v2367 = vunpack.c.h.b16 %v1288
    %v2368 = vunpack.c.l.b16 %v1289
    %v2369 = vunpack.c.h.b16 %v1289
    %v2370 = vunpack.c.l.b16 %v1290
    %v2371 = vunpack.c.h.b16 %v1290
    %v2372 = vunpack.c.l.b16 %v1291
    %v2373 = vunpack.c.h.b16 %v1291
    %v2374 = vunpack.c.l.b16 %v1292
    %v2375 = vunpack.c.h.b16 %v1292
    %v2376 = vunpack.c.l.b16 %v1293
    %v2377 = vunpack.c.h.b16 %v1293
    %v2378 = vunpack.c.l.b16 %v1294
    %v2379 = vunpack.c.h.b16 %v1294
    %v2380 = vunpack.c.l.b16 %v1295
    %v2381 = vunpack.c.h.b16 %v1295
    %v2382 = vunpack.c.l.b16 %v1296
    %v2383 = vunpack.c.h.b16 %v1296
    %v2384 = vunpack.c.l.b16 %v1297
    %v2385 = vunpack.c.h.b16 %v1297
    %v2386 = vunpack.c.l.b16 %v1298
    %v2387 = vunpack.c.h.b16 %v1298
    %v2388 = vunpack.c.l.b16 %v1299
    %v2389 = vunpack.c.h.b16 %v1299
    %v2390 = vunpack.c.l.b16 %v1300
    %v2391 = vunpack.c.h.b16 %v1300
    %v2392 = vunpack.c.l.b16 %v1301
    %v2393 = vunpack.c.h.b16 %v1301
    %v2394 = vunpack.c.l.b16 %v1302
    %v2395 = vunpack.c.h.b16 %v1302
    %v2396 = vunpack.c.l.b16 %v1303
    %v2397 = vunpack.c.h.b16 %v1303
    %v2398 = vunpack.c.l.b16 %v1304
    %v2399 = vunpack.c.h.b16 %v1304
    %v2400 = vunpack.c.l.b16 %v1305
    %v2401 = vunpack.c.h.b16 %v1305
    %v2402 = vunpack.c.l.b16 %v1306
    %v2403 = vunpack.c.h.b16 %v1306
    %v2404 = vunpack.c.l.b16 %v1307
    %v2405 = vunpack.c.h.b16 %v1307
    %v2406 = vunpack.c.l.b16 %v1308
    %v2407 = vunpack.c.h.b16 %v1308
    %v2408 = vunpack.c.l.b16 %v1309
    %v2409 = vunpack.c.h.b16 %v1309
    %v2410 = vunpack.c.l.b16 %v1310
    %v2411 = vunpack.c.h.b16 %v1310
    %v2412 = vunpack.c.l.b16 %v1311
    %v2413 = vunpack.c.h.b16 %v1311
    %v2414 = vunpack.c.l.b16 %v1312
    %v2415 = vunpack.c.h.b16 %v1312
    %v2416 = vunpack.c.l.b16 %v1313
    %v2417 = vunpack.c.h.b16 %v1313
    %v2418 = vunpack.c.l.b16 %v1314
    %v2419 = vunpack.c.h.b16 %v1314
    %v2420 = vunpack.c.l.b16 %v1315
    %v2421 = vunpack.c.h.b16 %v1315
    %v2422 = vpack.c.b16 %v2302, %v2294
    %v2423 = vpack.c.b16 %v2303, %v2295
    %v2424 = vpack.c.b16 %v2304, %v2296
    %v2425 = vpack.c.b16 %v2305, %v2297
    %v2426 = vpack.c.b16 %v2306, %v2298
    %v2427 = vpack.c.b16 %v2307, %v2299
    %v2428 = vpack.c.b16 %v2308, %v2300
    %v2429 = vpack.c.b16 %v2309, %v2301
    %v2430 = vpack.c.b16 %v2318, %v2310
    %v2431 = vpack.c.b16 %v2319, %v2311
    %v2432 = vpack.c.b16 %v2320, %v2312
    %v2433 = vpack.c.b16 %v2321, %v2313
    %v2434 = vpack.c.b16 %v2322, %v2314
    %v2435 = vpack.c.b16 %v2323, %v2315
    %v2436 = vpack.c.b16 %v2324, %v2316
    %v2437 = vpack.c.b16 %v2325, %v2317
    %v2438 = vpack.c.b16 %v2334, %v2326
    %v2439 = vpack.c.b16 %v2335, %v2327
    %v2440 = vpack.c.b16 %v2336, %v2328
    %v2441 = vpack.c.b16 %v2337, %v2329
    %v2442 = vpack.c.b16 %v2338, %v2330
    %v2443 = vpack.c.b16 %v2339, %v2331
    %v2444 = vpack.c.b16 %v2340, %v2332
    %v2445 = vpack.c.b16 %v2341, %v2333
    %v2446 = vpack.c.b16 %v2350, %v2342
    %v2447 = vpack.c.b16 %v2351, %v2343
    %v2448 = vpack.c.b16 %v2352, %v2344
    %v2449 = vpack.c.b16 %v2353, %v2345
    %v2450 = vpack.c.b16 %v2354, %v2346
    %v2451 = vpack.c.b16 %v2355, %v2347
    %v2452 = vpack.c.b16 %v2356, %v2348
    %v2453 = vpack.c.b16 %v2357, %v2349
    %v2454 = vpack.c.b16 %v2366, %v2358
    %v2455 = vpack.c.b16 %v2367, %v2359
    %v2456 = vpack.c.b16 %v2368, %v2360
    %v2457 = vpack.c.b16 %v2369, %v2361
    %v2458 = vpack.c.b16 %v2370, %v2362
    %v2459 = vpack.c.b16 %v2371, %v2363
    %v2460 = vpack.c.b16 %v2372, %v2364
    %v2461 = vpack.c.b16 %v2373, %v2365
    %v2462 = vpack.c.b16 %v2382, %v2374
    %v2463 = vpack.c.b16 %v2383, %v2375
    %v2464 = vpack.c.b16 %v2384, %v2376
    %v2465 = vpack.c.b16 %v2385, %v2377
    %v2466 = vpack.c.b16 %v2386, %v2378
    %v2467 = vpack.c.b16 %v2387, %v2379
    %v2468 = vpack.c.b16 %v2388, %v2380
    %v2469 = vpack.c.b16 %v2389, %v2381
    %v2470 = vpack.c.b16 %v2398, %v2390
    %v2471 = vpack.c.b16 %v2399, %v2391
    %v2472 = vpack.c.b16 %v2400, %v2392
    %v2473 = vpack.c.b16 %v2401, %v2393
    %v2474 = vpack.c.b16 %v2402, %v2394
    %v2475 = vpack.c.b16 %v2403, %v2395
    %v2476 = vpack.c.b16 %v2404, %v2396
    %v2477 = vpack.c.b16 %v2405, %v2397
    %v2478 = vpack.c.b16 %v2414, %v2406
    %v2479 = vpack.c.b16 %v2415, %v2407
    %v2480 = vpack.c.b16 %v2416, %v2408
    %v2481 = vpack.c.b16 %v2417, %v2409
    %v2482 = vpack.c.b16 %v2418, %v2410
    %v2483 = vpack.c.b16 %v2419, %v2411
    %v2484 = vpack.c.b16 %v2420, %v2412
    %v2485 = vpack.c.b16 %v2421, %v2413
    %2550 = vmatprep.subr.bf16.mxu0 %v2479
    %2551 = vmatpush1.bf16.msra.mxu0 %v2478
    %2552 = vmatprep.subr.bf16.mxu0 %v2471
    %2553 = vmatpush1.bf16.msra.mxu0 %v2470
    %2554 = vmatprep.subr.bf16.mxu0 %v2463
    %2555 = vmatpush1.bf16.msra.mxu0 %v2462
    %2556 = vmatprep.subr.bf16.mxu0 %v2455
    %2557 = vmatpush1.bf16.msra.mxu0 %v2454
    %2558 = vmatprep.subr.bf16.mxu0 %v2447
    %2559 = vmatpush1.bf16.msra.mxu0 %v2446
    %2560 = vmatprep.subr.bf16.mxu0 %v2439
    %2561 = vmatpush1.bf16.msra.mxu0 %v2438
    %2562 = vmatprep.subr.bf16.mxu0 %v2431
    %2563 = vmatpush1.bf16.msra.mxu0 %v2430
    %2564 = vmatprep.subr.bf16.mxu0 %v2423
    %2565 = vmatpush1.bf16.msra.mxu0 %v2422
    %2566 = vmatprep.subr.bf16.mxu0 0
    %2567 = vmatpush2.bf16.msra.mxu0 0
    %2568 = vmatprep.subr.bf16.mxu0 0
    %2569 = vmatpush2.bf16.msra.mxu0 0
    %2570 = vmatprep.subr.bf16.mxu0 0
    %2571 = vmatpush2.bf16.msra.mxu0 0
    %2572 = vmatprep.subr.bf16.mxu0 0
    %2573 = vmatpush2.bf16.msra.mxu0 0
    %2574 = vmatprep.subr.bf16.mxu0 0
    %2575 = vmatpush2.bf16.msra.mxu0 0
    %2576 = vmatprep.subr.bf16.mxu0 0
    %2577 = vmatpush2.bf16.msra.mxu0 0
    %2578 = vmatprep.subr.bf16.mxu0 0
    %2579 = vmatpush2.bf16.msra.mxu0 0
    %2580 = vmatprep.subr.bf16.mxu0 0
    %2581 = vmatpush2.bf16.msra.mxu0 0
    %2582 = vmatprep.mubr.bf16.mxu0 0
    %2583 = vmatmul.mubr.bf16.gmra.mxu0 %v2228
    %v2584 = vpop.f32.mrf.mxu0
    %v2585 = vadd.f32 %v1321, %v2584
    %v2586 = vpop.f32.mrf.mxu0
    %v2587 = vadd.f32 %v1325, %v2586
    %v2588 = vpop.f32.mrf.mxu0
    %v2589 = vpop.f32.mrf.mxu0
    %2590 = vdwg.mxu0
    %2591 = vmatprep.subr.bf16.mxu0 %v2481
    %2592 = vmatpush1.bf16.msra.mxu0 %v2480
    %2593 = vmatprep.subr.bf16.mxu0 %v2473
    %2594 = vmatpush1.bf16.msra.mxu0 %v2472
    %2595 = vmatprep.subr.bf16.mxu0 %v2465
    %2596 = vmatpush1.bf16.msra.mxu0 %v2464
    %2597 = vmatprep.subr.bf16.mxu0 %v2457
    %2598 = vmatpush1.bf16.msra.mxu0 %v2456
    %2599 = vmatprep.subr.bf16.mxu0 %v2449
    %2600 = vmatpush1.bf16.msra.mxu0 %v2448
    %2601 = vmatprep.subr.bf16.mxu0 %v2441
    %2602 = vmatpush1.bf16.msra.mxu0 %v2440
    %2603 = vmatprep.subr.bf16.mxu0 %v2433
    %2604 = vmatpush1.bf16.msra.mxu0 %v2432
    %2605 = vmatprep.subr.bf16.mxu0 %v2425
    %2606 = vmatpush1.bf16.msra.mxu0 %v2424
    %2607 = vmatprep.subr.bf16.mxu0 0
    %2608 = vmatpush2.bf16.msra.mxu0 0
    %2609 = vmatprep.subr.bf16.mxu0 0
    %2610 = vmatpush2.bf16.msra.mxu0 0
    %2611 = vmatprep.subr.bf16.mxu0 0
    %2612 = vmatpush2.bf16.msra.mxu0 0
    %2613 = vmatprep.subr.bf16.mxu0 0
    %2614 = vmatpush2.bf16.msra.mxu0 0
    %2615 = vmatprep.subr.bf16.mxu0 0
    %2616 = vmatpush2.bf16.msra.mxu0 0
    %2617 = vmatprep.subr.bf16.mxu0 0
    %2618 = vmatpush2.bf16.msra.mxu0 0
    %2619 = vmatprep.subr.bf16.mxu0 0
    %2620 = vmatpush2.bf16.msra.mxu0 0
    %2621 = vmatprep.subr.bf16.mxu0 0
    %2622 = vmatpush2.bf16.msra.mxu0 0
    %2623 = vmatprep.mubr.bf16.mxu0 0
    %2624 = vmatmul.mubr.bf16.gmra.mxu0 %v2228
    %v2625 = vpop.f32.mrf.mxu0
    %v2626 = vadd.f32 %v1329, %v2625
    %v2627 = vpop.f32.mrf.mxu0
    %v2628 = vadd.f32 %v1333, %v2627
    %v2629 = vpop.f32.mrf.mxu0
    %v2630 = vpop.f32.mrf.mxu0
    %2631 = vdwg.mxu0
    %2632 = vmatprep.subr.bf16.mxu0 %v2483
    %2633 = vmatpush1.bf16.msra.mxu0 %v2482
    %2634 = vmatprep.subr.bf16.mxu0 %v2475
    %2635 = vmatpush1.bf16.msra.mxu0 %v2474
    %2636 = vmatprep.subr.bf16.mxu0 %v2467
    %2637 = vmatpush1.bf16.msra.mxu0 %v2466
    %2638 = vmatprep.subr.bf16.mxu0 %v2459
    %2639 = vmatpush1.bf16.msra.mxu0 %v2458
    %2640 = vmatprep.subr.bf16.mxu0 %v2451
    %2641 = vmatpush1.bf16.msra.mxu0 %v2450
    %2642 = vmatprep.subr.bf16.mxu0 %v2443
    %2643 = vmatpush1.bf16.msra.mxu0 %v2442
    %2644 = vmatprep.subr.bf16.mxu0 %v2435
    %2645 = vmatpush1.bf16.msra.mxu0 %v2434
    %2646 = vmatprep.subr.bf16.mxu0 %v2427
    %2647 = vmatpush1.bf16.msra.mxu0 %v2426
    %2648 = vmatprep.subr.bf16.mxu0 0
    %2649 = vmatpush2.bf16.msra.mxu0 0
    %2650 = vmatprep.subr.bf16.mxu0 0
    %2651 = vmatpush2.bf16.msra.mxu0 0
    %2652 = vmatprep.subr.bf16.mxu0 0
    %2653 = vmatpush2.bf16.msra.mxu0 0
    %2654 = vmatprep.subr.bf16.mxu0 0
    %2655 = vmatpush2.bf16.msra.mxu0 0
    %2656 = vmatprep.subr.bf16.mxu0 0
    %2657 = vmatpush2.bf16.msra.mxu0 0
    %2658 = vmatprep.subr.bf16.mxu0 0
    %2659 = vmatpush2.bf16.msra.mxu0 0
    %2660 = vmatprep.subr.bf16.mxu0 0
    %2661 = vmatpush2.bf16.msra.mxu0 0
    %2662 = vmatprep.subr.bf16.mxu0 0
    %2663 = vmatpush2.bf16.msra.mxu0 0
    %2664 = vmatprep.mubr.bf16.mxu0 0
    %2665 = vmatmul.mubr.bf16.gmra.mxu0 %v2228
    %v2666 = vpop.f32.mrf.mxu0
    %v2667 = vadd.f32 %v1337, %v2666
    %v2668 = vpop.f32.mrf.mxu0
    %v2669 = vadd.f32 %v1341, %v2668
    %v2670 = vpop.f32.mrf.mxu0
    %v2671 = vpop.f32.mrf.mxu0
    %2672 = vdwg.mxu0
    %2673 = vmatprep.subr.bf16.mxu0 %v2485
    %2674 = vmatpush1.bf16.msra.mxu0 %v2484
    %2675 = vmatprep.subr.bf16.mxu0 %v2477
    %2676 = vmatpush1.bf16.msra.mxu0 %v2476
    %2677 = vmatprep.subr.bf16.mxu0 %v2469
    %2678 = vmatpush1.bf16.msra.mxu0 %v2468
    %2679 = vmatprep.subr.bf16.mxu0 %v2461
    %2680 = vmatpush1.bf16.msra.mxu0 %v2460
    %2681 = vmatprep.subr.bf16.mxu0 %v2453
    %2682 = vmatpush1.bf16.msra.mxu0 %v2452
    %2683 = vmatprep.subr.bf16.mxu0 %v2445
    %2684 = vmatpush1.bf16.msra.mxu0 %v2444
    %2685 = vmatprep.subr.bf16.mxu0 %v2437
    %2686 = vmatpush1.bf16.msra.mxu0 %v2436
    %2687 = vmatprep.subr.bf16.mxu0 %v2429
    %2688 = vmatpush1.bf16.msra.mxu0 %v2428
    %2689 = vmatprep.subr.bf16.mxu0 0
    %2690 = vmatpush2.bf16.msra.mxu0 0
    %2691 = vmatprep.subr.bf16.mxu0 0
    %2692 = vmatpush2.bf16.msra.mxu0 0
    %2693 = vmatprep.subr.bf16.mxu0 0
    %2694 = vmatpush2.bf16.msra.mxu0 0
    %2695 = vmatprep.subr.bf16.mxu0 0
    %2696 = vmatpush2.bf16.msra.mxu0 0
    %2697 = vmatprep.subr.bf16.mxu0 0
    %2698 = vmatpush2.bf16.msra.mxu0 0
    %2699 = vmatprep.subr.bf16.mxu0 0
    %2700 = vmatpush2.bf16.msra.mxu0 0
    %2701 = vmatprep.subr.bf16.mxu0 0
    %2702 = vmatpush2.bf16.msra.mxu0 0
    %2703 = vmatprep.subr.bf16.mxu0 0
    %2704 = vmatpush2.bf16.msra.mxu0 0
    %2705 = vmatprep.mubr.bf16.mxu0 0
    %2706 = vmatmul.mubr.bf16.gmra.mxu0 %v2228
    %v2707 = vpop.f32.mrf.mxu0
    %v2708 = vadd.f32 %v1345, %v2707
    %v2709 = vpop.f32.mrf.mxu0
    %v2710 = vadd.f32 %v1349, %v2709
    %v2711 = vpop.f32.mrf.mxu0
    %v2712 = vpop.f32.mrf.mxu0
    %2713 = vdwg.mxu0
    %v2714 = vmax.f32 %v2585, 0.0
    %v2715 = vmax.f32 %v2587, 0.0
    %v2716 = vmax.f32 %v2626, 0.0
    %v2717 = vmax.f32 %v2628, 0.0
    %v2718 = vmax.f32 %v2667, 0.0
    %v2719 = vmax.f32 %v2669, 0.0
    %v2720 = vmax.f32 %v2708, 0.0
    %v2721 = vmax.f32 %v2710, 0.0
    %v2722 = vpack.c.bf16 %v2714, %v2714
    %v2723 = vpack.c.bf16 %v2715, %v2715
    %v2724 = vpack.c.bf16 %v2716, %v2716
    %v2725 = vpack.c.bf16 %v2717, %v2717
    %v2726 = vpack.c.bf16 %v2718, %v2718
    %v2727 = vpack.c.bf16 %v2719, %v2719
    %v2728 = vpack.c.bf16 %v2720, %v2720
    %v2729 = vpack.c.bf16 %v2721, %v2721
    %v2730 = vld [vmem:[#allocation4] sm:$0xff]
    %v2731 = vld [vmem:[#allocation4 + $0x8] sm:$0xff]
    %v2732 = vld [vmem:[#allocation4 + $0x10] sm:$0xff]
    %v2733 = vld [vmem:[#allocation4 + $0x18] sm:$0xff]
    %v2734 = vld [vmem:[#allocation4 + $0x20] sm:$0xff]
    %v2735 = vld [vmem:[#allocation4 + $0x28] sm:$0xff]
    %v2736 = vld [vmem:[#allocation4 + $0x30] sm:$0xff]
    %v2737 = vld [vmem:[#allocation4 + $0x38] sm:$0xff]
    %v2738 = vld [vmem:[#allocation4 + $0x40] sm:$0xff]
    %v2739 = vld [vmem:[#allocation4 + $0x48] sm:$0xff]
    %v2740 = vld [vmem:[#allocation4 + $0x50] sm:$0xff]
    %v2741 = vld [vmem:[#allocation4 + $0x58] sm:$0xff]
    %v2742 = vld [vmem:[#allocation4 + $0x60] sm:$0xff]
    %v2743 = vld [vmem:[#allocation4 + $0x68] sm:$0xff]
    %v2744 = vld [vmem:[#allocation4 + $0x70] sm:$0xff]
    %v2745 = vld [vmem:[#allocation4 + $0x78] sm:$0xff]
    %v2746 = vld [vmem:[#allocation4 + $0x80] sm:$0xff]
    %v2747 = vld [vmem:[#allocation4 + $0x88] sm:$0xff]
    %v2748 = vld [vmem:[#allocation4 + $0x90] sm:$0xff]
    %v2749 = vld [vmem:[#allocation4 + $0x98] sm:$0xff]
    %v2750 = vld [vmem:[#allocation4 + $0xa0] sm:$0xff]
    %v2751 = vld [vmem:[#allocation4 + $0xa8] sm:$0xff]
    %v2752 = vld [vmem:[#allocation4 + $0xb0] sm:$0xff]
    %v2753 = vld [vmem:[#allocation4 + $0xb8] sm:$0xff]
    %v2754 = vld [vmem:[#allocation4 + $0xc0] sm:$0xff]
    %v2755 = vld [vmem:[#allocation4 + $0xc8] sm:$0xff]
    %v2756 = vld [vmem:[#allocation4 + $0xd0] sm:$0xff]
    %v2757 = vld [vmem:[#allocation4 + $0xd8] sm:$0xff]
    %v2758 = vld [vmem:[#allocation4 + $0xe0] sm:$0xff]
    %v2759 = vld [vmem:[#allocation4 + $0xe8] sm:$0xff]
    %v2760 = vld [vmem:[#allocation4 + $0xf0] sm:$0xff]
    %v2761 = vld [vmem:[#allocation4 + $0xf8] sm:$0xff]
    %v2762 = vld [vmem:[#allocation4 + $0x100] sm:$0xff]
    %v2763 = vld [vmem:[#allocation4 + $0x108] sm:$0xff]
    %v2764 = vld [vmem:[#allocation4 + $0x110] sm:$0xff]
    %v2765 = vld [vmem:[#allocation4 + $0x118] sm:$0xff]
    %v2766 = vld [vmem:[#allocation4 + $0x120] sm:$0xff]
    %v2767 = vld [vmem:[#allocation4 + $0x128] sm:$0xff]
    %v2768 = vld [vmem:[#allocation4 + $0x130] sm:$0xff]
    %v2769 = vld [vmem:[#allocation4 + $0x138] sm:$0xff]
    %v2770 = vld [vmem:[#allocation4 + $0x140] sm:$0xff]
    %v2771 = vld [vmem:[#allocation4 + $0x148] sm:$0xff]
    %v2772 = vld [vmem:[#allocation4 + $0x150] sm:$0xff]
    %v2773 = vld [vmem:[#allocation4 + $0x158] sm:$0xff]
    %v2774 = vld [vmem:[#allocation4 + $0x160] sm:$0xff]
    %v2775 = vld [vmem:[#allocation4 + $0x168] sm:$0xff]
    %v2776 = vld [vmem:[#allocation4 + $0x170] sm:$0xff]
    %v2777 = vld [vmem:[#allocation4 + $0x178] sm:$0xff]
    %v2778 = vld [vmem:[#allocation4 + $0x180] sm:$0xff]
    %v2779 = vld [vmem:[#allocation4 + $0x188] sm:$0xff]
    %v2780 = vld [vmem:[#allocation4 + $0x190] sm:$0xff]
    %v2781 = vld [vmem:[#allocation4 + $0x198] sm:$0xff]
    %v2782 = vld [vmem:[#allocation4 + $0x1a0] sm:$0xff]
    %v2783 = vld [vmem:[#allocation4 + $0x1a8] sm:$0xff]
    %v2784 = vld [vmem:[#allocation4 + $0x1b0] sm:$0xff]
    %v2785 = vld [vmem:[#allocation4 + $0x1b8] sm:$0xff]
    %v2786 = vld [vmem:[#allocation4 + $0x1c0] sm:$0xff]
    %v2787 = vld [vmem:[#allocation4 + $0x1c8] sm:$0xff]
    %v2788 = vld [vmem:[#allocation4 + $0x1d0] sm:$0xff]
    %v2789 = vld [vmem:[#allocation4 + $0x1d8] sm:$0xff]
    %v2790 = vld [vmem:[#allocation4 + $0x1e0] sm:$0xff]
    %v2791 = vld [vmem:[#allocation4 + $0x1e8] sm:$0xff]
    %v2792 = vld [vmem:[#allocation4 + $0x1f0] sm:$0xff]
    %v2793 = vld [vmem:[#allocation4 + $0x1f8] sm:$0xff]
    %v2794 = vld [vmem:[#allocation4 + $0x200] sm:$0xff]
    %v2795 = vld [vmem:[#allocation4 + $0x208] sm:$0xff]
    %v2796 = vld [vmem:[#allocation4 + $0x210] sm:$0xff]
    %v2797 = vld [vmem:[#allocation4 + $0x218] sm:$0xff]
    %v2798 = vld [vmem:[#allocation4 + $0x220] sm:$0xff]
    %v2799 = vld [vmem:[#allocation4 + $0x228] sm:$0xff]
    %v2800 = vld [vmem:[#allocation4 + $0x230] sm:$0xff]
    %v2801 = vld [vmem:[#allocation4 + $0x238] sm:$0xff]
    %v2802 = vld [vmem:[#allocation4 + $0x240] sm:$0xff]
    %v2803 = vld [vmem:[#allocation4 + $0x248] sm:$0xff]
    %v2804 = vld [vmem:[#allocation4 + $0x250] sm:$0xff]
    %v2805 = vld [vmem:[#allocation4 + $0x258] sm:$0xff]
    %v2806 = vld [vmem:[#allocation4 + $0x260] sm:$0xff]
    %v2807 = vld [vmem:[#allocation4 + $0x268] sm:$0xff]
    %v2808 = vld [vmem:[#allocation4 + $0x270] sm:$0xff]
    %v2809 = vld [vmem:[#allocation4 + $0x278] sm:$0xff]
    %v2810 = vld [vmem:[#allocation4 + $0x280] sm:$0xff]
    %v2811 = vld [vmem:[#allocation4 + $0x288] sm:$0xff]
    %v2812 = vld [vmem:[#allocation4 + $0x290] sm:$0xff]
    %v2813 = vld [vmem:[#allocation4 + $0x298] sm:$0xff]
    %v2814 = vld [vmem:[#allocation4 + $0x2a0] sm:$0xff]
    %v2815 = vld [vmem:[#allocation4 + $0x2a8] sm:$0xff]
    %v2816 = vld [vmem:[#allocation4 + $0x2b0] sm:$0xff]
    %v2817 = vld [vmem:[#allocation4 + $0x2b8] sm:$0xff]
    %v2818 = vld [vmem:[#allocation4 + $0x2c0] sm:$0xff]
    %v2819 = vld [vmem:[#allocation4 + $0x2c8] sm:$0xff]
    %v2820 = vld [vmem:[#allocation4 + $0x2d0] sm:$0xff]
    %v2821 = vld [vmem:[#allocation4 + $0x2d8] sm:$0xff]
    %v2822 = vld [vmem:[#allocation4 + $0x2e0] sm:$0xff]
    %v2823 = vld [vmem:[#allocation4 + $0x2e8] sm:$0xff]
    %v2824 = vld [vmem:[#allocation4 + $0x2f0] sm:$0xff]
    %v2825 = vld [vmem:[#allocation4 + $0x2f8] sm:$0xff]
    %v2826 = vld [vmem:[#allocation4 + $0x300] sm:$0xff]
    %v2827 = vld [vmem:[#allocation4 + $0x308] sm:$0xff]
    %v2828 = vld [vmem:[#allocation4 + $0x310] sm:$0xff]
    %v2829 = vld [vmem:[#allocation4 + $0x318] sm:$0xff]
    %v2830 = vld [vmem:[#allocation4 + $0x320] sm:$0xff]
    %v2831 = vld [vmem:[#allocation4 + $0x328] sm:$0xff]
    %v2832 = vld [vmem:[#allocation4 + $0x330] sm:$0xff]
    %v2833 = vld [vmem:[#allocation4 + $0x338] sm:$0xff]
    %v2834 = vld [vmem:[#allocation4 + $0x340] sm:$0xff]
    %v2835 = vld [vmem:[#allocation4 + $0x348] sm:$0xff]
    %v2836 = vld [vmem:[#allocation4 + $0x350] sm:$0xff]
    %v2837 = vld [vmem:[#allocation4 + $0x358] sm:$0xff]
    %v2838 = vld [vmem:[#allocation4 + $0x360] sm:$0xff]
    %v2839 = vld [vmem:[#allocation4 + $0x368] sm:$0xff]
    %v2840 = vld [vmem:[#allocation4 + $0x370] sm:$0xff]
    %v2841 = vld [vmem:[#allocation4 + $0x378] sm:$0xff]
    %v2842 = vld [vmem:[#allocation4 + $0x380] sm:$0xff]
    %v2843 = vld [vmem:[#allocation4 + $0x388] sm:$0xff]
    %v2844 = vld [vmem:[#allocation4 + $0x390] sm:$0xff]
    %v2845 = vld [vmem:[#allocation4 + $0x398] sm:$0xff]
    %v2846 = vld [vmem:[#allocation4 + $0x3a0] sm:$0xff]
    %v2847 = vld [vmem:[#allocation4 + $0x3a8] sm:$0xff]
    %v2848 = vld [vmem:[#allocation4 + $0x3b0] sm:$0xff]
    %v2849 = vld [vmem:[#allocation4 + $0x3b8] sm:$0xff]
    %v2850 = vld [vmem:[#allocation4 + $0x3c0] sm:$0xff]
    %v2851 = vld [vmem:[#allocation4 + $0x3c8] sm:$0xff]
    %v2852 = vld [vmem:[#allocation4 + $0x3d0] sm:$0xff]
    %v2853 = vld [vmem:[#allocation4 + $0x3d8] sm:$0xff]
    %v2854 = vld [vmem:[#allocation4 + $0x3e0] sm:$0xff]
    %v2855 = vld [vmem:[#allocation4 + $0x3e8] sm:$0xff]
    %v2856 = vld [vmem:[#allocation4 + $0x3f0] sm:$0xff]
    %v2857 = vld [vmem:[#allocation4 + $0x3f8] sm:$0xff]
    %v2858 = vld [vmem:[%s9] sm:$0x3]
    %v2860 = vlaneseq
    %v2861 = vshrl.u32 %v2860, 7
    %v2862 = vsub.s32 0, %v2861
    %v2863 = vrot.slane %v2858, %v2862
    %v2864 = vlaneseq
    %v2865 = vshrl.u32 %v2864, 7
    %v2866 = vsub.s32 1, %v2865
    %v2867 = vrot.slane %v2858, %v2866
    %v2998 = vunpack.c.l.b16 %v2730
    %v2999 = vunpack.c.h.b16 %v2730
    %v3000 = vunpack.c.l.b16 %v2731
    %v3001 = vunpack.c.h.b16 %v2731
    %v3002 = vunpack.c.l.b16 %v2732
    %v3003 = vunpack.c.h.b16 %v2732
    %v3004 = vunpack.c.l.b16 %v2733
    %v3005 = vunpack.c.h.b16 %v2733
    %v3006 = vunpack.c.l.b16 %v2734
    %v3007 = vunpack.c.h.b16 %v2734
    %v3008 = vunpack.c.l.b16 %v2735
    %v3009 = vunpack.c.h.b16 %v2735
    %v3010 = vunpack.c.l.b16 %v2736
    %v3011 = vunpack.c.h.b16 %v2736
    %v3012 = vunpack.c.l.b16 %v2737
    %v3013 = vunpack.c.h.b16 %v2737
    %v3014 = vunpack.c.l.b16 %v2738
    %v3015 = vunpack.c.h.b16 %v2738
    %v3016 = vunpack.c.l.b16 %v2739
    %v3017 = vunpack.c.h.b16 %v2739
    %v3018 = vunpack.c.l.b16 %v2740
    %v3019 = vunpack.c.h.b16 %v2740
    %v3020 = vunpack.c.l.b16 %v2741
    %v3021 = vunpack.c.h.b16 %v2741
    %v3022 = vunpack.c.l.b16 %v2742
    %v3023 = vunpack.c.h.b16 %v2742
    %v3024 = vunpack.c.l.b16 %v2743
    %v3025 = vunpack.c.h.b16 %v2743
    %v3026 = vunpack.c.l.b16 %v2744
    %v3027 = vunpack.c.h.b16 %v2744
    %v3028 = vunpack.c.l.b16 %v2745
    %v3029 = vunpack.c.h.b16 %v2745
    %v3030 = vunpack.c.l.b16 %v2746
    %v3031 = vunpack.c.h.b16 %v2746
    %v3032 = vunpack.c.l.b16 %v2747
    %v3033 = vunpack.c.h.b16 %v2747
    %v3034 = vunpack.c.l.b16 %v2748
    %v3035 = vunpack.c.h.b16 %v2748
    %v3036 = vunpack.c.l.b16 %v2749
    %v3037 = vunpack.c.h.b16 %v2749
    %v3038 = vunpack.c.l.b16 %v2750
    %v3039 = vunpack.c.h.b16 %v2750
    %v3040 = vunpack.c.l.b16 %v2751
    %v3041 = vunpack.c.h.b16 %v2751
    %v3042 = vunpack.c.l.b16 %v2752
    %v3043 = vunpack.c.h.b16 %v2752
    %v3044 = vunpack.c.l.b16 %v2753
    %v3045 = vunpack.c.h.b16 %v2753
    %v3046 = vunpack.c.l.b16 %v2754
    %v3047 = vunpack.c.h.b16 %v2754
    %v3048 = vunpack.c.l.b16 %v2755
    %v3049 = vunpack.c.h.b16 %v2755
    %v3050 = vunpack.c.l.b16 %v2756
    %v3051 = vunpack.c.h.b16 %v2756
    %v3052 = vunpack.c.l.b16 %v2757
    %v3053 = vunpack.c.h.b16 %v2757
    %v3054 = vunpack.c.l.b16 %v2758
    %v3055 = vunpack.c.h.b16 %v2758
    %v3056 = vunpack.c.l.b16 %v2759
    %v3057 = vunpack.c.h.b16 %v2759
    %v3058 = vunpack.c.l.b16 %v2760
    %v3059 = vunpack.c.h.b16 %v2760
    %v3060 = vunpack.c.l.b16 %v2761
    %v3061 = vunpack.c.h.b16 %v2761
    %v3062 = vunpack.c.l.b16 %v2762
    %v3063 = vunpack.c.h.b16 %v2762
    %v3064 = vunpack.c.l.b16 %v2763
    %v3065 = vunpack.c.h.b16 %v2763
    %v3066 = vunpack.c.l.b16 %v2764
    %v3067 = vunpack.c.h.b16 %v2764
    %v3068 = vunpack.c.l.b16 %v2765
    %v3069 = vunpack.c.h.b16 %v2765
    %v3070 = vunpack.c.l.b16 %v2766
    %v3071 = vunpack.c.h.b16 %v2766
    %v3072 = vunpack.c.l.b16 %v2767
    %v3073 = vunpack.c.h.b16 %v2767
    %v3074 = vunpack.c.l.b16 %v2768
    %v3075 = vunpack.c.h.b16 %v2768
    %v3076 = vunpack.c.l.b16 %v2769
    %v3077 = vunpack.c.h.b16 %v2769
    %v3078 = vunpack.c.l.b16 %v2770
    %v3079 = vunpack.c.h.b16 %v2770
    %v3080 = vunpack.c.l.b16 %v2771
    %v3081 = vunpack.c.h.b16 %v2771
    %v3082 = vunpack.c.l.b16 %v2772
    %v3083 = vunpack.c.h.b16 %v2772
    %v3084 = vunpack.c.l.b16 %v2773
    %v3085 = vunpack.c.h.b16 %v2773
    %v3086 = vunpack.c.l.b16 %v2774
    %v3087 = vunpack.c.h.b16 %v2774
    %v3088 = vunpack.c.l.b16 %v2775
    %v3089 = vunpack.c.h.b16 %v2775
    %v3090 = vunpack.c.l.b16 %v2776
    %v3091 = vunpack.c.h.b16 %v2776
    %v3092 = vunpack.c.l.b16 %v2777
    %v3093 = vunpack.c.h.b16 %v2777
    %v3094 = vunpack.c.l.b16 %v2778
    %v3095 = vunpack.c.h.b16 %v2778
    %v3096 = vunpack.c.l.b16 %v2779
    %v3097 = vunpack.c.h.b16 %v2779
    %v3098 = vunpack.c.l.b16 %v2780
    %v3099 = vunpack.c.h.b16 %v2780
    %v3100 = vunpack.c.l.b16 %v2781
    %v3101 = vunpack.c.h.b16 %v2781
    %v3102 = vunpack.c.l.b16 %v2782
    %v3103 = vunpack.c.h.b16 %v2782
    %v3104 = vunpack.c.l.b16 %v2783
    %v3105 = vunpack.c.h.b16 %v2783
    %v3106 = vunpack.c.l.b16 %v2784
    %v3107 = vunpack.c.h.b16 %v2784
    %v3108 = vunpack.c.l.b16 %v2785
    %v3109 = vunpack.c.h.b16 %v2785
    %v3110 = vunpack.c.l.b16 %v2786
    %v3111 = vunpack.c.h.b16 %v2786
    %v3112 = vunpack.c.l.b16 %v2787
    %v3113 = vunpack.c.h.b16 %v2787
    %v3114 = vunpack.c.l.b16 %v2788
    %v3115 = vunpack.c.h.b16 %v2788
    %v3116 = vunpack.c.l.b16 %v2789
    %v3117 = vunpack.c.h.b16 %v2789
    %v3118 = vunpack.c.l.b16 %v2790
    %v3119 = vunpack.c.h.b16 %v2790
    %v3120 = vunpack.c.l.b16 %v2791
    %v3121 = vunpack.c.h.b16 %v2791
    %v3122 = vunpack.c.l.b16 %v2792
    %v3123 = vunpack.c.h.b16 %v2792
    %v3124 = vunpack.c.l.b16 %v2793
    %v3125 = vunpack.c.h.b16 %v2793
    %v3126 = vunpack.c.l.b16 %v2794
    %v3127 = vunpack.c.h.b16 %v2794
    %v3128 = vunpack.c.l.b16 %v2795
    %v3129 = vunpack.c.h.b16 %v2795
    %v3130 = vunpack.c.l.b16 %v2796
    %v3131 = vunpack.c.h.b16 %v2796
    %v3132 = vunpack.c.l.b16 %v2797
    %v3133 = vunpack.c.h.b16 %v2797
    %v3134 = vunpack.c.l.b16 %v2798
    %v3135 = vunpack.c.h.b16 %v2798
    %v3136 = vunpack.c.l.b16 %v2799
    %v3137 = vunpack.c.h.b16 %v2799
    %v3138 = vunpack.c.l.b16 %v2800
    %v3139 = vunpack.c.h.b16 %v2800
    %v3140 = vunpack.c.l.b16 %v2801
    %v3141 = vunpack.c.h.b16 %v2801
    %v3142 = vunpack.c.l.b16 %v2802
    %v3143 = vunpack.c.h.b16 %v2802
    %v3144 = vunpack.c.l.b16 %v2803
    %v3145 = vunpack.c.h.b16 %v2803
    %v3146 = vunpack.c.l.b16 %v2804
    %v3147 = vunpack.c.h.b16 %v2804
    %v3148 = vunpack.c.l.b16 %v2805
    %v3149 = vunpack.c.h.b16 %v2805
    %v3150 = vunpack.c.l.b16 %v2806
    %v3151 = vunpack.c.h.b16 %v2806
    %v3152 = vunpack.c.l.b16 %v2807
    %v3153 = vunpack.c.h.b16 %v2807
    %v3154 = vunpack.c.l.b16 %v2808
    %v3155 = vunpack.c.h.b16 %v2808
    %v3156 = vunpack.c.l.b16 %v2809
    %v3157 = vunpack.c.h.b16 %v2809
    %v3158 = vunpack.c.l.b16 %v2810
    %v3159 = vunpack.c.h.b16 %v2810
    %v3160 = vunpack.c.l.b16 %v2811
    %v3161 = vunpack.c.h.b16 %v2811
    %v3162 = vunpack.c.l.b16 %v2812
    %v3163 = vunpack.c.h.b16 %v2812
    %v3164 = vunpack.c.l.b16 %v2813
    %v3165 = vunpack.c.h.b16 %v2813
    %v3166 = vunpack.c.l.b16 %v2814
    %v3167 = vunpack.c.h.b16 %v2814
    %v3168 = vunpack.c.l.b16 %v2815
    %v3169 = vunpack.c.h.b16 %v2815
    %v3170 = vunpack.c.l.b16 %v2816
    %v3171 = vunpack.c.h.b16 %v2816
    %v3172 = vunpack.c.l.b16 %v2817
    %v3173 = vunpack.c.h.b16 %v2817
    %v3174 = vunpack.c.l.b16 %v2818
    %v3175 = vunpack.c.h.b16 %v2818
    %v3176 = vunpack.c.l.b16 %v2819
    %v3177 = vunpack.c.h.b16 %v2819
    %v3178 = vunpack.c.l.b16 %v2820
    %v3179 = vunpack.c.h.b16 %v2820
    %v3180 = vunpack.c.l.b16 %v2821
    %v3181 = vunpack.c.h.b16 %v2821
    %v3182 = vunpack.c.l.b16 %v2822
    %v3183 = vunpack.c.h.b16 %v2822
    %v3184 = vunpack.c.l.b16 %v2823
    %v3185 = vunpack.c.h.b16 %v2823
    %v3186 = vunpack.c.l.b16 %v2824
    %v3187 = vunpack.c.h.b16 %v2824
    %v3188 = vunpack.c.l.b16 %v2825
    %v3189 = vunpack.c.h.b16 %v2825
    %v3190 = vunpack.c.l.b16 %v2826
    %v3191 = vunpack.c.h.b16 %v2826
    %v3192 = vunpack.c.l.b16 %v2827
    %v3193 = vunpack.c.h.b16 %v2827
    %v3194 = vunpack.c.l.b16 %v2828
    %v3195 = vunpack.c.h.b16 %v2828
    %v3196 = vunpack.c.l.b16 %v2829
    %v3197 = vunpack.c.h.b16 %v2829
    %v3198 = vunpack.c.l.b16 %v2830
    %v3199 = vunpack.c.h.b16 %v2830
    %v3200 = vunpack.c.l.b16 %v2831
    %v3201 = vunpack.c.h.b16 %v2831
    %v3202 = vunpack.c.l.b16 %v2832
    %v3203 = vunpack.c.h.b16 %v2832
    %v3204 = vunpack.c.l.b16 %v2833
    %v3205 = vunpack.c.h.b16 %v2833
    %v3206 = vunpack.c.l.b16 %v2834
    %v3207 = vunpack.c.h.b16 %v2834
    %v3208 = vunpack.c.l.b16 %v2835
    %v3209 = vunpack.c.h.b16 %v2835
    %v3210 = vunpack.c.l.b16 %v2836
    %v3211 = vunpack.c.h.b16 %v2836
    %v3212 = vunpack.c.l.b16 %v2837
    %v3213 = vunpack.c.h.b16 %v2837
    %v3214 = vunpack.c.l.b16 %v2838
    %v3215 = vunpack.c.h.b16 %v2838
    %v3216 = vunpack.c.l.b16 %v2839
    %v3217 = vunpack.c.h.b16 %v2839
    %v3218 = vunpack.c.l.b16 %v2840
    %v3219 = vunpack.c.h.b16 %v2840
    %v3220 = vunpack.c.l.b16 %v2841
    %v3221 = vunpack.c.h.b16 %v2841
    %v3222 = vunpack.c.l.b16 %v2842
    %v3223 = vunpack.c.h.b16 %v2842
    %v3224 = vunpack.c.l.b16 %v2843
    %v3225 = vunpack.c.h.b16 %v2843
    %v3226 = vunpack.c.l.b16 %v2844
    %v3227 = vunpack.c.h.b16 %v2844
    %v3228 = vunpack.c.l.b16 %v2845
    %v3229 = vunpack.c.h.b16 %v2845
    %v3230 = vunpack.c.l.b16 %v2846
    %v3231 = vunpack.c.h.b16 %v2846
    %v3232 = vunpack.c.l.b16 %v2847
    %v3233 = vunpack.c.h.b16 %v2847
    %v3234 = vunpack.c.l.b16 %v2848
    %v3235 = vunpack.c.h.b16 %v2848
    %v3236 = vunpack.c.l.b16 %v2849
    %v3237 = vunpack.c.h.b16 %v2849
    %v3238 = vunpack.c.l.b16 %v2850
    %v3239 = vunpack.c.h.b16 %v2850
    %v3240 = vunpack.c.l.b16 %v2851
    %v3241 = vunpack.c.h.b16 %v2851
    %v3242 = vunpack.c.l.b16 %v2852
    %v3243 = vunpack.c.h.b16 %v2852
    %v3244 = vunpack.c.l.b16 %v2853
    %v3245 = vunpack.c.h.b16 %v2853
    %v3246 = vunpack.c.l.b16 %v2854
    %v3247 = vunpack.c.h.b16 %v2854
    %v3248 = vunpack.c.l.b16 %v2855
    %v3249 = vunpack.c.h.b16 %v2855
    %v3250 = vunpack.c.l.b16 %v2856
    %v3251 = vunpack.c.h.b16 %v2856
    %v3252 = vunpack.c.l.b16 %v2857
    %v3253 = vunpack.c.h.b16 %v2857
    %v3254 = vpack.c.b16 %v3000, %v2998
    %v3255 = vpack.c.b16 %v3001, %v2999
    %v3256 = vpack.c.b16 %v3004, %v3002
    %v3257 = vpack.c.b16 %v3005, %v3003
    %v3258 = vpack.c.b16 %v3008, %v3006
    %v3259 = vpack.c.b16 %v3009, %v3007
    %v3260 = vpack.c.b16 %v3012, %v3010
    %v3261 = vpack.c.b16 %v3013, %v3011
    %v3262 = vpack.c.b16 %v3016, %v3014
    %v3263 = vpack.c.b16 %v3017, %v3015
    %v3264 = vpack.c.b16 %v3020, %v3018
    %v3265 = vpack.c.b16 %v3021, %v3019
    %v3266 = vpack.c.b16 %v3024, %v3022
    %v3267 = vpack.c.b16 %v3025, %v3023
    %v3268 = vpack.c.b16 %v3028, %v3026
    %v3269 = vpack.c.b16 %v3029, %v3027
    %v3270 = vpack.c.b16 %v3032, %v3030
    %v3271 = vpack.c.b16 %v3033, %v3031
    %v3272 = vpack.c.b16 %v3036, %v3034
    %v3273 = vpack.c.b16 %v3037, %v3035
    %v3274 = vpack.c.b16 %v3040, %v3038
    %v3275 = vpack.c.b16 %v3041, %v3039
    %v3276 = vpack.c.b16 %v3044, %v3042
    %v3277 = vpack.c.b16 %v3045, %v3043
    %v3278 = vpack.c.b16 %v3048, %v3046
    %v3279 = vpack.c.b16 %v3049, %v3047
    %v3280 = vpack.c.b16 %v3052, %v3050
    %v3281 = vpack.c.b16 %v3053, %v3051
    %v3282 = vpack.c.b16 %v3056, %v3054
    %v3283 = vpack.c.b16 %v3057, %v3055
    %v3284 = vpack.c.b16 %v3060, %v3058
    %v3285 = vpack.c.b16 %v3061, %v3059
    %v3286 = vpack.c.b16 %v3064, %v3062
    %v3287 = vpack.c.b16 %v3065, %v3063
    %v3288 = vpack.c.b16 %v3068, %v3066
    %v3289 = vpack.c.b16 %v3069, %v3067
    %v3290 = vpack.c.b16 %v3072, %v3070
    %v3291 = vpack.c.b16 %v3073, %v3071
    %v3292 = vpack.c.b16 %v3076, %v3074
    %v3293 = vpack.c.b16 %v3077, %v3075
    %v3294 = vpack.c.b16 %v3080, %v3078
    %v3295 = vpack.c.b16 %v3081, %v3079
    %v3296 = vpack.c.b16 %v3084, %v3082
    %v3297 = vpack.c.b16 %v3085, %v3083
    %v3298 = vpack.c.b16 %v3088, %v3086
    %v3299 = vpack.c.b16 %v3089, %v3087
    %v3300 = vpack.c.b16 %v3092, %v3090
    %v3301 = vpack.c.b16 %v3093, %v3091
    %v3302 = vpack.c.b16 %v3096, %v3094
    %v3303 = vpack.c.b16 %v3097, %v3095
    %v3304 = vpack.c.b16 %v3100, %v3098
    %v3305 = vpack.c.b16 %v3101, %v3099
    %v3306 = vpack.c.b16 %v3104, %v3102
    %v3307 = vpack.c.b16 %v3105, %v3103
    %v3308 = vpack.c.b16 %v3108, %v3106
    %v3309 = vpack.c.b16 %v3109, %v3107
    %v3310 = vpack.c.b16 %v3112, %v3110
    %v3311 = vpack.c.b16 %v3113, %v3111
    %v3312 = vpack.c.b16 %v3116, %v3114
    %v3313 = vpack.c.b16 %v3117, %v3115
    %v3314 = vpack.c.b16 %v3120, %v3118
    %v3315 = vpack.c.b16 %v3121, %v3119
    %v3316 = vpack.c.b16 %v3124, %v3122
    %v3317 = vpack.c.b16 %v3125, %v3123
    %v3318 = vpack.c.b16 %v3128, %v3126
    %v3319 = vpack.c.b16 %v3129, %v3127
    %v3320 = vpack.c.b16 %v3132, %v3130
    %v3321 = vpack.c.b16 %v3133, %v3131
    %v3322 = vpack.c.b16 %v3136, %v3134
    %v3323 = vpack.c.b16 %v3137, %v3135
    %v3324 = vpack.c.b16 %v3140, %v3138
    %v3325 = vpack.c.b16 %v3141, %v3139
    %v3326 = vpack.c.b16 %v3144, %v3142
    %v3327 = vpack.c.b16 %v3145, %v3143
    %v3328 = vpack.c.b16 %v3148, %v3146
    %v3329 = vpack.c.b16 %v3149, %v3147
    %v3330 = vpack.c.b16 %v3152, %v3150
    %v3331 = vpack.c.b16 %v3153, %v3151
    %v3332 = vpack.c.b16 %v3156, %v3154
    %v3333 = vpack.c.b16 %v3157, %v3155
    %v3334 = vpack.c.b16 %v3160, %v3158
    %v3335 = vpack.c.b16 %v3161, %v3159
    %v3336 = vpack.c.b16 %v3164, %v3162
    %v3337 = vpack.c.b16 %v3165, %v3163
    %v3338 = vpack.c.b16 %v3168, %v3166
    %v3339 = vpack.c.b16 %v3169, %v3167
    %v3340 = vpack.c.b16 %v3172, %v3170
    %v3341 = vpack.c.b16 %v3173, %v3171
    %v3342 = vpack.c.b16 %v3176, %v3174
    %v3343 = vpack.c.b16 %v3177, %v3175
    %v3344 = vpack.c.b16 %v3180, %v3178
    %v3345 = vpack.c.b16 %v3181, %v3179
    %v3346 = vpack.c.b16 %v3184, %v3182
    %v3347 = vpack.c.b16 %v3185, %v3183
    %v3348 = vpack.c.b16 %v3188, %v3186
    %v3349 = vpack.c.b16 %v3189, %v3187
    %v3350 = vpack.c.b16 %v3192, %v3190
    %v3351 = vpack.c.b16 %v3193, %v3191
    %v3352 = vpack.c.b16 %v3196, %v3194
    %v3353 = vpack.c.b16 %v3197, %v3195
    %v3354 = vpack.c.b16 %v3200, %v3198
    %v3355 = vpack.c.b16 %v3201, %v3199
    %v3356 = vpack.c.b16 %v3204, %v3202
    %v3357 = vpack.c.b16 %v3205, %v3203
    %v3358 = vpack.c.b16 %v3208, %v3206
    %v3359 = vpack.c.b16 %v3209, %v3207
    %v3360 = vpack.c.b16 %v3212, %v3210
    %v3361 = vpack.c.b16 %v3213, %v3211
    %v3362 = vpack.c.b16 %v3216, %v3214
    %v3363 = vpack.c.b16 %v3217, %v3215
    %v3364 = vpack.c.b16 %v3220, %v3218
    %v3365 = vpack.c.b16 %v3221, %v3219
    %v3366 = vpack.c.b16 %v3224, %v3222
    %v3367 = vpack.c.b16 %v3225, %v3223
    %v3368 = vpack.c.b16 %v3228, %v3226
    %v3369 = vpack.c.b16 %v3229, %v3227
    %v3370 = vpack.c.b16 %v3232, %v3230
    %v3371 = vpack.c.b16 %v3233, %v3231
    %v3372 = vpack.c.b16 %v3236, %v3234
    %v3373 = vpack.c.b16 %v3237, %v3235
    %v3374 = vpack.c.b16 %v3240, %v3238
    %v3375 = vpack.c.b16 %v3241, %v3239
    %v3376 = vpack.c.b16 %v3244, %v3242
    %v3377 = vpack.c.b16 %v3245, %v3243
    %v3378 = vpack.c.b16 %v3248, %v3246
    %v3379 = vpack.c.b16 %v3249, %v3247
    %v3380 = vpack.c.b16 %v3252, %v3250
    %v3381 = vpack.c.b16 %v3253, %v3251
    %3510 = vmatprep.subr.bf16.mxu0 %v3269
    %3511 = vmatpush1.bf16.msra.mxu0 %v3268
    %3512 = vmatprep.subr.bf16.mxu0 %v3267
    %3513 = vmatpush1.bf16.msra.mxu0 %v3266
    %3514 = vmatprep.subr.bf16.mxu0 %v3265
    %3515 = vmatpush1.bf16.msra.mxu0 %v3264
    %3516 = vmatprep.subr.bf16.mxu0 %v3263
    %3517 = vmatpush1.bf16.msra.mxu0 %v3262
    %3518 = vmatprep.subr.bf16.mxu0 %v3261
    %3519 = vmatpush1.bf16.msra.mxu0 %v3260
    %3520 = vmatprep.subr.bf16.mxu0 %v3259
    %3521 = vmatpush1.bf16.msra.mxu0 %v3258
    %3522 = vmatprep.subr.bf16.mxu0 %v3257
    %3523 = vmatpush1.bf16.msra.mxu0 %v3256
    %3524 = vmatprep.subr.bf16.mxu0 %v3255
    %3525 = vmatpush1.bf16.msra.mxu0 %v3254
    %3526 = vmatprep.subr.bf16.mxu0 %v3285
    %3527 = vmatpush2.bf16.msra.mxu0 %v3284
    %3528 = vmatprep.subr.bf16.mxu0 %v3283
    %3529 = vmatpush2.bf16.msra.mxu0 %v3282
    %3530 = vmatprep.subr.bf16.mxu0 %v3281
    %3531 = vmatpush2.bf16.msra.mxu0 %v3280
    %3532 = vmatprep.subr.bf16.mxu0 %v3279
    %3533 = vmatpush2.bf16.msra.mxu0 %v3278
    %3534 = vmatprep.subr.bf16.mxu0 %v3277
    %3535 = vmatpush2.bf16.msra.mxu0 %v3276
    %3536 = vmatprep.subr.bf16.mxu0 %v3275
    %3537 = vmatpush2.bf16.msra.mxu0 %v3274
    %3538 = vmatprep.subr.bf16.mxu0 %v3273
    %3539 = vmatpush2.bf16.msra.mxu0 %v3272
    %3540 = vmatprep.subr.bf16.mxu0 %v3271
    %3541 = vmatpush2.bf16.msra.mxu0 %v3270
    %3542 = vmatprep.mubr.bf16.mxu0 %v2723
    %3543 = vmatmul.mubr.bf16.gmra.mxu0 %v2722
    %v3544 = vpop.f32.mrf.mxu0
    %v3545 = vadd.f32 %v2863, %v3544
    %v3546 = vpop.f32.mrf.mxu0
    %v3547 = vadd.f32 %v2867, %v3546
    %v3548 = vpop.f32.mrf.mxu0
    %v3549 = vpop.f32.mrf.mxu0
    %3550 = vdwg.mxu0
    %3551 = vmatprep.subr.bf16.mxu0 %v3301
    %3552 = vmatpush1.bf16.msra.mxu0 %v3300
    %3553 = vmatprep.subr.bf16.mxu0 %v3299
    %3554 = vmatpush1.bf16.msra.mxu0 %v3298
    %3555 = vmatprep.subr.bf16.mxu0 %v3297
    %3556 = vmatpush1.bf16.msra.mxu0 %v3296
    %3557 = vmatprep.subr.bf16.mxu0 %v3295
    %3558 = vmatpush1.bf16.msra.mxu0 %v3294
    %3559 = vmatprep.subr.bf16.mxu0 %v3293
    %3560 = vmatpush1.bf16.msra.mxu0 %v3292
    %3561 = vmatprep.subr.bf16.mxu0 %v3291
    %3562 = vmatpush1.bf16.msra.mxu0 %v3290
    %3563 = vmatprep.subr.bf16.mxu0 %v3289
    %3564 = vmatpush1.bf16.msra.mxu0 %v3288
    %3565 = vmatprep.subr.bf16.mxu0 %v3287
    %3566 = vmatpush1.bf16.msra.mxu0 %v3286
    %3567 = vmatprep.subr.bf16.mxu0 %v3317
    %3568 = vmatpush2.bf16.msra.mxu0 %v3316
    %3569 = vmatprep.subr.bf16.mxu0 %v3315
    %3570 = vmatpush2.bf16.msra.mxu0 %v3314
    %3571 = vmatprep.subr.bf16.mxu0 %v3313
    %3572 = vmatpush2.bf16.msra.mxu0 %v3312
    %3573 = vmatprep.subr.bf16.mxu0 %v3311
    %3574 = vmatpush2.bf16.msra.mxu0 %v3310
    %3575 = vmatprep.subr.bf16.mxu0 %v3309
    %3576 = vmatpush2.bf16.msra.mxu0 %v3308
    %3577 = vmatprep.subr.bf16.mxu0 %v3307
    %3578 = vmatpush2.bf16.msra.mxu0 %v3306
    %3579 = vmatprep.subr.bf16.mxu0 %v3305
    %3580 = vmatpush2.bf16.msra.mxu0 %v3304
    %3581 = vmatprep.subr.bf16.mxu0 %v3303
    %3582 = vmatpush2.bf16.msra.mxu0 %v3302
    %3583 = vmatprep.mubr.bf16.mxu0 %v2725
    %3584 = vmatmul.mubr.bf16.gmra.mxu0 %v2724
    %v3585 = vpop.f32.mrf.mxu0
    %v3586 = vadd.f32 %v3545, %v3585
    %v3587 = vpop.f32.mrf.mxu0
    %v3588 = vadd.f32 %v3547, %v3587
    %v3589 = vpop.f32.mrf.mxu0
    %v3590 = vpop.f32.mrf.mxu0
    %3591 = vdwg.mxu0
    %3592 = vmatprep.subr.bf16.mxu0 %v3333
    %3593 = vmatpush1.bf16.msra.mxu0 %v3332
    %3594 = vmatprep.subr.bf16.mxu0 %v3331
    %3595 = vmatpush1.bf16.msra.mxu0 %v3330
    %3596 = vmatprep.subr.bf16.mxu0 %v3329
    %3597 = vmatpush1.bf16.msra.mxu0 %v3328
    %3598 = vmatprep.subr.bf16.mxu0 %v3327
    %3599 = vmatpush1.bf16.msra.mxu0 %v3326
    %3600 = vmatprep.subr.bf16.mxu0 %v3325
    %3601 = vmatpush1.bf16.msra.mxu0 %v3324
    %3602 = vmatprep.subr.bf16.mxu0 %v3323
    %3603 = vmatpush1.bf16.msra.mxu0 %v3322
    %3604 = vmatprep.subr.bf16.mxu0 %v3321
    %3605 = vmatpush1.bf16.msra.mxu0 %v3320
    %3606 = vmatprep.subr.bf16.mxu0 %v3319
    %3607 = vmatpush1.bf16.msra.mxu0 %v3318
    %3608 = vmatprep.subr.bf16.mxu0 %v3349
    %3609 = vmatpush2.bf16.msra.mxu0 %v3348
    %3610 = vmatprep.subr.bf16.mxu0 %v3347
    %3611 = vmatpush2.bf16.msra.mxu0 %v3346
    %3612 = vmatprep.subr.bf16.mxu0 %v3345
    %3613 = vmatpush2.bf16.msra.mxu0 %v3344
    %3614 = vmatprep.subr.bf16.mxu0 %v3343
    %3615 = vmatpush2.bf16.msra.mxu0 %v3342
    %3616 = vmatprep.subr.bf16.mxu0 %v3341
    %3617 = vmatpush2.bf16.msra.mxu0 %v3340
    %3618 = vmatprep.subr.bf16.mxu0 %v3339
    %3619 = vmatpush2.bf16.msra.mxu0 %v3338
    %3620 = vmatprep.subr.bf16.mxu0 %v3337
    %3621 = vmatpush2.bf16.msra.mxu0 %v3336
    %3622 = vmatprep.subr.bf16.mxu0 %v3335
    %3623 = vmatpush2.bf16.msra.mxu0 %v3334
    %3624 = vmatprep.mubr.bf16.mxu0 %v2727
    %3625 = vmatmul.mubr.bf16.gmra.mxu0 %v2726
    %v3626 = vpop.f32.mrf.mxu0
    %v3627 = vadd.f32 %v3586, %v3626
    %v3628 = vpop.f32.mrf.mxu0
    %v3629 = vadd.f32 %v3588, %v3628
    %v3630 = vpop.f32.mrf.mxu0
    %v3631 = vpop.f32.mrf.mxu0
    %3632 = vdwg.mxu0
    %3633 = vmatprep.subr.bf16.mxu0 %v3365
    %3634 = vmatpush1.bf16.msra.mxu0 %v3364
    %3635 = vmatprep.subr.bf16.mxu0 %v3363
    %3636 = vmatpush1.bf16.msra.mxu0 %v3362
    %3637 = vmatprep.subr.bf16.mxu0 %v3361
    %3638 = vmatpush1.bf16.msra.mxu0 %v3360
    %3639 = vmatprep.subr.bf16.mxu0 %v3359
    %3640 = vmatpush1.bf16.msra.mxu0 %v3358
    %3641 = vmatprep.subr.bf16.mxu0 %v3357
    %3642 = vmatpush1.bf16.msra.mxu0 %v3356
    %3643 = vmatprep.subr.bf16.mxu0 %v3355
    %3644 = vmatpush1.bf16.msra.mxu0 %v3354
    %3645 = vmatprep.subr.bf16.mxu0 %v3353
    %3646 = vmatpush1.bf16.msra.mxu0 %v3352
    %3647 = vmatprep.subr.bf16.mxu0 %v3351
    %3648 = vmatpush1.bf16.msra.mxu0 %v3350
    %3649 = vmatprep.subr.bf16.mxu0 %v3381
    %3650 = vmatpush2.bf16.msra.mxu0 %v3380
    %3651 = vmatprep.subr.bf16.mxu0 %v3379
    %3652 = vmatpush2.bf16.msra.mxu0 %v3378
    %3653 = vmatprep.subr.bf16.mxu0 %v3377
    %3654 = vmatpush2.bf16.msra.mxu0 %v3376
    %3655 = vmatprep.subr.bf16.mxu0 %v3375
    %3656 = vmatpush2.bf16.msra.mxu0 %v3374
    %3657 = vmatprep.subr.bf16.mxu0 %v3373
    %3658 = vmatpush2.bf16.msra.mxu0 %v3372
    %3659 = vmatprep.subr.bf16.mxu0 %v3371
    %3660 = vmatpush2.bf16.msra.mxu0 %v3370
    %3661 = vmatprep.subr.bf16.mxu0 %v3369
    %3662 = vmatpush2.bf16.msra.mxu0 %v3368
    %3663 = vmatprep.subr.bf16.mxu0 %v3367
    %3664 = vmatpush2.bf16.msra.mxu0 %v3366
    %3665 = vmatprep.mubr.bf16.mxu0 %v2729
    %3666 = vmatmul.mubr.bf16.gmra.mxu0 %v2728
    %v3667 = vpop.f32.mrf.mxu0
    %v3668 = vadd.f32 %v3627, %v3667
    %v3669 = vpop.f32.mrf.mxu0
    %v3670 = vadd.f32 %v3629, %v3669
    %v3671 = vpop.f32.mrf.mxu0
    %v3672 = vpop.f32.mrf.mxu0
    %3673 = vdwg.mxu0
    %v3674 = vmax.f32 %v3668, 0.0
    %v3675 = vmax.f32 %v3670, 0.0
    %v3676 = vpack.c.bf16 %v267, %v267
    %v3677 = vpack.c.bf16 %v268, %v268
    %v3678 = vld [vmem:[#allocation7] sm:$0xff]
    %v3679 = vld [vmem:[#allocation7 + $0x8] sm:$0xff]
    %v3680 = vld [vmem:[#allocation7 + $0x10] sm:$0xff]
    %v3681 = vld [vmem:[#allocation7 + $0x18] sm:$0xff]
    %v3682 = vld [vmem:[#allocation7 + $0x20] sm:$0xff]
    %v3683 = vld [vmem:[#allocation7 + $0x28] sm:$0xff]
    %v3684 = vld [vmem:[#allocation7 + $0x30] sm:$0xff]
    %v3685 = vld [vmem:[#allocation7 + $0x38] sm:$0xff]
    %v3686 = vld [vmem:[#allocation7 + $0x40] sm:$0xff]
    %v3687 = vld [vmem:[#allocation7 + $0x48] sm:$0xff]
    %v3688 = vld [vmem:[#allocation7 + $0x50] sm:$0xff]
    %v3689 = vld [vmem:[#allocation7 + $0x58] sm:$0xff]
    %v3690 = vld [vmem:[#allocation7 + $0x60] sm:$0xff]
    %v3691 = vld [vmem:[#allocation7 + $0x68] sm:$0xff]
    %v3692 = vld [vmem:[#allocation7 + $0x70] sm:$0xff]
    %v3693 = vld [vmem:[#allocation7 + $0x78] sm:$0xff]
    %v3694 = vld [vmem:[#allocation7 + $0x80] sm:$0xff]
    %v3695 = vld [vmem:[#allocation7 + $0x88] sm:$0xff]
    %v3696 = vld [vmem:[#allocation7 + $0x90] sm:$0xff]
    %v3697 = vld [vmem:[#allocation7 + $0x98] sm:$0xff]
    %v3698 = vld [vmem:[#allocation7 + $0xa0] sm:$0xff]
    %v3699 = vld [vmem:[#allocation7 + $0xa8] sm:$0xff]
    %v3700 = vld [vmem:[#allocation7 + $0xb0] sm:$0xff]
    %v3701 = vld [vmem:[#allocation7 + $0xb8] sm:$0xff]
    %v3702 = vld [vmem:[#allocation7 + $0xc0] sm:$0xff]
    %v3703 = vld [vmem:[#allocation7 + $0xc8] sm:$0xff]
    %v3704 = vld [vmem:[#allocation7 + $0xd0] sm:$0xff]
    %v3705 = vld [vmem:[#allocation7 + $0xd8] sm:$0xff]
    %v3706 = vld [vmem:[#allocation7 + $0xe0] sm:$0xff]
    %v3707 = vld [vmem:[#allocation7 + $0xe8] sm:$0xff]
    %v3708 = vld [vmem:[#allocation7 + $0xf0] sm:$0xff]
    %v3709 = vld [vmem:[#allocation7 + $0xf8] sm:$0xff]
    %v3710 = vld [vmem:[#allocation7 + $0x100] sm:$0xff]
    %v3711 = vld [vmem:[#allocation7 + $0x108] sm:$0xff]
    %v3712 = vld [vmem:[#allocation7 + $0x110] sm:$0xff]
    %v3713 = vld [vmem:[#allocation7 + $0x118] sm:$0xff]
    %v3714 = vld [vmem:[#allocation7 + $0x120] sm:$0xff]
    %v3715 = vld [vmem:[#allocation7 + $0x128] sm:$0xff]
    %v3716 = vld [vmem:[#allocation7 + $0x130] sm:$0xff]
    %v3717 = vld [vmem:[#allocation7 + $0x138] sm:$0xff]
    %v3718 = vld [vmem:[#allocation7 + $0x140] sm:$0xff]
    %v3719 = vld [vmem:[#allocation7 + $0x148] sm:$0xff]
    %v3720 = vld [vmem:[#allocation7 + $0x150] sm:$0xff]
    %v3721 = vld [vmem:[#allocation7 + $0x158] sm:$0xff]
    %v3722 = vld [vmem:[#allocation7 + $0x160] sm:$0xff]
    %v3723 = vld [vmem:[#allocation7 + $0x168] sm:$0xff]
    %v3724 = vld [vmem:[#allocation7 + $0x170] sm:$0xff]
    %v3725 = vld [vmem:[#allocation7 + $0x178] sm:$0xff]
    %v3726 = vld [vmem:[#allocation7 + $0x180] sm:$0xff]
    %v3727 = vld [vmem:[#allocation7 + $0x188] sm:$0xff]
    %v3728 = vld [vmem:[#allocation7 + $0x190] sm:$0xff]
    %v3729 = vld [vmem:[#allocation7 + $0x198] sm:$0xff]
    %v3730 = vld [vmem:[#allocation7 + $0x1a0] sm:$0xff]
    %v3731 = vld [vmem:[#allocation7 + $0x1a8] sm:$0xff]
    %v3732 = vld [vmem:[#allocation7 + $0x1b0] sm:$0xff]
    %v3733 = vld [vmem:[#allocation7 + $0x1b8] sm:$0xff]
    %v3734 = vld [vmem:[#allocation7 + $0x1c0] sm:$0xff]
    %v3735 = vld [vmem:[#allocation7 + $0x1c8] sm:$0xff]
    %v3736 = vld [vmem:[#allocation7 + $0x1d0] sm:$0xff]
    %v3737 = vld [vmem:[#allocation7 + $0x1d8] sm:$0xff]
    %v3738 = vld [vmem:[#allocation7 + $0x1e0] sm:$0xff]
    %v3739 = vld [vmem:[#allocation7 + $0x1e8] sm:$0xff]
    %v3740 = vld [vmem:[#allocation7 + $0x1f0] sm:$0xff]
    %v3741 = vld [vmem:[#allocation7 + $0x1f8] sm:$0xff]
    %v3742 = vpack.c.bf16 %v3674, %v3674
    %v3743 = vpack.c.bf16 %v3675, %v3675
    %v3744 = vld [vmem:[#allocation9] sm:$0xff]
    %v3745 = vld [vmem:[#allocation9 + $0x8] sm:$0xff]
    %v3746 = vld [vmem:[#allocation9 + $0x10] sm:$0xff]
    %v3747 = vld [vmem:[#allocation9 + $0x18] sm:$0xff]
    %v3748 = vld [vmem:[#allocation9 + $0x20] sm:$0xff]
    %v3749 = vld [vmem:[#allocation9 + $0x28] sm:$0xff]
    %v3750 = vld [vmem:[#allocation9 + $0x30] sm:$0xff]
    %v3751 = vld [vmem:[#allocation9 + $0x38] sm:$0xff]
    %v3752 = vld [vmem:[#allocation9 + $0x40] sm:$0xff]
    %v3753 = vld [vmem:[#allocation9 + $0x48] sm:$0xff]
    %v3754 = vld [vmem:[#allocation9 + $0x50] sm:$0xff]
    %v3755 = vld [vmem:[#allocation9 + $0x58] sm:$0xff]
    %v3756 = vld [vmem:[#allocation9 + $0x60] sm:$0xff]
    %v3757 = vld [vmem:[#allocation9 + $0x68] sm:$0xff]
    %v3758 = vld [vmem:[#allocation9 + $0x70] sm:$0xff]
    %v3759 = vld [vmem:[#allocation9 + $0x78] sm:$0xff]
    %v3760 = vld [vmem:[#allocation9 + $0x80] sm:$0xff]
    %v3761 = vld [vmem:[#allocation9 + $0x88] sm:$0xff]
    %v3762 = vld [vmem:[#allocation9 + $0x90] sm:$0xff]
    %v3763 = vld [vmem:[#allocation9 + $0x98] sm:$0xff]
    %v3764 = vld [vmem:[#allocation9 + $0xa0] sm:$0xff]
    %v3765 = vld [vmem:[#allocation9 + $0xa8] sm:$0xff]
    %v3766 = vld [vmem:[#allocation9 + $0xb0] sm:$0xff]
    %v3767 = vld [vmem:[#allocation9 + $0xb8] sm:$0xff]
    %v3768 = vld [vmem:[#allocation9 + $0xc0] sm:$0xff]
    %v3769 = vld [vmem:[#allocation9 + $0xc8] sm:$0xff]
    %v3770 = vld [vmem:[#allocation9 + $0xd0] sm:$0xff]
    %v3771 = vld [vmem:[#allocation9 + $0xd8] sm:$0xff]
    %v3772 = vld [vmem:[#allocation9 + $0xe0] sm:$0xff]
    %v3773 = vld [vmem:[#allocation9 + $0xe8] sm:$0xff]
    %v3774 = vld [vmem:[#allocation9 + $0xf0] sm:$0xff]
    %v3775 = vld [vmem:[#allocation9 + $0xf8] sm:$0xff]
    %v3776 = vld [vmem:[#allocation9 + $0x100] sm:$0xff]
    %v3777 = vld [vmem:[#allocation9 + $0x108] sm:$0xff]
    %v3778 = vld [vmem:[#allocation9 + $0x110] sm:$0xff]
    %v3779 = vld [vmem:[#allocation9 + $0x118] sm:$0xff]
    %v3780 = vld [vmem:[#allocation9 + $0x120] sm:$0xff]
    %v3781 = vld [vmem:[#allocation9 + $0x128] sm:$0xff]
    %v3782 = vld [vmem:[#allocation9 + $0x130] sm:$0xff]
    %v3783 = vld [vmem:[#allocation9 + $0x138] sm:$0xff]
    %v3784 = vld [vmem:[#allocation9 + $0x140] sm:$0xff]
    %v3785 = vld [vmem:[#allocation9 + $0x148] sm:$0xff]
    %v3786 = vld [vmem:[#allocation9 + $0x150] sm:$0xff]
    %v3787 = vld [vmem:[#allocation9 + $0x158] sm:$0xff]
    %v3788 = vld [vmem:[#allocation9 + $0x160] sm:$0xff]
    %v3789 = vld [vmem:[#allocation9 + $0x168] sm:$0xff]
    %v3790 = vld [vmem:[#allocation9 + $0x170] sm:$0xff]
    %v3791 = vld [vmem:[#allocation9 + $0x178] sm:$0xff]
    %v3792 = vld [vmem:[#allocation9 + $0x180] sm:$0xff]
    %v3793 = vld [vmem:[#allocation9 + $0x188] sm:$0xff]
    %v3794 = vld [vmem:[#allocation9 + $0x190] sm:$0xff]
    %v3795 = vld [vmem:[#allocation9 + $0x198] sm:$0xff]
    %v3796 = vld [vmem:[#allocation9 + $0x1a0] sm:$0xff]
    %v3797 = vld [vmem:[#allocation9 + $0x1a8] sm:$0xff]
    %v3798 = vld [vmem:[#allocation9 + $0x1b0] sm:$0xff]
    %v3799 = vld [vmem:[#allocation9 + $0x1b8] sm:$0xff]
    %v3800 = vld [vmem:[#allocation9 + $0x1c0] sm:$0xff]
    %v3801 = vld [vmem:[#allocation9 + $0x1c8] sm:$0xff]
    %v3802 = vld [vmem:[#allocation9 + $0x1d0] sm:$0xff]
    %v3803 = vld [vmem:[#allocation9 + $0x1d8] sm:$0xff]
    %v3804 = vld [vmem:[#allocation9 + $0x1e0] sm:$0xff]
    %v3805 = vld [vmem:[#allocation9 + $0x1e8] sm:$0xff]
    %v3806 = vld [vmem:[#allocation9 + $0x1f0] sm:$0xff]
    %v3807 = vld [vmem:[#allocation9 + $0x1f8] sm:$0xff]
    %v3872 = vunpack.c.l.b16 %v3744
    %v3873 = vunpack.c.h.b16 %v3744
    %v3874 = vunpack.c.l.b16 %v3745
    %v3875 = vunpack.c.h.b16 %v3745
    %v3876 = vunpack.c.l.b16 %v3746
    %v3877 = vunpack.c.h.b16 %v3746
    %v3878 = vunpack.c.l.b16 %v3747
    %v3879 = vunpack.c.h.b16 %v3747
    %v3880 = vunpack.c.l.b16 %v3748
    %v3881 = vunpack.c.h.b16 %v3748
    %v3882 = vunpack.c.l.b16 %v3749
    %v3883 = vunpack.c.h.b16 %v3749
    %v3884 = vunpack.c.l.b16 %v3750
    %v3885 = vunpack.c.h.b16 %v3750
    %v3886 = vunpack.c.l.b16 %v3751
    %v3887 = vunpack.c.h.b16 %v3751
    %v3888 = vunpack.c.l.b16 %v3752
    %v3889 = vunpack.c.h.b16 %v3752
    %v3890 = vunpack.c.l.b16 %v3753
    %v3891 = vunpack.c.h.b16 %v3753
    %v3892 = vunpack.c.l.b16 %v3754
    %v3893 = vunpack.c.h.b16 %v3754
    %v3894 = vunpack.c.l.b16 %v3755
    %v3895 = vunpack.c.h.b16 %v3755
    %v3896 = vunpack.c.l.b16 %v3756
    %v3897 = vunpack.c.h.b16 %v3756
    %v3898 = vunpack.c.l.b16 %v3757
    %v3899 = vunpack.c.h.b16 %v3757
    %v3900 = vunpack.c.l.b16 %v3758
    %v3901 = vunpack.c.h.b16 %v3758
    %v3902 = vunpack.c.l.b16 %v3759
    %v3903 = vunpack.c.h.b16 %v3759
    %v3904 = vunpack.c.l.b16 %v3760
    %v3905 = vunpack.c.h.b16 %v3760
    %v3906 = vunpack.c.l.b16 %v3761
    %v3907 = vunpack.c.h.b16 %v3761
    %v3908 = vunpack.c.l.b16 %v3762
    %v3909 = vunpack.c.h.b16 %v3762
    %v3910 = vunpack.c.l.b16 %v3763
    %v3911 = vunpack.c.h.b16 %v3763
    %v3912 = vunpack.c.l.b16 %v3764
    %v3913 = vunpack.c.h.b16 %v3764
    %v3914 = vunpack.c.l.b16 %v3765
    %v3915 = vunpack.c.h.b16 %v3765
    %v3916 = vunpack.c.l.b16 %v3766
    %v3917 = vunpack.c.h.b16 %v3766
    %v3918 = vunpack.c.l.b16 %v3767
    %v3919 = vunpack.c.h.b16 %v3767
    %v3920 = vunpack.c.l.b16 %v3768
    %v3921 = vunpack.c.h.b16 %v3768
    %v3922 = vunpack.c.l.b16 %v3769
    %v3923 = vunpack.c.h.b16 %v3769
    %v3924 = vunpack.c.l.b16 %v3770
    %v3925 = vunpack.c.h.b16 %v3770
    %v3926 = vunpack.c.l.b16 %v3771
    %v3927 = vunpack.c.h.b16 %v3771
    %v3928 = vunpack.c.l.b16 %v3772
    %v3929 = vunpack.c.h.b16 %v3772
    %v3930 = vunpack.c.l.b16 %v3773
    %v3931 = vunpack.c.h.b16 %v3773
    %v3932 = vunpack.c.l.b16 %v3774
    %v3933 = vunpack.c.h.b16 %v3774
    %v3934 = vunpack.c.l.b16 %v3775
    %v3935 = vunpack.c.h.b16 %v3775
    %v3936 = vunpack.c.l.b16 %v3776
    %v3937 = vunpack.c.h.b16 %v3776
    %v3938 = vunpack.c.l.b16 %v3777
    %v3939 = vunpack.c.h.b16 %v3777
    %v3940 = vunpack.c.l.b16 %v3778
    %v3941 = vunpack.c.h.b16 %v3778
    %v3942 = vunpack.c.l.b16 %v3779
    %v3943 = vunpack.c.h.b16 %v3779
    %v3944 = vunpack.c.l.b16 %v3780
    %v3945 = vunpack.c.h.b16 %v3780
    %v3946 = vunpack.c.l.b16 %v3781
    %v3947 = vunpack.c.h.b16 %v3781
    %v3948 = vunpack.c.l.b16 %v3782
    %v3949 = vunpack.c.h.b16 %v3782
    %v3950 = vunpack.c.l.b16 %v3783
    %v3951 = vunpack.c.h.b16 %v3783
    %v3952 = vunpack.c.l.b16 %v3784
    %v3953 = vunpack.c.h.b16 %v3784
    %v3954 = vunpack.c.l.b16 %v3785
    %v3955 = vunpack.c.h.b16 %v3785
    %v3956 = vunpack.c.l.b16 %v3786
    %v3957 = vunpack.c.h.b16 %v3786
    %v3958 = vunpack.c.l.b16 %v3787
    %v3959 = vunpack.c.h.b16 %v3787
    %v3960 = vunpack.c.l.b16 %v3788
    %v3961 = vunpack.c.h.b16 %v3788
    %v3962 = vunpack.c.l.b16 %v3789
    %v3963 = vunpack.c.h.b16 %v3789
    %v3964 = vunpack.c.l.b16 %v3790
    %v3965 = vunpack.c.h.b16 %v3790
    %v3966 = vunpack.c.l.b16 %v3791
    %v3967 = vunpack.c.h.b16 %v3791
    %v3968 = vunpack.c.l.b16 %v3792
    %v3969 = vunpack.c.h.b16 %v3792
    %v3970 = vunpack.c.l.b16 %v3793
    %v3971 = vunpack.c.h.b16 %v3793
    %v3972 = vunpack.c.l.b16 %v3794
    %v3973 = vunpack.c.h.b16 %v3794
    %v3974 = vunpack.c.l.b16 %v3795
    %v3975 = vunpack.c.h.b16 %v3795
    %v3976 = vunpack.c.l.b16 %v3796
    %v3977 = vunpack.c.h.b16 %v3796
    %v3978 = vunpack.c.l.b16 %v3797
    %v3979 = vunpack.c.h.b16 %v3797
    %v3980 = vunpack.c.l.b16 %v3798
    %v3981 = vunpack.c.h.b16 %v3798
    %v3982 = vunpack.c.l.b16 %v3799
    %v3983 = vunpack.c.h.b16 %v3799
    %v3984 = vunpack.c.l.b16 %v3800
    %v3985 = vunpack.c.h.b16 %v3800
    %v3986 = vunpack.c.l.b16 %v3801
    %v3987 = vunpack.c.h.b16 %v3801
    %v3988 = vunpack.c.l.b16 %v3802
    %v3989 = vunpack.c.h.b16 %v3802
    %v3990 = vunpack.c.l.b16 %v3803
    %v3991 = vunpack.c.h.b16 %v3803
    %v3992 = vunpack.c.l.b16 %v3804
    %v3993 = vunpack.c.h.b16 %v3804
    %v3994 = vunpack.c.l.b16 %v3805
    %v3995 = vunpack.c.h.b16 %v3805
    %v3996 = vunpack.c.l.b16 %v3806
    %v3997 = vunpack.c.h.b16 %v3806
    %v3998 = vunpack.c.l.b16 %v3807
    %v3999 = vunpack.c.h.b16 %v3807
    %v4000 = vpack.c.b16 %v3876, %v3872
    %v4001 = vpack.c.b16 %v3877, %v3873
    %v4002 = vpack.c.b16 %v3878, %v3874
    %v4003 = vpack.c.b16 %v3879, %v3875
    %v4004 = vpack.c.b16 %v3884, %v3880
    %v4005 = vpack.c.b16 %v3885, %v3881
    %v4006 = vpack.c.b16 %v3886, %v3882
    %v4007 = vpack.c.b16 %v3887, %v3883
    %v4008 = vpack.c.b16 %v3892, %v3888
    %v4009 = vpack.c.b16 %v3893, %v3889
    %v4010 = vpack.c.b16 %v3894, %v3890
    %v4011 = vpack.c.b16 %v3895, %v3891
    %v4012 = vpack.c.b16 %v3900, %v3896
    %v4013 = vpack.c.b16 %v3901, %v3897
    %v4014 = vpack.c.b16 %v3902, %v3898
    %v4015 = vpack.c.b16 %v3903, %v3899
    %v4016 = vpack.c.b16 %v3908, %v3904
    %v4017 = vpack.c.b16 %v3909, %v3905
    %v4018 = vpack.c.b16 %v3910, %v3906
    %v4019 = vpack.c.b16 %v3911, %v3907
    %v4020 = vpack.c.b16 %v3916, %v3912
    %v4021 = vpack.c.b16 %v3917, %v3913
    %v4022 = vpack.c.b16 %v3918, %v3914
    %v4023 = vpack.c.b16 %v3919, %v3915
    %v4024 = vpack.c.b16 %v3924, %v3920
    %v4025 = vpack.c.b16 %v3925, %v3921
    %v4026 = vpack.c.b16 %v3926, %v3922
    %v4027 = vpack.c.b16 %v3927, %v3923
    %v4028 = vpack.c.b16 %v3932, %v3928
    %v4029 = vpack.c.b16 %v3933, %v3929
    %v4030 = vpack.c.b16 %v3934, %v3930
    %v4031 = vpack.c.b16 %v3935, %v3931
    %v4032 = vpack.c.b16 %v3940, %v3936
    %v4033 = vpack.c.b16 %v3941, %v3937
    %v4034 = vpack.c.b16 %v3942, %v3938
    %v4035 = vpack.c.b16 %v3943, %v3939
    %v4036 = vpack.c.b16 %v3948, %v3944
    %v4037 = vpack.c.b16 %v3949, %v3945
    %v4038 = vpack.c.b16 %v3950, %v3946
    %v4039 = vpack.c.b16 %v3951, %v3947
    %v4040 = vpack.c.b16 %v3956, %v3952
    %v4041 = vpack.c.b16 %v3957, %v3953
    %v4042 = vpack.c.b16 %v3958, %v3954
    %v4043 = vpack.c.b16 %v3959, %v3955
    %v4044 = vpack.c.b16 %v3964, %v3960
    %v4045 = vpack.c.b16 %v3965, %v3961
    %v4046 = vpack.c.b16 %v3966, %v3962
    %v4047 = vpack.c.b16 %v3967, %v3963
    %v4048 = vpack.c.b16 %v3972, %v3968
    %v4049 = vpack.c.b16 %v3973, %v3969
    %v4050 = vpack.c.b16 %v3974, %v3970
    %v4051 = vpack.c.b16 %v3975, %v3971
    %v4052 = vpack.c.b16 %v3980, %v3976
    %v4053 = vpack.c.b16 %v3981, %v3977
    %v4054 = vpack.c.b16 %v3982, %v3978
    %v4055 = vpack.c.b16 %v3983, %v3979
    %v4056 = vpack.c.b16 %v3988, %v3984
    %v4057 = vpack.c.b16 %v3989, %v3985
    %v4058 = vpack.c.b16 %v3990, %v3986
    %v4059 = vpack.c.b16 %v3991, %v3987
    %v4060 = vpack.c.b16 %v3996, %v3992
    %v4061 = vpack.c.b16 %v3997, %v3993
    %v4062 = vpack.c.b16 %v3998, %v3994
    %v4063 = vpack.c.b16 %v3999, %v3995
    %4128 = vmatprep.subr.bf16.mxu0 %v4029
    %4129 = vmatpush1.bf16.msra.mxu0 %v4028
    %4130 = vmatprep.subr.bf16.mxu0 %v4025
    %4131 = vmatpush1.bf16.msra.mxu0 %v4024
    %4132 = vmatprep.subr.bf16.mxu0 %v4021
    %4133 = vmatpush1.bf16.msra.mxu0 %v4020
    %4134 = vmatprep.subr.bf16.mxu0 %v4017
    %4135 = vmatpush1.bf16.msra.mxu0 %v4016
    %4136 = vmatprep.subr.bf16.mxu0 %v4013
    %4137 = vmatpush1.bf16.msra.mxu0 %v4012
    %4138 = vmatprep.subr.bf16.mxu0 %v4009
    %4139 = vmatpush1.bf16.msra.mxu0 %v4008
    %4140 = vmatprep.subr.bf16.mxu0 %v4005
    %4141 = vmatpush1.bf16.msra.mxu0 %v4004
    %4142 = vmatprep.subr.bf16.mxu0 %v4001
    %4143 = vmatpush1.bf16.msra.mxu0 %v4000
    %4144 = vmatprep.subr.bf16.mxu0 %v4061
    %4145 = vmatpush2.bf16.msra.mxu0 %v4060
    %4146 = vmatprep.subr.bf16.mxu0 %v4057
    %4147 = vmatpush2.bf16.msra.mxu0 %v4056
    %4148 = vmatprep.subr.bf16.mxu0 %v4053
    %4149 = vmatpush2.bf16.msra.mxu0 %v4052
    %4150 = vmatprep.subr.bf16.mxu0 %v4049
    %4151 = vmatpush2.bf16.msra.mxu0 %v4048
    %4152 = vmatprep.subr.bf16.mxu0 %v4045
    %4153 = vmatpush2.bf16.msra.mxu0 %v4044
    %4154 = vmatprep.subr.bf16.mxu0 %v4041
    %4155 = vmatpush2.bf16.msra.mxu0 %v4040
    %4156 = vmatprep.subr.bf16.mxu0 %v4037
    %4157 = vmatpush2.bf16.msra.mxu0 %v4036
    %4158 = vmatprep.subr.bf16.mxu0 %v4033
    %4159 = vmatpush2.bf16.msra.mxu0 %v4032
    %4160 = vmatprep.mubr.bf16.mxu0 %v3743
    %4161 = vmatmul.mubr.bf16.gmra.mxu0 %v3742
    %v4162 = vpop.f32.mrf.mxu0
    %v4163 = vadd.f32 0.0, %v4162
    %v4164 = vpop.f32.mrf.mxu0
    %v4165 = vadd.f32 0.0, %v4164
    %v4166 = vpop.f32.mrf.mxu0
    %v4167 = vpop.f32.mrf.mxu0
    %4168 = vdwg.mxu0
    %4169 = vmatprep.subr.bf16.mxu0 %v4031
    %4170 = vmatpush1.bf16.msra.mxu0 %v4030
    %4171 = vmatprep.subr.bf16.mxu0 %v4027
    %4172 = vmatpush1.bf16.msra.mxu0 %v4026
    %4173 = vmatprep.subr.bf16.mxu0 %v4023
    %4174 = vmatpush1.bf16.msra.mxu0 %v4022
    %4175 = vmatprep.subr.bf16.mxu0 %v4019
    %4176 = vmatpush1.bf16.msra.mxu0 %v4018
    %4177 = vmatprep.subr.bf16.mxu0 %v4015
    %4178 = vmatpush1.bf16.msra.mxu0 %v4014
    %4179 = vmatprep.subr.bf16.mxu0 %v4011
    %4180 = vmatpush1.bf16.msra.mxu0 %v4010
    %4181 = vmatprep.subr.bf16.mxu0 %v4007
    %4182 = vmatpush1.bf16.msra.mxu0 %v4006
    %4183 = vmatprep.subr.bf16.mxu0 %v4003
    %4184 = vmatpush1.bf16.msra.mxu0 %v4002
    %4185 = vmatprep.subr.bf16.mxu0 %v4063
    %4186 = vmatpush2.bf16.msra.mxu0 %v4062
    %4187 = vmatprep.subr.bf16.mxu0 %v4059
    %4188 = vmatpush2.bf16.msra.mxu0 %v4058
    %4189 = vmatprep.subr.bf16.mxu0 %v4055
    %4190 = vmatpush2.bf16.msra.mxu0 %v4054
    %4191 = vmatprep.subr.bf16.mxu0 %v4051
    %4192 = vmatpush2.bf16.msra.mxu0 %v4050
    %4193 = vmatprep.subr.bf16.mxu0 %v4047
    %4194 = vmatpush2.bf16.msra.mxu0 %v4046
    %4195 = vmatprep.subr.bf16.mxu0 %v4043
    %4196 = vmatpush2.bf16.msra.mxu0 %v4042
    %4197 = vmatprep.subr.bf16.mxu0 %v4039
    %4198 = vmatpush2.bf16.msra.mxu0 %v4038
    %4199 = vmatprep.subr.bf16.mxu0 %v4035
    %4200 = vmatpush2.bf16.msra.mxu0 %v4034
    %4201 = vmatprep.mubr.bf16.mxu0 %v3743
    %4202 = vmatmul.mubr.bf16.gmra.mxu0 %v3742
    %v4203 = vpop.f32.mrf.mxu0
    %v4204 = vadd.f32 0.0, %v4203
    %v4205 = vpop.f32.mrf.mxu0
    %v4206 = vadd.f32 0.0, %v4205
    %v4207 = vpop.f32.mrf.mxu0
    %v4208 = vpop.f32.mrf.mxu0
    %4209 = vdwg.mxu0
    %v4274 = vunpack.c.l.b16 %v3678
    %v4275 = vunpack.c.h.b16 %v3678
    %v4276 = vunpack.c.l.b16 %v3679
    %v4277 = vunpack.c.h.b16 %v3679
    %v4278 = vunpack.c.l.b16 %v3680
    %v4279 = vunpack.c.h.b16 %v3680
    %v4280 = vunpack.c.l.b16 %v3681
    %v4281 = vunpack.c.h.b16 %v3681
    %v4282 = vunpack.c.l.b16 %v3682
    %v4283 = vunpack.c.h.b16 %v3682
    %v4284 = vunpack.c.l.b16 %v3683
    %v4285 = vunpack.c.h.b16 %v3683
    %v4286 = vunpack.c.l.b16 %v3684
    %v4287 = vunpack.c.h.b16 %v3684
    %v4288 = vunpack.c.l.b16 %v3685
    %v4289 = vunpack.c.h.b16 %v3685
    %v4290 = vunpack.c.l.b16 %v3686
    %v4291 = vunpack.c.h.b16 %v3686
    %v4292 = vunpack.c.l.b16 %v3687
    %v4293 = vunpack.c.h.b16 %v3687
    %v4294 = vunpack.c.l.b16 %v3688
    %v4295 = vunpack.c.h.b16 %v3688
    %v4296 = vunpack.c.l.b16 %v3689
    %v4297 = vunpack.c.h.b16 %v3689
    %v4298 = vunpack.c.l.b16 %v3690
    %v4299 = vunpack.c.h.b16 %v3690
    %v4300 = vunpack.c.l.b16 %v3691
    %v4301 = vunpack.c.h.b16 %v3691
    %v4302 = vunpack.c.l.b16 %v3692
    %v4303 = vunpack.c.h.b16 %v3692
    %v4304 = vunpack.c.l.b16 %v3693
    %v4305 = vunpack.c.h.b16 %v3693
    %v4306 = vunpack.c.l.b16 %v3694
    %v4307 = vunpack.c.h.b16 %v3694
    %v4308 = vunpack.c.l.b16 %v3695
    %v4309 = vunpack.c.h.b16 %v3695
    %v4310 = vunpack.c.l.b16 %v3696
    %v4311 = vunpack.c.h.b16 %v3696
    %v4312 = vunpack.c.l.b16 %v3697
    %v4313 = vunpack.c.h.b16 %v3697
    %v4314 = vunpack.c.l.b16 %v3698
    %v4315 = vunpack.c.h.b16 %v3698
    %v4316 = vunpack.c.l.b16 %v3699
    %v4317 = vunpack.c.h.b16 %v3699
    %v4318 = vunpack.c.l.b16 %v3700
    %v4319 = vunpack.c.h.b16 %v3700
    %v4320 = vunpack.c.l.b16 %v3701
    %v4321 = vunpack.c.h.b16 %v3701
    %v4322 = vunpack.c.l.b16 %v3702
    %v4323 = vunpack.c.h.b16 %v3702
    %v4324 = vunpack.c.l.b16 %v3703
    %v4325 = vunpack.c.h.b16 %v3703
    %v4326 = vunpack.c.l.b16 %v3704
    %v4327 = vunpack.c.h.b16 %v3704
    %v4328 = vunpack.c.l.b16 %v3705
    %v4329 = vunpack.c.h.b16 %v3705
    %v4330 = vunpack.c.l.b16 %v3706
    %v4331 = vunpack.c.h.b16 %v3706
    %v4332 = vunpack.c.l.b16 %v3707
    %v4333 = vunpack.c.h.b16 %v3707
    %v4334 = vunpack.c.l.b16 %v3708
    %v4335 = vunpack.c.h.b16 %v3708
    %v4336 = vunpack.c.l.b16 %v3709
    %v4337 = vunpack.c.h.b16 %v3709
    %v4338 = vunpack.c.l.b16 %v3710
    %v4339 = vunpack.c.h.b16 %v3710
    %v4340 = vunpack.c.l.b16 %v3711
    %v4341 = vunpack.c.h.b16 %v3711
    %v4342 = vunpack.c.l.b16 %v3712
    %v4343 = vunpack.c.h.b16 %v3712
    %v4344 = vunpack.c.l.b16 %v3713
    %v4345 = vunpack.c.h.b16 %v3713
    %v4346 = vunpack.c.l.b16 %v3714
    %v4347 = vunpack.c.h.b16 %v3714
    %v4348 = vunpack.c.l.b16 %v3715
    %v4349 = vunpack.c.h.b16 %v3715
    %v4350 = vunpack.c.l.b16 %v3716
    %v4351 = vunpack.c.h.b16 %v3716
    %v4352 = vunpack.c.l.b16 %v3717
    %v4353 = vunpack.c.h.b16 %v3717
    %v4354 = vunpack.c.l.b16 %v3718
    %v4355 = vunpack.c.h.b16 %v3718
    %v4356 = vunpack.c.l.b16 %v3719
    %v4357 = vunpack.c.h.b16 %v3719
    %v4358 = vunpack.c.l.b16 %v3720
    %v4359 = vunpack.c.h.b16 %v3720
    %v4360 = vunpack.c.l.b16 %v3721
    %v4361 = vunpack.c.h.b16 %v3721
    %v4362 = vunpack.c.l.b16 %v3722
    %v4363 = vunpack.c.h.b16 %v3722
    %v4364 = vunpack.c.l.b16 %v3723
    %v4365 = vunpack.c.h.b16 %v3723
    %v4366 = vunpack.c.l.b16 %v3724
    %v4367 = vunpack.c.h.b16 %v3724
    %v4368 = vunpack.c.l.b16 %v3725
    %v4369 = vunpack.c.h.b16 %v3725
    %v4370 = vunpack.c.l.b16 %v3726
    %v4371 = vunpack.c.h.b16 %v3726
    %v4372 = vunpack.c.l.b16 %v3727
    %v4373 = vunpack.c.h.b16 %v3727
    %v4374 = vunpack.c.l.b16 %v3728
    %v4375 = vunpack.c.h.b16 %v3728
    %v4376 = vunpack.c.l.b16 %v3729
    %v4377 = vunpack.c.h.b16 %v3729
    %v4378 = vunpack.c.l.b16 %v3730
    %v4379 = vunpack.c.h.b16 %v3730
    %v4380 = vunpack.c.l.b16 %v3731
    %v4381 = vunpack.c.h.b16 %v3731
    %v4382 = vunpack.c.l.b16 %v3732
    %v4383 = vunpack.c.h.b16 %v3732
    %v4384 = vunpack.c.l.b16 %v3733
    %v4385 = vunpack.c.h.b16 %v3733
    %v4386 = vunpack.c.l.b16 %v3734
    %v4387 = vunpack.c.h.b16 %v3734
    %v4388 = vunpack.c.l.b16 %v3735
    %v4389 = vunpack.c.h.b16 %v3735
    %v4390 = vunpack.c.l.b16 %v3736
    %v4391 = vunpack.c.h.b16 %v3736
    %v4392 = vunpack.c.l.b16 %v3737
    %v4393 = vunpack.c.h.b16 %v3737
    %v4394 = vunpack.c.l.b16 %v3738
    %v4395 = vunpack.c.h.b16 %v3738
    %v4396 = vunpack.c.l.b16 %v3739
    %v4397 = vunpack.c.h.b16 %v3739
    %v4398 = vunpack.c.l.b16 %v3740
    %v4399 = vunpack.c.h.b16 %v3740
    %v4400 = vunpack.c.l.b16 %v3741
    %v4401 = vunpack.c.h.b16 %v3741
    %v4402 = vpack.c.b16 %v4278, %v4274
    %v4403 = vpack.c.b16 %v4279, %v4275
    %v4404 = vpack.c.b16 %v4280, %v4276
    %v4405 = vpack.c.b16 %v4281, %v4277
    %v4406 = vpack.c.b16 %v4286, %v4282
    %v4407 = vpack.c.b16 %v4287, %v4283
    %v4408 = vpack.c.b16 %v4288, %v4284
    %v4409 = vpack.c.b16 %v4289, %v4285
    %v4410 = vpack.c.b16 %v4294, %v4290
    %v4411 = vpack.c.b16 %v4295, %v4291
    %v4412 = vpack.c.b16 %v4296, %v4292
    %v4413 = vpack.c.b16 %v4297, %v4293
    %v4414 = vpack.c.b16 %v4302, %v4298
    %v4415 = vpack.c.b16 %v4303, %v4299
    %v4416 = vpack.c.b16 %v4304, %v4300
    %v4417 = vpack.c.b16 %v4305, %v4301
    %v4418 = vpack.c.b16 %v4310, %v4306
    %v4419 = vpack.c.b16 %v4311, %v4307
    %v4420 = vpack.c.b16 %v4312, %v4308
    %v4421 = vpack.c.b16 %v4313, %v4309
    %v4422 = vpack.c.b16 %v4318, %v4314
    %v4423 = vpack.c.b16 %v4319, %v4315
    %v4424 = vpack.c.b16 %v4320, %v4316
    %v4425 = vpack.c.b16 %v4321, %v4317
    %v4426 = vpack.c.b16 %v4326, %v4322
    %v4427 = vpack.c.b16 %v4327, %v4323
    %v4428 = vpack.c.b16 %v4328, %v4324
    %v4429 = vpack.c.b16 %v4329, %v4325
    %v4430 = vpack.c.b16 %v4334, %v4330
    %v4431 = vpack.c.b16 %v4335, %v4331
    %v4432 = vpack.c.b16 %v4336, %v4332
    %v4433 = vpack.c.b16 %v4337, %v4333
    %v4434 = vpack.c.b16 %v4342, %v4338
    %v4435 = vpack.c.b16 %v4343, %v4339
    %v4436 = vpack.c.b16 %v4344, %v4340
    %v4437 = vpack.c.b16 %v4345, %v4341
    %v4438 = vpack.c.b16 %v4350, %v4346
    %v4439 = vpack.c.b16 %v4351, %v4347
    %v4440 = vpack.c.b16 %v4352, %v4348
    %v4441 = vpack.c.b16 %v4353, %v4349
    %v4442 = vpack.c.b16 %v4358, %v4354
    %v4443 = vpack.c.b16 %v4359, %v4355
    %v4444 = vpack.c.b16 %v4360, %v4356
    %v4445 = vpack.c.b16 %v4361, %v4357
    %v4446 = vpack.c.b16 %v4366, %v4362
    %v4447 = vpack.c.b16 %v4367, %v4363
    %v4448 = vpack.c.b16 %v4368, %v4364
    %v4449 = vpack.c.b16 %v4369, %v4365
    %v4450 = vpack.c.b16 %v4374, %v4370
    %v4451 = vpack.c.b16 %v4375, %v4371
    %v4452 = vpack.c.b16 %v4376, %v4372
    %v4453 = vpack.c.b16 %v4377, %v4373
    %v4454 = vpack.c.b16 %v4382, %v4378
    %v4455 = vpack.c.b16 %v4383, %v4379
    %v4456 = vpack.c.b16 %v4384, %v4380
    %v4457 = vpack.c.b16 %v4385, %v4381
    %v4458 = vpack.c.b16 %v4390, %v4386
    %v4459 = vpack.c.b16 %v4391, %v4387
    %v4460 = vpack.c.b16 %v4392, %v4388
    %v4461 = vpack.c.b16 %v4393, %v4389
    %v4462 = vpack.c.b16 %v4398, %v4394
    %v4463 = vpack.c.b16 %v4399, %v4395
    %v4464 = vpack.c.b16 %v4400, %v4396
    %v4465 = vpack.c.b16 %v4401, %v4397
    %4530 = vmatprep.subr.bf16.mxu0 %v4431
    %4531 = vmatpush1.bf16.msra.mxu0 %v4430
    %4532 = vmatprep.subr.bf16.mxu0 %v4427
    %4533 = vmatpush1.bf16.msra.mxu0 %v4426
    %4534 = vmatprep.subr.bf16.mxu0 %v4423
    %4535 = vmatpush1.bf16.msra.mxu0 %v4422
    %4536 = vmatprep.subr.bf16.mxu0 %v4419
    %4537 = vmatpush1.bf16.msra.mxu0 %v4418
    %4538 = vmatprep.subr.bf16.mxu0 %v4415
    %4539 = vmatpush1.bf16.msra.mxu0 %v4414
    %4540 = vmatprep.subr.bf16.mxu0 %v4411
    %4541 = vmatpush1.bf16.msra.mxu0 %v4410
    %4542 = vmatprep.subr.bf16.mxu0 %v4407
    %4543 = vmatpush1.bf16.msra.mxu0 %v4406
    %4544 = vmatprep.subr.bf16.mxu0 %v4403
    %4545 = vmatpush1.bf16.msra.mxu0 %v4402
    %4546 = vmatprep.subr.bf16.mxu0 %v4463
    %4547 = vmatpush2.bf16.msra.mxu0 %v4462
    %4548 = vmatprep.subr.bf16.mxu0 %v4459
    %4549 = vmatpush2.bf16.msra.mxu0 %v4458
    %4550 = vmatprep.subr.bf16.mxu0 %v4455
    %4551 = vmatpush2.bf16.msra.mxu0 %v4454
    %4552 = vmatprep.subr.bf16.mxu0 %v4451
    %4553 = vmatpush2.bf16.msra.mxu0 %v4450
    %4554 = vmatprep.subr.bf16.mxu0 %v4447
    %4555 = vmatpush2.bf16.msra.mxu0 %v4446
    %4556 = vmatprep.subr.bf16.mxu0 %v4443
    %4557 = vmatpush2.bf16.msra.mxu0 %v4442
    %4558 = vmatprep.subr.bf16.mxu0 %v4439
    %4559 = vmatpush2.bf16.msra.mxu0 %v4438
    %4560 = vmatprep.subr.bf16.mxu0 %v4435
    %4561 = vmatpush2.bf16.msra.mxu0 %v4434
    %4562 = vmatprep.mubr.bf16.mxu0 %v3677
    %4563 = vmatmul.mubr.bf16.gmra.mxu0 %v3676
    %v4564 = vpop.f32.mrf.mxu0
    %v4565 = vadd.f32 %v4163, %v4564
    %v4566 = vpop.f32.mrf.mxu0
    %v4567 = vadd.f32 %v4165, %v4566
    %v4568 = vpop.f32.mrf.mxu0
    %v4569 = vpop.f32.mrf.mxu0
    %4570 = vdwg.mxu0
    %4571 = vmatprep.subr.bf16.mxu0 %v4433
    %4572 = vmatpush1.bf16.msra.mxu0 %v4432
    %4573 = vmatprep.subr.bf16.mxu0 %v4429
    %4574 = vmatpush1.bf16.msra.mxu0 %v4428
    %4575 = vmatprep.subr.bf16.mxu0 %v4425
    %4576 = vmatpush1.bf16.msra.mxu0 %v4424
    %4577 = vmatprep.subr.bf16.mxu0 %v4421
    %4578 = vmatpush1.bf16.msra.mxu0 %v4420
    %4579 = vmatprep.subr.bf16.mxu0 %v4417
    %4580 = vmatpush1.bf16.msra.mxu0 %v4416
    %4581 = vmatprep.subr.bf16.mxu0 %v4413
    %4582 = vmatpush1.bf16.msra.mxu0 %v4412
    %4583 = vmatprep.subr.bf16.mxu0 %v4409
    %4584 = vmatpush1.bf16.msra.mxu0 %v4408
    %4585 = vmatprep.subr.bf16.mxu0 %v4405
    %4586 = vmatpush1.bf16.msra.mxu0 %v4404
    %4587 = vmatprep.subr.bf16.mxu0 %v4465
    %4588 = vmatpush2.bf16.msra.mxu0 %v4464
    %4589 = vmatprep.subr.bf16.mxu0 %v4461
    %4590 = vmatpush2.bf16.msra.mxu0 %v4460
    %4591 = vmatprep.subr.bf16.mxu0 %v4457
    %4592 = vmatpush2.bf16.msra.mxu0 %v4456
    %4593 = vmatprep.subr.bf16.mxu0 %v4453
    %4594 = vmatpush2.bf16.msra.mxu0 %v4452
    %4595 = vmatprep.subr.bf16.mxu0 %v4449
    %4596 = vmatpush2.bf16.msra.mxu0 %v4448
    %4597 = vmatprep.subr.bf16.mxu0 %v4445
    %4598 = vmatpush2.bf16.msra.mxu0 %v4444
    %4599 = vmatprep.subr.bf16.mxu0 %v4441
    %4600 = vmatpush2.bf16.msra.mxu0 %v4440
    %4601 = vmatprep.subr.bf16.mxu0 %v4437
    %4602 = vmatpush2.bf16.msra.mxu0 %v4436
    %4603 = vmatprep.mubr.bf16.mxu0 %v3677
    %4604 = vmatmul.mubr.bf16.gmra.mxu0 %v3676
    %v4605 = vpop.f32.mrf.mxu0
    %v4606 = vadd.f32 %v4204, %v4605
    %v4607 = vpop.f32.mrf.mxu0
    %v4608 = vadd.f32 %v4206, %v4607
    %v4609 = vpop.f32.mrf.mxu0
    %v4610 = vpop.f32.mrf.mxu0
    %4611 = vdwg.mxu0
    %v4612 = vld [vmem:[%s12] sm:$0xf]
    %v4614 = vlaneseq
    %v4615 = vshrl.u32 %v4614, 7
    %v4616 = vsub.s32 0, %v4615
    %v4617 = vrot.slane %v4612, %v4616
    %v4618 = vlaneseq
    %v4619 = vshrl.u32 %v4618, 7
    %v4620 = vsub.s32 1, %v4619
    %v4621 = vrot.slane %v4612, %v4620
    %v4622 = vlaneseq
    %v4623 = vshrl.u32 %v4622, 7
    %v4624 = vsub.s32 2, %v4623
    %v4625 = vrot.slane %v4612, %v4624
    %v4626 = vlaneseq
    %v4627 = vshrl.u32 %v4626, 7
    %v4628 = vsub.s32 3, %v4627
    %v4629 = vrot.slane %v4612, %v4628
    %v4634 = vadd.f32 %v4565, %v4617
    %v4635 = vadd.f32 %v4567, %v4621
    %v4636 = vadd.f32 %v4606, %v4625
    %v4637 = vadd.f32 %v4608, %v4629
    %vm4638 = vcmp.gt.f32.partialorder %v4634, 0.0
    %vm4639 = vcmp.gt.f32.partialorder %v4635, 0.0
    %vm4640 = vcmp.gt.f32.partialorder %v4636, 0.0
    %vm4641 = vcmp.gt.f32.partialorder %v4637, 0.0
    %v4642 = vmin.f32 %v4634, 0.0
    %v4643 = vmin.f32 %v4635, 0.0
    %v4644 = vmin.f32 %v4636, 0.0
    %v4645 = vmin.f32 %v4637, 0.0
    %v4646 = vmul.f32 %v4642, 1.442695
    %v4647 = vpow.pop %v4646
    %v4648 = vmul.f32 %v4643, 1.442695
    %v4649 = vpow.pop %v4648
    %v4650 = vmul.f32 %v4644, 1.442695
    %v4651 = vpow.pop %v4650
    %v4652 = vmul.f32 %v4645, 1.442695
    %v4653 = vpow.pop %v4652
    %v4654 = vsub.f32 %v4647, 1.0
    %v4655 = vsub.f32 %v4649, 1.0
    %v4656 = vsub.f32 %v4651, 1.0
    %v4657 = vsub.f32 %v4653, 1.0
    %v4658 = vsel %vm4638, %v4634, %v4654
    %v4659 = vsel %vm4639, %v4635, %v4655
    %v4660 = vsel %vm4640, %v4636, %v4656
    %v4661 = vsel %vm4641, %v4637, %v4657
    %v4662 = vpack.c.bf16 %v4658, %v4658
    %v4663 = vpack.c.bf16 %v4659, %v4659
    %v4664 = vpack.c.bf16 %v4660, %v4660
    %v4665 = vpack.c.bf16 %v4661, %v4661
    %v4666 = vld [vmem:[#allocation10] sm:$0xff]
    %v4667 = vld [vmem:[#allocation10 + $0x8] sm:$0xff]
    %v4668 = vld [vmem:[#allocation10 + $0x10] sm:$0xff]
    %v4669 = vld [vmem:[#allocation10 + $0x18] sm:$0xff]
    %v4670 = vld [vmem:[#allocation10 + $0x20] sm:$0xff]
    %v4671 = vld [vmem:[#allocation10 + $0x28] sm:$0xff]
    %v4672 = vld [vmem:[#allocation10 + $0x30] sm:$0xff]
    %v4673 = vld [vmem:[#allocation10 + $0x38] sm:$0xff]
    %v4674 = vld [vmem:[#allocation10 + $0x40] sm:$0xff]
    %v4675 = vld [vmem:[#allocation10 + $0x48] sm:$0xff]
    %v4676 = vld [vmem:[#allocation10 + $0x50] sm:$0xff]
    %v4677 = vld [vmem:[#allocation10 + $0x58] sm:$0xff]
    %v4678 = vld [vmem:[#allocation10 + $0x60] sm:$0xff]
    %v4679 = vld [vmem:[#allocation10 + $0x68] sm:$0xff]
    %v4680 = vld [vmem:[#allocation10 + $0x70] sm:$0xff]
    %v4681 = vld [vmem:[#allocation10 + $0x78] sm:$0xff]
    %v4682 = vld [vmem:[#allocation10 + $0x80] sm:$0xff]
    %v4683 = vld [vmem:[#allocation10 + $0x88] sm:$0xff]
    %v4684 = vld [vmem:[#allocation10 + $0x90] sm:$0xff]
    %v4685 = vld [vmem:[#allocation10 + $0x98] sm:$0xff]
    %v4686 = vld [vmem:[#allocation10 + $0xa0] sm:$0xff]
    %v4687 = vld [vmem:[#allocation10 + $0xa8] sm:$0xff]
    %v4688 = vld [vmem:[#allocation10 + $0xb0] sm:$0xff]
    %v4689 = vld [vmem:[#allocation10 + $0xb8] sm:$0xff]
    %v4690 = vld [vmem:[#allocation10 + $0xc0] sm:$0xff]
    %v4691 = vld [vmem:[#allocation10 + $0xc8] sm:$0xff]
    %v4692 = vld [vmem:[#allocation10 + $0xd0] sm:$0xff]
    %v4693 = vld [vmem:[#allocation10 + $0xd8] sm:$0xff]
    %v4694 = vld [vmem:[#allocation10 + $0xe0] sm:$0xff]
    %v4695 = vld [vmem:[#allocation10 + $0xe8] sm:$0xff]
    %v4696 = vld [vmem:[#allocation10 + $0xf0] sm:$0xff]
    %v4697 = vld [vmem:[#allocation10 + $0xf8] sm:$0xff]
    %v4698 = vld [vmem:[#allocation10 + $0x100] sm:$0xff]
    %v4699 = vld [vmem:[#allocation10 + $0x108] sm:$0xff]
    %v4700 = vld [vmem:[#allocation10 + $0x110] sm:$0xff]
    %v4701 = vld [vmem:[#allocation10 + $0x118] sm:$0xff]
    %v4702 = vld [vmem:[#allocation10 + $0x120] sm:$0xff]
    %v4703 = vld [vmem:[#allocation10 + $0x128] sm:$0xff]
    %v4704 = vld [vmem:[#allocation10 + $0x130] sm:$0xff]
    %v4705 = vld [vmem:[#allocation10 + $0x138] sm:$0xff]
    %v4706 = vld [vmem:[#allocation10 + $0x140] sm:$0xff]
    %v4707 = vld [vmem:[#allocation10 + $0x148] sm:$0xff]
    %v4708 = vld [vmem:[#allocation10 + $0x150] sm:$0xff]
    %v4709 = vld [vmem:[#allocation10 + $0x158] sm:$0xff]
    %v4710 = vld [vmem:[#allocation10 + $0x160] sm:$0xff]
    %v4711 = vld [vmem:[#allocation10 + $0x168] sm:$0xff]
    %v4712 = vld [vmem:[#allocation10 + $0x170] sm:$0xff]
    %v4713 = vld [vmem:[#allocation10 + $0x178] sm:$0xff]
    %v4714 = vld [vmem:[#allocation10 + $0x180] sm:$0xff]
    %v4715 = vld [vmem:[#allocation10 + $0x188] sm:$0xff]
    %v4716 = vld [vmem:[#allocation10 + $0x190] sm:$0xff]
    %v4717 = vld [vmem:[#allocation10 + $0x198] sm:$0xff]
    %v4718 = vld [vmem:[#allocation10 + $0x1a0] sm:$0xff]
    %v4719 = vld [vmem:[#allocation10 + $0x1a8] sm:$0xff]
    %v4720 = vld [vmem:[#allocation10 + $0x1b0] sm:$0xff]
    %v4721 = vld [vmem:[#allocation10 + $0x1b8] sm:$0xff]
    %v4722 = vld [vmem:[#allocation10 + $0x1c0] sm:$0xff]
    %v4723 = vld [vmem:[#allocation10 + $0x1c8] sm:$0xff]
    %v4724 = vld [vmem:[#allocation10 + $0x1d0] sm:$0xff]
    %v4725 = vld [vmem:[#allocation10 + $0x1d8] sm:$0xff]
    %v4726 = vld [vmem:[#allocation10 + $0x1e0] sm:$0xff]
    %v4727 = vld [vmem:[#allocation10 + $0x1e8] sm:$0xff]
    %v4728 = vld [vmem:[#allocation10 + $0x1f0] sm:$0xff]
    %v4729 = vld [vmem:[#allocation10 + $0x1f8] sm:$0xff]
    %v4730 = vld [vmem:[#allocation10 + $0x200] sm:$0xff]
    %v4731 = vld [vmem:[#allocation10 + $0x208] sm:$0xff]
    %v4732 = vld [vmem:[#allocation10 + $0x210] sm:$0xff]
    %v4733 = vld [vmem:[#allocation10 + $0x218] sm:$0xff]
    %v4734 = vld [vmem:[#allocation10 + $0x220] sm:$0xff]
    %v4735 = vld [vmem:[#allocation10 + $0x228] sm:$0xff]
    %v4736 = vld [vmem:[#allocation10 + $0x230] sm:$0xff]
    %v4737 = vld [vmem:[#allocation10 + $0x238] sm:$0xff]
    %v4738 = vld [vmem:[#allocation10 + $0x240] sm:$0xff]
    %v4739 = vld [vmem:[#allocation10 + $0x248] sm:$0xff]
    %v4740 = vld [vmem:[#allocation10 + $0x250] sm:$0xff]
    %v4741 = vld [vmem:[#allocation10 + $0x258] sm:$0xff]
    %v4742 = vld [vmem:[#allocation10 + $0x260] sm:$0xff]
    %v4743 = vld [vmem:[#allocation10 + $0x268] sm:$0xff]
    %v4744 = vld [vmem:[#allocation10 + $0x270] sm:$0xff]
    %v4745 = vld [vmem:[#allocation10 + $0x278] sm:$0xff]
    %v4746 = vld [vmem:[#allocation10 + $0x280] sm:$0xff]
    %v4747 = vld [vmem:[#allocation10 + $0x288] sm:$0xff]
    %v4748 = vld [vmem:[#allocation10 + $0x290] sm:$0xff]
    %v4749 = vld [vmem:[#allocation10 + $0x298] sm:$0xff]
    %v4750 = vld [vmem:[#allocation10 + $0x2a0] sm:$0xff]
    %v4751 = vld [vmem:[#allocation10 + $0x2a8] sm:$0xff]
    %v4752 = vld [vmem:[#allocation10 + $0x2b0] sm:$0xff]
    %v4753 = vld [vmem:[#allocation10 + $0x2b8] sm:$0xff]
    %v4754 = vld [vmem:[#allocation10 + $0x2c0] sm:$0xff]
    %v4755 = vld [vmem:[#allocation10 + $0x2c8] sm:$0xff]
    %v4756 = vld [vmem:[#allocation10 + $0x2d0] sm:$0xff]
    %v4757 = vld [vmem:[#allocation10 + $0x2d8] sm:$0xff]
    %v4758 = vld [vmem:[#allocation10 + $0x2e0] sm:$0xff]
    %v4759 = vld [vmem:[#allocation10 + $0x2e8] sm:$0xff]
    %v4760 = vld [vmem:[#allocation10 + $0x2f0] sm:$0xff]
    %v4761 = vld [vmem:[#allocation10 + $0x2f8] sm:$0xff]
    %v4762 = vld [vmem:[#allocation10 + $0x300] sm:$0xff]
    %v4763 = vld [vmem:[#allocation10 + $0x308] sm:$0xff]
    %v4764 = vld [vmem:[#allocation10 + $0x310] sm:$0xff]
    %v4765 = vld [vmem:[#allocation10 + $0x318] sm:$0xff]
    %v4766 = vld [vmem:[#allocation10 + $0x320] sm:$0xff]
    %v4767 = vld [vmem:[#allocation10 + $0x328] sm:$0xff]
    %v4768 = vld [vmem:[#allocation10 + $0x330] sm:$0xff]
    %v4769 = vld [vmem:[#allocation10 + $0x338] sm:$0xff]
    %v4770 = vld [vmem:[#allocation10 + $0x340] sm:$0xff]
    %v4771 = vld [vmem:[#allocation10 + $0x348] sm:$0xff]
    %v4772 = vld [vmem:[#allocation10 + $0x350] sm:$0xff]
    %v4773 = vld [vmem:[#allocation10 + $0x358] sm:$0xff]
    %v4774 = vld [vmem:[#allocation10 + $0x360] sm:$0xff]
    %v4775 = vld [vmem:[#allocation10 + $0x368] sm:$0xff]
    %v4776 = vld [vmem:[#allocation10 + $0x370] sm:$0xff]
    %v4777 = vld [vmem:[#allocation10 + $0x378] sm:$0xff]
    %v4778 = vld [vmem:[#allocation10 + $0x380] sm:$0xff]
    %v4779 = vld [vmem:[#allocation10 + $0x388] sm:$0xff]
    %v4780 = vld [vmem:[#allocation10 + $0x390] sm:$0xff]
    %v4781 = vld [vmem:[#allocation10 + $0x398] sm:$0xff]
    %v4782 = vld [vmem:[#allocation10 + $0x3a0] sm:$0xff]
    %v4783 = vld [vmem:[#allocation10 + $0x3a8] sm:$0xff]
    %v4784 = vld [vmem:[#allocation10 + $0x3b0] sm:$0xff]
    %v4785 = vld [vmem:[#allocation10 + $0x3b8] sm:$0xff]
    %v4786 = vld [vmem:[#allocation10 + $0x3c0] sm:$0xff]
    %v4787 = vld [vmem:[#allocation10 + $0x3c8] sm:$0xff]
    %v4788 = vld [vmem:[#allocation10 + $0x3d0] sm:$0xff]
    %v4789 = vld [vmem:[#allocation10 + $0x3d8] sm:$0xff]
    %v4790 = vld [vmem:[#allocation10 + $0x3e0] sm:$0xff]
    %v4791 = vld [vmem:[#allocation10 + $0x3e8] sm:$0xff]
    %v4792 = vld [vmem:[#allocation10 + $0x3f0] sm:$0xff]
    %v4793 = vld [vmem:[#allocation10 + $0x3f8] sm:$0xff]
    %v4794 = vld [vmem:[%s14] sm:$0xf]
    %v4796 = vlaneseq
    %v4797 = vshrl.u32 %v4796, 7
    %v4798 = vsub.s32 0, %v4797
    %v4799 = vrot.slane %v4794, %v4798
    %v4800 = vlaneseq
    %v4801 = vshrl.u32 %v4800, 7
    %v4802 = vsub.s32 1, %v4801
    %v4803 = vrot.slane %v4794, %v4802
    %v4804 = vlaneseq
    %v4805 = vshrl.u32 %v4804, 7
    %v4806 = vsub.s32 2, %v4805
    %v4807 = vrot.slane %v4794, %v4806
    %v4808 = vlaneseq
    %v4809 = vshrl.u32 %v4808, 7
    %v4810 = vsub.s32 3, %v4809
    %v4811 = vrot.slane %v4794, %v4810
    %v4944 = vunpack.c.l.b16 %v4666
    %v4945 = vunpack.c.h.b16 %v4666
    %v4946 = vunpack.c.l.b16 %v4667
    %v4947 = vunpack.c.h.b16 %v4667
    %v4948 = vunpack.c.l.b16 %v4668
    %v4949 = vunpack.c.h.b16 %v4668
    %v4950 = vunpack.c.l.b16 %v4669
    %v4951 = vunpack.c.h.b16 %v4669
    %v4952 = vunpack.c.l.b16 %v4670
    %v4953 = vunpack.c.h.b16 %v4670
    %v4954 = vunpack.c.l.b16 %v4671
    %v4955 = vunpack.c.h.b16 %v4671
    %v4956 = vunpack.c.l.b16 %v4672
    %v4957 = vunpack.c.h.b16 %v4672
    %v4958 = vunpack.c.l.b16 %v4673
    %v4959 = vunpack.c.h.b16 %v4673
    %v4960 = vunpack.c.l.b16 %v4674
    %v4961 = vunpack.c.h.b16 %v4674
    %v4962 = vunpack.c.l.b16 %v4675
    %v4963 = vunpack.c.h.b16 %v4675
    %v4964 = vunpack.c.l.b16 %v4676
    %v4965 = vunpack.c.h.b16 %v4676
    %v4966 = vunpack.c.l.b16 %v4677
    %v4967 = vunpack.c.h.b16 %v4677
    %v4968 = vunpack.c.l.b16 %v4678
    %v4969 = vunpack.c.h.b16 %v4678
    %v4970 = vunpack.c.l.b16 %v4679
    %v4971 = vunpack.c.h.b16 %v4679
    %v4972 = vunpack.c.l.b16 %v4680
    %v4973 = vunpack.c.h.b16 %v4680
    %v4974 = vunpack.c.l.b16 %v4681
    %v4975 = vunpack.c.h.b16 %v4681
    %v4976 = vunpack.c.l.b16 %v4682
    %v4977 = vunpack.c.h.b16 %v4682
    %v4978 = vunpack.c.l.b16 %v4683
    %v4979 = vunpack.c.h.b16 %v4683
    %v4980 = vunpack.c.l.b16 %v4684
    %v4981 = vunpack.c.h.b16 %v4684
    %v4982 = vunpack.c.l.b16 %v4685
    %v4983 = vunpack.c.h.b16 %v4685
    %v4984 = vunpack.c.l.b16 %v4686
    %v4985 = vunpack.c.h.b16 %v4686
    %v4986 = vunpack.c.l.b16 %v4687
    %v4987 = vunpack.c.h.b16 %v4687
    %v4988 = vunpack.c.l.b16 %v4688
    %v4989 = vunpack.c.h.b16 %v4688
    %v4990 = vunpack.c.l.b16 %v4689
    %v4991 = vunpack.c.h.b16 %v4689
    %v4992 = vunpack.c.l.b16 %v4690
    %v4993 = vunpack.c.h.b16 %v4690
    %v4994 = vunpack.c.l.b16 %v4691
    %v4995 = vunpack.c.h.b16 %v4691
    %v4996 = vunpack.c.l.b16 %v4692
    %v4997 = vunpack.c.h.b16 %v4692
    %v4998 = vunpack.c.l.b16 %v4693
    %v4999 = vunpack.c.h.b16 %v4693
    %v5000 = vunpack.c.l.b16 %v4694
    %v5001 = vunpack.c.h.b16 %v4694
    %v5002 = vunpack.c.l.b16 %v4695
    %v5003 = vunpack.c.h.b16 %v4695
    %v5004 = vunpack.c.l.b16 %v4696
    %v5005 = vunpack.c.h.b16 %v4696
    %v5006 = vunpack.c.l.b16 %v4697
    %v5007 = vunpack.c.h.b16 %v4697
    %v5008 = vunpack.c.l.b16 %v4698
    %v5009 = vunpack.c.h.b16 %v4698
    %v5010 = vunpack.c.l.b16 %v4699
    %v5011 = vunpack.c.h.b16 %v4699
    %v5012 = vunpack.c.l.b16 %v4700
    %v5013 = vunpack.c.h.b16 %v4700
    %v5014 = vunpack.c.l.b16 %v4701
    %v5015 = vunpack.c.h.b16 %v4701
    %v5016 = vunpack.c.l.b16 %v4702
    %v5017 = vunpack.c.h.b16 %v4702
    %v5018 = vunpack.c.l.b16 %v4703
    %v5019 = vunpack.c.h.b16 %v4703
    %v5020 = vunpack.c.l.b16 %v4704
    %v5021 = vunpack.c.h.b16 %v4704
    %v5022 = vunpack.c.l.b16 %v4705
    %v5023 = vunpack.c.h.b16 %v4705
    %v5024 = vunpack.c.l.b16 %v4706
    %v5025 = vunpack.c.h.b16 %v4706
    %v5026 = vunpack.c.l.b16 %v4707
    %v5027 = vunpack.c.h.b16 %v4707
    %v5028 = vunpack.c.l.b16 %v4708
    %v5029 = vunpack.c.h.b16 %v4708
    %v5030 = vunpack.c.l.b16 %v4709
    %v5031 = vunpack.c.h.b16 %v4709
    %v5032 = vunpack.c.l.b16 %v4710
    %v5033 = vunpack.c.h.b16 %v4710
    %v5034 = vunpack.c.l.b16 %v4711
    %v5035 = vunpack.c.h.b16 %v4711
    %v5036 = vunpack.c.l.b16 %v4712
    %v5037 = vunpack.c.h.b16 %v4712
    %v5038 = vunpack.c.l.b16 %v4713
    %v5039 = vunpack.c.h.b16 %v4713
    %v5040 = vunpack.c.l.b16 %v4714
    %v5041 = vunpack.c.h.b16 %v4714
    %v5042 = vunpack.c.l.b16 %v4715
    %v5043 = vunpack.c.h.b16 %v4715
    %v5044 = vunpack.c.l.b16 %v4716
    %v5045 = vunpack.c.h.b16 %v4716
    %v5046 = vunpack.c.l.b16 %v4717
    %v5047 = vunpack.c.h.b16 %v4717
    %v5048 = vunpack.c.l.b16 %v4718
    %v5049 = vunpack.c.h.b16 %v4718
    %v5050 = vunpack.c.l.b16 %v4719
    %v5051 = vunpack.c.h.b16 %v4719
    %v5052 = vunpack.c.l.b16 %v4720
    %v5053 = vunpack.c.h.b16 %v4720
    %v5054 = vunpack.c.l.b16 %v4721
    %v5055 = vunpack.c.h.b16 %v4721
    %v5056 = vunpack.c.l.b16 %v4722
    %v5057 = vunpack.c.h.b16 %v4722
    %v5058 = vunpack.c.l.b16 %v4723
    %v5059 = vunpack.c.h.b16 %v4723
    %v5060 = vunpack.c.l.b16 %v4724
    %v5061 = vunpack.c.h.b16 %v4724
    %v5062 = vunpack.c.l.b16 %v4725
    %v5063 = vunpack.c.h.b16 %v4725
    %v5064 = vunpack.c.l.b16 %v4726
    %v5065 = vunpack.c.h.b16 %v4726
    %v5066 = vunpack.c.l.b16 %v4727
    %v5067 = vunpack.c.h.b16 %v4727
    %v5068 = vunpack.c.l.b16 %v4728
    %v5069 = vunpack.c.h.b16 %v4728
    %v5070 = vunpack.c.l.b16 %v4729
    %v5071 = vunpack.c.h.b16 %v4729
    %v5072 = vunpack.c.l.b16 %v4730
    %v5073 = vunpack.c.h.b16 %v4730
    %v5074 = vunpack.c.l.b16 %v4731
    %v5075 = vunpack.c.h.b16 %v4731
    %v5076 = vunpack.c.l.b16 %v4732
    %v5077 = vunpack.c.h.b16 %v4732
    %v5078 = vunpack.c.l.b16 %v4733
    %v5079 = vunpack.c.h.b16 %v4733
    %v5080 = vunpack.c.l.b16 %v4734
    %v5081 = vunpack.c.h.b16 %v4734
    %v5082 = vunpack.c.l.b16 %v4735
    %v5083 = vunpack.c.h.b16 %v4735
    %v5084 = vunpack.c.l.b16 %v4736
    %v5085 = vunpack.c.h.b16 %v4736
    %v5086 = vunpack.c.l.b16 %v4737
    %v5087 = vunpack.c.h.b16 %v4737
    %v5088 = vunpack.c.l.b16 %v4738
    %v5089 = vunpack.c.h.b16 %v4738
    %v5090 = vunpack.c.l.b16 %v4739
    %v5091 = vunpack.c.h.b16 %v4739
    %v5092 = vunpack.c.l.b16 %v4740
    %v5093 = vunpack.c.h.b16 %v4740
    %v5094 = vunpack.c.l.b16 %v4741
    %v5095 = vunpack.c.h.b16 %v4741
    %v5096 = vunpack.c.l.b16 %v4742
    %v5097 = vunpack.c.h.b16 %v4742
    %v5098 = vunpack.c.l.b16 %v4743
    %v5099 = vunpack.c.h.b16 %v4743
    %v5100 = vunpack.c.l.b16 %v4744
    %v5101 = vunpack.c.h.b16 %v4744
    %v5102 = vunpack.c.l.b16 %v4745
    %v5103 = vunpack.c.h.b16 %v4745
    %v5104 = vunpack.c.l.b16 %v4746
    %v5105 = vunpack.c.h.b16 %v4746
    %v5106 = vunpack.c.l.b16 %v4747
    %v5107 = vunpack.c.h.b16 %v4747
    %v5108 = vunpack.c.l.b16 %v4748
    %v5109 = vunpack.c.h.b16 %v4748
    %v5110 = vunpack.c.l.b16 %v4749
    %v5111 = vunpack.c.h.b16 %v4749
    %v5112 = vunpack.c.l.b16 %v4750
    %v5113 = vunpack.c.h.b16 %v4750
    %v5114 = vunpack.c.l.b16 %v4751
    %v5115 = vunpack.c.h.b16 %v4751
    %v5116 = vunpack.c.l.b16 %v4752
    %v5117 = vunpack.c.h.b16 %v4752
    %v5118 = vunpack.c.l.b16 %v4753
    %v5119 = vunpack.c.h.b16 %v4753
    %v5120 = vunpack.c.l.b16 %v4754
    %v5121 = vunpack.c.h.b16 %v4754
    %v5122 = vunpack.c.l.b16 %v4755
    %v5123 = vunpack.c.h.b16 %v4755
    %v5124 = vunpack.c.l.b16 %v4756
    %v5125 = vunpack.c.h.b16 %v4756
    %v5126 = vunpack.c.l.b16 %v4757
    %v5127 = vunpack.c.h.b16 %v4757
    %v5128 = vunpack.c.l.b16 %v4758
    %v5129 = vunpack.c.h.b16 %v4758
    %v5130 = vunpack.c.l.b16 %v4759
    %v5131 = vunpack.c.h.b16 %v4759
    %v5132 = vunpack.c.l.b16 %v4760
    %v5133 = vunpack.c.h.b16 %v4760
    %v5134 = vunpack.c.l.b16 %v4761
    %v5135 = vunpack.c.h.b16 %v4761
    %v5136 = vunpack.c.l.b16 %v4762
    %v5137 = vunpack.c.h.b16 %v4762
    %v5138 = vunpack.c.l.b16 %v4763
    %v5139 = vunpack.c.h.b16 %v4763
    %v5140 = vunpack.c.l.b16 %v4764
    %v5141 = vunpack.c.h.b16 %v4764
    %v5142 = vunpack.c.l.b16 %v4765
    %v5143 = vunpack.c.h.b16 %v4765
    %v5144 = vunpack.c.l.b16 %v4766
    %v5145 = vunpack.c.h.b16 %v4766
    %v5146 = vunpack.c.l.b16 %v4767
    %v5147 = vunpack.c.h.b16 %v4767
    %v5148 = vunpack.c.l.b16 %v4768
    %v5149 = vunpack.c.h.b16 %v4768
    %v5150 = vunpack.c.l.b16 %v4769
    %v5151 = vunpack.c.h.b16 %v4769
    %v5152 = vunpack.c.l.b16 %v4770
    %v5153 = vunpack.c.h.b16 %v4770
    %v5154 = vunpack.c.l.b16 %v4771
    %v5155 = vunpack.c.h.b16 %v4771
    %v5156 = vunpack.c.l.b16 %v4772
    %v5157 = vunpack.c.h.b16 %v4772
    %v5158 = vunpack.c.l.b16 %v4773
    %v5159 = vunpack.c.h.b16 %v4773
    %v5160 = vunpack.c.l.b16 %v4774
    %v5161 = vunpack.c.h.b16 %v4774
    %v5162 = vunpack.c.l.b16 %v4775
    %v5163 = vunpack.c.h.b16 %v4775
    %v5164 = vunpack.c.l.b16 %v4776
    %v5165 = vunpack.c.h.b16 %v4776
    %v5166 = vunpack.c.l.b16 %v4777
    %v5167 = vunpack.c.h.b16 %v4777
    %v5168 = vunpack.c.l.b16 %v4778
    %v5169 = vunpack.c.h.b16 %v4778
    %v5170 = vunpack.c.l.b16 %v4779
    %v5171 = vunpack.c.h.b16 %v4779
    %v5172 = vunpack.c.l.b16 %v4780
    %v5173 = vunpack.c.h.b16 %v4780
    %v5174 = vunpack.c.l.b16 %v4781
    %v5175 = vunpack.c.h.b16 %v4781
    %v5176 = vunpack.c.l.b16 %v4782
    %v5177 = vunpack.c.h.b16 %v4782
    %v5178 = vunpack.c.l.b16 %v4783
    %v5179 = vunpack.c.h.b16 %v4783
    %v5180 = vunpack.c.l.b16 %v4784
    %v5181 = vunpack.c.h.b16 %v4784
    %v5182 = vunpack.c.l.b16 %v4785
    %v5183 = vunpack.c.h.b16 %v4785
    %v5184 = vunpack.c.l.b16 %v4786
    %v5185 = vunpack.c.h.b16 %v4786
    %v5186 = vunpack.c.l.b16 %v4787
    %v5187 = vunpack.c.h.b16 %v4787
    %v5188 = vunpack.c.l.b16 %v4788
    %v5189 = vunpack.c.h.b16 %v4788
    %v5190 = vunpack.c.l.b16 %v4789
    %v5191 = vunpack.c.h.b16 %v4789
    %v5192 = vunpack.c.l.b16 %v4790
    %v5193 = vunpack.c.h.b16 %v4790
    %v5194 = vunpack.c.l.b16 %v4791
    %v5195 = vunpack.c.h.b16 %v4791
    %v5196 = vunpack.c.l.b16 %v4792
    %v5197 = vunpack.c.h.b16 %v4792
    %v5198 = vunpack.c.l.b16 %v4793
    %v5199 = vunpack.c.h.b16 %v4793
    %v5200 = vpack.c.b16 %v4948, %v4944
    %v5201 = vpack.c.b16 %v4949, %v4945
    %v5202 = vpack.c.b16 %v4950, %v4946
    %v5203 = vpack.c.b16 %v4951, %v4947
    %v5204 = vpack.c.b16 %v4956, %v4952
    %v5205 = vpack.c.b16 %v4957, %v4953
    %v5206 = vpack.c.b16 %v4958, %v4954
    %v5207 = vpack.c.b16 %v4959, %v4955
    %v5208 = vpack.c.b16 %v4964, %v4960
    %v5209 = vpack.c.b16 %v4965, %v4961
    %v5210 = vpack.c.b16 %v4966, %v4962
    %v5211 = vpack.c.b16 %v4967, %v4963
    %v5212 = vpack.c.b16 %v4972, %v4968
    %v5213 = vpack.c.b16 %v4973, %v4969
    %v5214 = vpack.c.b16 %v4974, %v4970
    %v5215 = vpack.c.b16 %v4975, %v4971
    %v5216 = vpack.c.b16 %v4980, %v4976
    %v5217 = vpack.c.b16 %v4981, %v4977
    %v5218 = vpack.c.b16 %v4982, %v4978
    %v5219 = vpack.c.b16 %v4983, %v4979
    %v5220 = vpack.c.b16 %v4988, %v4984
    %v5221 = vpack.c.b16 %v4989, %v4985
    %v5222 = vpack.c.b16 %v4990, %v4986
    %v5223 = vpack.c.b16 %v4991, %v4987
    %v5224 = vpack.c.b16 %v4996, %v4992
    %v5225 = vpack.c.b16 %v4997, %v4993
    %v5226 = vpack.c.b16 %v4998, %v4994
    %v5227 = vpack.c.b16 %v4999, %v4995
    %v5228 = vpack.c.b16 %v5004, %v5000
    %v5229 = vpack.c.b16 %v5005, %v5001
    %v5230 = vpack.c.b16 %v5006, %v5002
    %v5231 = vpack.c.b16 %v5007, %v5003
    %v5232 = vpack.c.b16 %v5012, %v5008
    %v5233 = vpack.c.b16 %v5013, %v5009
    %v5234 = vpack.c.b16 %v5014, %v5010
    %v5235 = vpack.c.b16 %v5015, %v5011
    %v5236 = vpack.c.b16 %v5020, %v5016
    %v5237 = vpack.c.b16 %v5021, %v5017
    %v5238 = vpack.c.b16 %v5022, %v5018
    %v5239 = vpack.c.b16 %v5023, %v5019
    %v5240 = vpack.c.b16 %v5028, %v5024
    %v5241 = vpack.c.b16 %v5029, %v5025
    %v5242 = vpack.c.b16 %v5030, %v5026
    %v5243 = vpack.c.b16 %v5031, %v5027
    %v5244 = vpack.c.b16 %v5036, %v5032
    %v5245 = vpack.c.b16 %v5037, %v5033
    %v5246 = vpack.c.b16 %v5038, %v5034
    %v5247 = vpack.c.b16 %v5039, %v5035
    %v5248 = vpack.c.b16 %v5044, %v5040
    %v5249 = vpack.c.b16 %v5045, %v5041
    %v5250 = vpack.c.b16 %v5046, %v5042
    %v5251 = vpack.c.b16 %v5047, %v5043
    %v5252 = vpack.c.b16 %v5052, %v5048
    %v5253 = vpack.c.b16 %v5053, %v5049
    %v5254 = vpack.c.b16 %v5054, %v5050
    %v5255 = vpack.c.b16 %v5055, %v5051
    %v5256 = vpack.c.b16 %v5060, %v5056
    %v5257 = vpack.c.b16 %v5061, %v5057
    %v5258 = vpack.c.b16 %v5062, %v5058
    %v5259 = vpack.c.b16 %v5063, %v5059
    %v5260 = vpack.c.b16 %v5068, %v5064
    %v5261 = vpack.c.b16 %v5069, %v5065
    %v5262 = vpack.c.b16 %v5070, %v5066
    %v5263 = vpack.c.b16 %v5071, %v5067
    %v5264 = vpack.c.b16 %v5076, %v5072
    %v5265 = vpack.c.b16 %v5077, %v5073
    %v5266 = vpack.c.b16 %v5078, %v5074
    %v5267 = vpack.c.b16 %v5079, %v5075
    %v5268 = vpack.c.b16 %v5084, %v5080
    %v5269 = vpack.c.b16 %v5085, %v5081
    %v5270 = vpack.c.b16 %v5086, %v5082
    %v5271 = vpack.c.b16 %v5087, %v5083
    %v5272 = vpack.c.b16 %v5092, %v5088
    %v5273 = vpack.c.b16 %v5093, %v5089
    %v5274 = vpack.c.b16 %v5094, %v5090
    %v5275 = vpack.c.b16 %v5095, %v5091
    %v5276 = vpack.c.b16 %v5100, %v5096
    %v5277 = vpack.c.b16 %v5101, %v5097
    %v5278 = vpack.c.b16 %v5102, %v5098
    %v5279 = vpack.c.b16 %v5103, %v5099
    %v5280 = vpack.c.b16 %v5108, %v5104
    %v5281 = vpack.c.b16 %v5109, %v5105
    %v5282 = vpack.c.b16 %v5110, %v5106
    %v5283 = vpack.c.b16 %v5111, %v5107
    %v5284 = vpack.c.b16 %v5116, %v5112
    %v5285 = vpack.c.b16 %v5117, %v5113
    %v5286 = vpack.c.b16 %v5118, %v5114
    %v5287 = vpack.c.b16 %v5119, %v5115
    %v5288 = vpack.c.b16 %v5124, %v5120
    %v5289 = vpack.c.b16 %v5125, %v5121
    %v5290 = vpack.c.b16 %v5126, %v5122
    %v5291 = vpack.c.b16 %v5127, %v5123
    %v5292 = vpack.c.b16 %v5132, %v5128
    %v5293 = vpack.c.b16 %v5133, %v5129
    %v5294 = vpack.c.b16 %v5134, %v5130
    %v5295 = vpack.c.b16 %v5135, %v5131
    %v5296 = vpack.c.b16 %v5140, %v5136
    %v5297 = vpack.c.b16 %v5141, %v5137
    %v5298 = vpack.c.b16 %v5142, %v5138
    %v5299 = vpack.c.b16 %v5143, %v5139
    %v5300 = vpack.c.b16 %v5148, %v5144
    %v5301 = vpack.c.b16 %v5149, %v5145
    %v5302 = vpack.c.b16 %v5150, %v5146
    %v5303 = vpack.c.b16 %v5151, %v5147
    %v5304 = vpack.c.b16 %v5156, %v5152
    %v5305 = vpack.c.b16 %v5157, %v5153
    %v5306 = vpack.c.b16 %v5158, %v5154
    %v5307 = vpack.c.b16 %v5159, %v5155
    %v5308 = vpack.c.b16 %v5164, %v5160
    %v5309 = vpack.c.b16 %v5165, %v5161
    %v5310 = vpack.c.b16 %v5166, %v5162
    %v5311 = vpack.c.b16 %v5167, %v5163
    %v5312 = vpack.c.b16 %v5172, %v5168
    %v5313 = vpack.c.b16 %v5173, %v5169
    %v5314 = vpack.c.b16 %v5174, %v5170
    %v5315 = vpack.c.b16 %v5175, %v5171
    %v5316 = vpack.c.b16 %v5180, %v5176
    %v5317 = vpack.c.b16 %v5181, %v5177
    %v5318 = vpack.c.b16 %v5182, %v5178
    %v5319 = vpack.c.b16 %v5183, %v5179
    %v5320 = vpack.c.b16 %v5188, %v5184
    %v5321 = vpack.c.b16 %v5189, %v5185
    %v5322 = vpack.c.b16 %v5190, %v5186
    %v5323 = vpack.c.b16 %v5191, %v5187
    %v5324 = vpack.c.b16 %v5196, %v5192
    %v5325 = vpack.c.b16 %v5197, %v5193
    %v5326 = vpack.c.b16 %v5198, %v5194
    %v5327 = vpack.c.b16 %v5199, %v5195
    %5456 = vmatprep.subr.bf16.mxu0 %v5229
    %5457 = vmatpush1.bf16.msra.mxu0 %v5228
    %5458 = vmatprep.subr.bf16.mxu0 %v5225
    %5459 = vmatpush1.bf16.msra.mxu0 %v5224
    %5460 = vmatprep.subr.bf16.mxu0 %v5221
    %5461 = vmatpush1.bf16.msra.mxu0 %v5220
    %5462 = vmatprep.subr.bf16.mxu0 %v5217
    %5463 = vmatpush1.bf16.msra.mxu0 %v5216
    %5464 = vmatprep.subr.bf16.mxu0 %v5213
    %5465 = vmatpush1.bf16.msra.mxu0 %v5212
    %5466 = vmatprep.subr.bf16.mxu0 %v5209
    %5467 = vmatpush1.bf16.msra.mxu0 %v5208
    %5468 = vmatprep.subr.bf16.mxu0 %v5205
    %5469 = vmatpush1.bf16.msra.mxu0 %v5204
    %5470 = vmatprep.subr.bf16.mxu0 %v5201
    %5471 = vmatpush1.bf16.msra.mxu0 %v5200
    %5472 = vmatprep.subr.bf16.mxu0 %v5261
    %5473 = vmatpush2.bf16.msra.mxu0 %v5260
    %5474 = vmatprep.subr.bf16.mxu0 %v5257
    %5475 = vmatpush2.bf16.msra.mxu0 %v5256
    %5476 = vmatprep.subr.bf16.mxu0 %v5253
    %5477 = vmatpush2.bf16.msra.mxu0 %v5252
    %5478 = vmatprep.subr.bf16.mxu0 %v5249
    %5479 = vmatpush2.bf16.msra.mxu0 %v5248
    %5480 = vmatprep.subr.bf16.mxu0 %v5245
    %5481 = vmatpush2.bf16.msra.mxu0 %v5244
    %5482 = vmatprep.subr.bf16.mxu0 %v5241
    %5483 = vmatpush2.bf16.msra.mxu0 %v5240
    %5484 = vmatprep.subr.bf16.mxu0 %v5237
    %5485 = vmatpush2.bf16.msra.mxu0 %v5236
    %5486 = vmatprep.subr.bf16.mxu0 %v5233
    %5487 = vmatpush2.bf16.msra.mxu0 %v5232
    %5488 = vmatprep.mubr.bf16.mxu0 %v4663
    %5489 = vmatmul.mubr.bf16.gmra.mxu0 %v4662
    %v5490 = vpop.f32.mrf.mxu0
    %v5491 = vadd.f32 %v4799, %v5490
    %v5492 = vpop.f32.mrf.mxu0
    %v5493 = vadd.f32 %v4803, %v5492
    %v5494 = vpop.f32.mrf.mxu0
    %v5495 = vpop.f32.mrf.mxu0
    %5496 = vdwg.mxu0
    %5497 = vmatprep.subr.bf16.mxu0 %v5293
    %5498 = vmatpush1.bf16.msra.mxu0 %v5292
    %5499 = vmatprep.subr.bf16.mxu0 %v5289
    %5500 = vmatpush1.bf16.msra.mxu0 %v5288
    %5501 = vmatprep.subr.bf16.mxu0 %v5285
    %5502 = vmatpush1.bf16.msra.mxu0 %v5284
    %5503 = vmatprep.subr.bf16.mxu0 %v5281
    %5504 = vmatpush1.bf16.msra.mxu0 %v5280
    %5505 = vmatprep.subr.bf16.mxu0 %v5277
    %5506 = vmatpush1.bf16.msra.mxu0 %v5276
    %5507 = vmatprep.subr.bf16.mxu0 %v5273
    %5508 = vmatpush1.bf16.msra.mxu0 %v5272
    %5509 = vmatprep.subr.bf16.mxu0 %v5269
    %5510 = vmatpush1.bf16.msra.mxu0 %v5268
    %5511 = vmatprep.subr.bf16.mxu0 %v5265
    %5512 = vmatpush1.bf16.msra.mxu0 %v5264
    %5513 = vmatprep.subr.bf16.mxu0 %v5325
    %5514 = vmatpush2.bf16.msra.mxu0 %v5324
    %5515 = vmatprep.subr.bf16.mxu0 %v5321
    %5516 = vmatpush2.bf16.msra.mxu0 %v5320
    %5517 = vmatprep.subr.bf16.mxu0 %v5317
    %5518 = vmatpush2.bf16.msra.mxu0 %v5316
    %5519 = vmatprep.subr.bf16.mxu0 %v5313
    %5520 = vmatpush2.bf16.msra.mxu0 %v5312
    %5521 = vmatprep.subr.bf16.mxu0 %v5309
    %5522 = vmatpush2.bf16.msra.mxu0 %v5308
    %5523 = vmatprep.subr.bf16.mxu0 %v5305
    %5524 = vmatpush2.bf16.msra.mxu0 %v5304
    %5525 = vmatprep.subr.bf16.mxu0 %v5301
    %5526 = vmatpush2.bf16.msra.mxu0 %v5300
    %5527 = vmatprep.subr.bf16.mxu0 %v5297
    %5528 = vmatpush2.bf16.msra.mxu0 %v5296
    %5529 = vmatprep.mubr.bf16.mxu0 %v4665
    %5530 = vmatmul.mubr.bf16.gmra.mxu0 %v4664
    %v5531 = vpop.f32.mrf.mxu0
    %v5532 = vadd.f32 %v5491, %v5531
    %v5533 = vpop.f32.mrf.mxu0
    %v5534 = vadd.f32 %v5493, %v5533
    %v5535 = vpop.f32.mrf.mxu0
    %v5536 = vpop.f32.mrf.mxu0
    %5537 = vdwg.mxu0
    %5538 = vmatprep.subr.bf16.mxu0 %v5231
    %5539 = vmatpush1.bf16.msra.mxu0 %v5230
    %5540 = vmatprep.subr.bf16.mxu0 %v5227
    %5541 = vmatpush1.bf16.msra.mxu0 %v5226
    %5542 = vmatprep.subr.bf16.mxu0 %v5223
    %5543 = vmatpush1.bf16.msra.mxu0 %v5222
    %5544 = vmatprep.subr.bf16.mxu0 %v5219
    %5545 = vmatpush1.bf16.msra.mxu0 %v5218
    %5546 = vmatprep.subr.bf16.mxu0 %v5215
    %5547 = vmatpush1.bf16.msra.mxu0 %v5214
    %5548 = vmatprep.subr.bf16.mxu0 %v5211
    %5549 = vmatpush1.bf16.msra.mxu0 %v5210
    %5550 = vmatprep.subr.bf16.mxu0 %v5207
    %5551 = vmatpush1.bf16.msra.mxu0 %v5206
    %5552 = vmatprep.subr.bf16.mxu0 %v5203
    %5553 = vmatpush1.bf16.msra.mxu0 %v5202
    %5554 = vmatprep.subr.bf16.mxu0 %v5263
    %5555 = vmatpush2.bf16.msra.mxu0 %v5262
    %5556 = vmatprep.subr.bf16.mxu0 %v5259
    %5557 = vmatpush2.bf16.msra.mxu0 %v5258
    %5558 = vmatprep.subr.bf16.mxu0 %v5255
    %5559 = vmatpush2.bf16.msra.mxu0 %v5254
    %5560 = vmatprep.subr.bf16.mxu0 %v5251
    %5561 = vmatpush2.bf16.msra.mxu0 %v5250
    %5562 = vmatprep.subr.bf16.mxu0 %v5247
    %5563 = vmatpush2.bf16.msra.mxu0 %v5246
    %5564 = vmatprep.subr.bf16.mxu0 %v5243
    %5565 = vmatpush2.bf16.msra.mxu0 %v5242
    %5566 = vmatprep.subr.bf16.mxu0 %v5239
    %5567 = vmatpush2.bf16.msra.mxu0 %v5238
    %5568 = vmatprep.subr.bf16.mxu0 %v5235
    %5569 = vmatpush2.bf16.msra.mxu0 %v5234
    %5570 = vmatprep.mubr.bf16.mxu0 %v4663
    %5571 = vmatmul.mubr.bf16.gmra.mxu0 %v4662
    %v5572 = vpop.f32.mrf.mxu0
    %v5573 = vadd.f32 %v4807, %v5572
    %v5574 = vpop.f32.mrf.mxu0
    %v5575 = vadd.f32 %v4811, %v5574
    %v5576 = vpop.f32.mrf.mxu0
    %v5577 = vpop.f32.mrf.mxu0
    %5578 = vdwg.mxu0
    %5579 = vmatprep.subr.bf16.mxu0 %v5295
    %5580 = vmatpush1.bf16.msra.mxu0 %v5294
    %5581 = vmatprep.subr.bf16.mxu0 %v5291
    %5582 = vmatpush1.bf16.msra.mxu0 %v5290
    %5583 = vmatprep.subr.bf16.mxu0 %v5287
    %5584 = vmatpush1.bf16.msra.mxu0 %v5286
    %5585 = vmatprep.subr.bf16.mxu0 %v5283
    %5586 = vmatpush1.bf16.msra.mxu0 %v5282
    %5587 = vmatprep.subr.bf16.mxu0 %v5279
    %5588 = vmatpush1.bf16.msra.mxu0 %v5278
    %5589 = vmatprep.subr.bf16.mxu0 %v5275
    %5590 = vmatpush1.bf16.msra.mxu0 %v5274
    %5591 = vmatprep.subr.bf16.mxu0 %v5271
    %5592 = vmatpush1.bf16.msra.mxu0 %v5270
    %5593 = vmatprep.subr.bf16.mxu0 %v5267
    %5594 = vmatpush1.bf16.msra.mxu0 %v5266
    %5595 = vmatprep.subr.bf16.mxu0 %v5327
    %5596 = vmatpush2.bf16.msra.mxu0 %v5326
    %5597 = vmatprep.subr.bf16.mxu0 %v5323
    %5598 = vmatpush2.bf16.msra.mxu0 %v5322
    %5599 = vmatprep.subr.bf16.mxu0 %v5319
    %5600 = vmatpush2.bf16.msra.mxu0 %v5318
    %5601 = vmatprep.subr.bf16.mxu0 %v5315
    %5602 = vmatpush2.bf16.msra.mxu0 %v5314
    %5603 = vmatprep.subr.bf16.mxu0 %v5311
    %5604 = vmatpush2.bf16.msra.mxu0 %v5310
    %5605 = vmatprep.subr.bf16.mxu0 %v5307
    %5606 = vmatpush2.bf16.msra.mxu0 %v5306
    %5607 = vmatprep.subr.bf16.mxu0 %v5303
    %5608 = vmatpush2.bf16.msra.mxu0 %v5302
    %5609 = vmatprep.subr.bf16.mxu0 %v5299
    %5610 = vmatpush2.bf16.msra.mxu0 %v5298
    %5611 = vmatprep.mubr.bf16.mxu0 %v4665
    %5612 = vmatmul.mubr.bf16.gmra.mxu0 %v4664
    %v5613 = vpop.f32.mrf.mxu0
    %v5614 = vadd.f32 %v5573, %v5613
    %v5615 = vpop.f32.mrf.mxu0
    %v5616 = vadd.f32 %v5575, %v5615
    %v5617 = vpop.f32.mrf.mxu0
    %v5618 = vpop.f32.mrf.mxu0
    %5619 = vdwg.mxu0
    %vm5620 = vcmp.gt.f32.partialorder %v5532, 0.0
    %vm5621 = vcmp.gt.f32.partialorder %v5534, 0.0
    %vm5622 = vcmp.gt.f32.partialorder %v5614, 0.0
    %vm5623 = vcmp.gt.f32.partialorder %v5616, 0.0
    %v5624 = vmin.f32 %v5532, 0.0
    %v5625 = vmin.f32 %v5534, 0.0
    %v5626 = vmin.f32 %v5614, 0.0
    %v5627 = vmin.f32 %v5616, 0.0
    %v5628 = vmul.f32 %v5624, 1.442695
    %v5629 = vpow.pop %v5628
    %v5630 = vmul.f32 %v5625, 1.442695
    %v5631 = vpow.pop %v5630
    %v5632 = vmul.f32 %v5626, 1.442695
    %v5633 = vpow.pop %v5632
    %v5634 = vmul.f32 %v5627, 1.442695
    %v5635 = vpow.pop %v5634
    %v5636 = vsub.f32 %v5629, 1.0
    %v5637 = vsub.f32 %v5631, 1.0
    %v5638 = vsub.f32 %v5633, 1.0
    %v5639 = vsub.f32 %v5635, 1.0
    %v5640 = vsel %vm5620, %v5532, %v5636
    %v5641 = vsel %vm5621, %v5534, %v5637
    %v5642 = vsel %vm5622, %v5614, %v5638
    %v5643 = vsel %vm5623, %v5616, %v5639
    %v5644 = vld [vmem:[%s15] sm:$0xf]
    %v5646 = vlaneseq
    %v5647 = vshrl.u32 %v5646, 7
    %v5648 = vsub.s32 0, %v5647
    %v5649 = vrot.slane %v5644, %v5648
    %v5650 = vlaneseq
    %v5651 = vshrl.u32 %v5650, 7
    %v5652 = vsub.s32 1, %v5651
    %v5653 = vrot.slane %v5644, %v5652
    %v5654 = vlaneseq
    %v5655 = vshrl.u32 %v5654, 7
    %v5656 = vsub.s32 2, %v5655
    %v5657 = vrot.slane %v5644, %v5656
    %v5658 = vlaneseq
    %v5659 = vshrl.u32 %v5658, 7
    %v5660 = vsub.s32 3, %v5659
    %v5661 = vrot.slane %v5644, %v5660
    %v5666 = vmul.f32 %v5640, %v5649
    %v5667 = vmul.f32 %v5641, %v5653
    %v5668 = vmul.f32 %v5642, %v5657
    %v5669 = vmul.f32 %v5643, %v5661
    %v5670 = vadd.f32 %v5666, %v5667
    %v5671 = vadd.f32 %v5670, %v5668
    %v5672 = vadd.f32 %v5671, %v5669
    %5673 = vadd.xlane.f32.xlu0 %v5672
    %v5674 = vpop.xlane.xlu0 %5673
    %v5675 = vld [vmem:[#allocation3] sm:$0x1]
    %v5677 = vlaneseq
    %v5678 = vshrl.u32 %v5677, 7
    %v5679 = vsub.s32 0, %v5678
    %v5680 = vrot.slane %v5675, %v5679
    %v5682 = vadd.f32 %v5674, %v5680
    %5684 = vset.pattern.permute.xlu0 0
    %5685 = vperm.xlu0 %5684, %v5682
    %v5686 = vpop.permute.xlu0 %5685
    %5688 = vst [vmem:[#allocation12] sm:$0xff] %v5686
    // Predicated region
    $region86: #{tpu_custom_call.1} parent=1 // pred_check
      _
    $region87: #{tpu_custom_call.1} parent=1 // pred_check_branch
      %5690 = sbr.rel (0) target = $region89
    $region88: #{tpu_custom_call.1} parent=1 // pred_region
      %s5692 = ssub.s32 128, 128
      %5693 = vsyncadd [#allocation6], %s5692
      %s5695 = sshll.u32 [#allocation12], 4
      %s5696 = int_to_ptr.vmem [resolvable:$true] %s5695
      %5698 = dma.vmem_to_hbm [thread:$0]  %s5696, 128, %s17, [#allocation6]
    $region89: #{tpu_custom_call.1} parent=1 // pred_fallthru
      _
    // Predicated region
    $region90: #{tpu_custom_call.1} parent=1 // pred_check
      _
    $region91: #{tpu_custom_call.1} parent=1 // pred_check_branch
      %5700 = sbr.rel (0) target = $region93
    $region92: #{tpu_custom_call.1} parent=1 // pred_region
      %5701 = dma.done [#allocation6], 128
    $region93: #{tpu_custom_call.1} parent=1 // pred_fallthru
      _
    %5702 = vsyncpa [#allocation5], 1
    %5703 = vsyncpa [#allocation8], 1
    %5704 = vsyncpa [#allocation11], 1
    %5705 = vsyncpa [#allocation6], 1

</llo_original>
